<compile_context>
chip_gen: v7x
topology: tpu7x:2x2x1
jax: 0.10.0
libtpu: 0.0.40
codegen_flags: <defaults>
</compile_context>

<pallas_src>
import functools

import jax
import jax.numpy as jnp
import numpy as np
from jax.experimental import pallas as pl
from jax.experimental.pallas import tpu as pltpu

BN_EPS = 1e-5
LEAKY_SLOPE = 0.01                      # F.leaky_relu default
LANE = 128                              # TPU lane width (output-channel padding)
_VMEM_LIMIT_BYTES = 48 * 1024 * 1024    # explicit scoped-VMEM cap (< v7x 64 MiB/TC)


def _round_up(v, m):
    return (v + m - 1) // m * m


# ---------------------------------------------------------------------------
# Pass 1 kernel: conv as K*K shifted bf16 matmuls (f32 accumulate)
#                + per-image partial BN statistics (sum, sum-of-squares).
# Grid: (batch, Cout/128); both axes independent -> "parallel".
# ---------------------------------------------------------------------------
def _conv_stats_kernel(x_ref, w_ref, o_ref, stats_ref, *, ksize, ho, wo):
    cin = x_ref.shape[-1]
    cpb = o_ref.shape[-1]                       # 128-wide Cout block
    acc = jnp.zeros((ho * wo, cpb), jnp.float32)
    for kh in range(ksize):
        for kw in range(ksize):
            xs = x_ref[0, kh:kh + ho, kw:kw + wo, :].reshape(ho * wo, cin)
            acc = acc + jnp.dot(xs, w_ref[kh * ksize + kw],
                                preferred_element_type=jnp.float32)
    o_ref[0] = acc
    stats_ref[0, 0:1, :] = jnp.sum(acc, axis=0, keepdims=True)
    stats_ref[0, 1:2, :] = jnp.sum(acc * acc, axis=0, keepdims=True)


def conv_bn_stats_pallas(z, wk):
    """z: (N, Hp, Wp, Cin) bf16 (padded / space-to-depth'ed, stride already folded)
       wk: (K*K, Cin, Cp) bf16 with Cp a multiple of 128 (zero-padded Cout)."""
    n, hp, wp, cin = z.shape
    kk, cin_w, cp = wk.shape
    assert cin_w == cin and cp % LANE == 0
    ksize = int(round(kk ** 0.5))
    assert ksize * ksize == kk
    ho, wo = hp - ksize + 1, wp - ksize + 1
    m = ho * wo
    ncb = cp // LANE

    kernel = functools.partial(_conv_stats_kernel, ksize=ksize, ho=ho, wo=wo)
    flops = 2 * n * m * kk * cin * cp
    bytes_acc = (int(z.size) * 2 + int(wk.size) * 2 * n
                 + n * m * cp * 4 + n * 2 * cp * 4)
    conv_raw, stats = pl.pallas_call(
        kernel,
        grid=(n, ncb),
        in_specs=[
            pl.BlockSpec((1, hp, wp, cin), lambda i, j: (i, 0, 0, 0)),
            pl.BlockSpec((kk, cin, LANE), lambda i, j: (0, 0, j)),
        ],
        out_specs=[
            pl.BlockSpec((1, m, LANE), lambda i, j: (i, 0, j)),
            pl.BlockSpec((1, 2, LANE), lambda i, j: (i, 0, j)),
        ],
        out_shape=[
            jax.ShapeDtypeStruct((n, m, cp), jnp.float32),
            jax.ShapeDtypeStruct((n, 2, cp), jnp.float32),
        ],
        compiler_params=pltpu.CompilerParams(
            dimension_semantics=("parallel", "parallel"),
            vmem_limit_bytes=_VMEM_LIMIT_BYTES),
        cost_estimate=pl.CostEstimate(flops=int(flops), transcendentals=0,
                                      bytes_accessed=int(bytes_acc)),
    )(z, wk)
    return conv_raw, stats


# ---------------------------------------------------------------------------
# Pass 2 kernel: BN affine (precomputed per-channel scale/shift)
#                + optional residual (plain tensor OR raw conv + its own BN)
#                + optional leaky_relu.  Lane-dense (last dim = 128) blocks.
# ---------------------------------------------------------------------------
def _bn_act_kernel(*refs, act, res_mode):
    o_ref = refs[-1]
    x_ref, scale_ref, shift_ref = refs[0], refs[1], refs[2]
    y = x_ref[0] * scale_ref[...] + shift_ref[...]
    if res_mode == 1:                                   # identity residual
        y = y + refs[3][0].astype(jnp.float32)
    elif res_mode == 2:                                 # shortcut conv + its BN, fused
        r_ref, rscale_ref, rshift_ref = refs[3], refs[4], refs[5]
        y = y + (r_ref[0] * rscale_ref[...] + rshift_ref[...])
    if act:
        y = jnp.where(y >= 0.0, y, LEAKY_SLOPE * y)
    o_ref[0] = y.astype(o_ref.dtype)


def bn_act_pallas(conv_raw, scale, shift, *, act, out_dtype,
                  res=None, res_raw=None, res_scale=None, res_shift=None):
    n, m, cp = conv_raw.shape
    ncb = cp // LANE
    row_spec = pl.BlockSpec((1, m, LANE), lambda i, j: (i, 0, j))
    vec_spec = pl.BlockSpec((1, LANE), lambda i, j: (0, j))

    operands = [conv_raw, scale, shift]
    in_specs = [row_spec, vec_spec, vec_spec]
    if res_raw is not None:
        res_mode = 2
        operands += [res_raw, res_scale, res_shift]
        in_specs += [row_spec, vec_spec, vec_spec]
    elif res is not None:
        res_mode = 1
        operands += [res]
        in_specs += [row_spec]
    else:
        res_mode = 0

    out_bytes = n * m * cp * jnp.dtype(out_dtype).itemsize
    in_bytes = sum(int(o.size) * o.dtype.itemsize for o in operands)
    kernel = functools.partial(_bn_act_kernel, act=act, res_mode=res_mode)
    return pl.pallas_call(
        kernel,
        grid=(n, ncb),
        in_specs=in_specs,
        out_specs=row_spec,
        out_shape=jax.ShapeDtypeStruct((n, m, cp), out_dtype),
        compiler_params=pltpu.CompilerParams(
            dimension_semantics=("parallel", "parallel"),
            vmem_limit_bytes=_VMEM_LIMIT_BYTES),
        cost_estimate=pl.CostEstimate(flops=int(5 * n * m * cp), transcendentals=0,
                                      bytes_accessed=int(in_bytes + out_bytes)),
    )(*operands)


# ---------------------------------------------------------------------------
# Wrapper-side glue: BN finalization, input/weight preparation (no im2col).
# ---------------------------------------------------------------------------
def _bn_scale_shift(stats, gamma, beta, m_total, cp):
    """Fold batch mean/var (from partial sums) + gamma/beta into scale/shift."""
    s1 = jnp.sum(stats[:, 0, :], axis=0)                 # (cp,)
    s2 = jnp.sum(stats[:, 1, :], axis=0)
    mean = s1 / m_total
    var = jnp.maximum(s2 / m_total - mean * mean, 0.0)   # biased var (train mode)
    inv = jax.lax.rsqrt(var + BN_EPS)
    g = jnp.pad(gamma.astype(jnp.float32), (0, cp - gamma.shape[0]))
    b = jnp.pad(beta.astype(jnp.float32), (0, cp - beta.shape[0]))
    scale = g * inv
    shift = b - mean * scale
    return scale.reshape(1, cp), shift.reshape(1, cp)


def _prep_conv3x3_s1(x_nhwc):
    return jnp.pad(x_nhwc, ((0, 0), (1, 1), (1, 1), (0, 0))).astype(jnp.bfloat16)


def _prep_w3x3_s1(w_oihw, cp):
    cout, cin = w_oihw.shape[0], w_oihw.shape[1]
    w = jnp.transpose(w_oihw, (2, 3, 1, 0)).reshape(9, cin, cout)
    return jnp.pad(w, ((0, 0), (0, 0), (0, cp - cout))).astype(jnp.bfloat16)


def _prep_conv3x3_s2(x_nhwc):
    """Space-to-depth: stride-2 3x3 conv  ==  stride-1 2x2 conv over this tensor."""
    n, h, w, c = x_nhwc.shape
    assert h % 2 == 0 and w % 2 == 0
    xp = jnp.pad(x_nhwc, ((0, 0), (1, 1), (1, 1), (0, 0)))
    parts = [xp[:, p::2, q::2, :] for p in range(2) for q in range(2)]
    return jnp.concatenate(parts, axis=-1).astype(jnp.bfloat16)   # (N, (H+2)/2, (W+2)/2, 4C)


def _prep_w3x3_s2(w_oihw, cp):
    cout, cin = w_oihw.shape[0], w_oihw.shape[1]
    w_hwio = jnp.transpose(w_oihw, (2, 3, 1, 0))          # (3, 3, cin, cout)
    wk = jnp.zeros((4, 4 * cin, cp), jnp.float32)
    for a in range(2):
        for b in range(2):
            for p in range(2):
                for q in range(2):
                    kh, kw = 2 * a + p, 2 * b + q
                    if kh < 3 and kw < 3:
                        wk = wk.at[a * 2 + b,
                                   (p * 2 + q) * cin:(p * 2 + q + 1) * cin,
                                   :cout].set(w_hwio[kh, kw])
    return wk.astype(jnp.bfloat16)


def _prep_w1x1(w_oihw, cp):
    cout, cin = w_oihw.shape[0], w_oihw.shape[1]
    w = jnp.transpose(w_oihw[:, :, 0, 0], (1, 0)).reshape(1, cin, cout)
    return jnp.pad(w, ((0, 0), (0, 0), (0, cp - cout))).astype(jnp.bfloat16)


# ---------------------------------------------------------------------------
# BasicBlock forward (same kernels also implement the ResNetMultiScale stem:
# conv3x3/s1 + BN + leaky_relu is conv_bn_stats_pallas + bn_act_pallas).
# ---------------------------------------------------------------------------
@functools.partial(jax.jit, static_argnames=("stride",))
def basic_block_forward(x_nchw, params, stride):
    assert stride in (1, 2)
    x = jnp.transpose(x_nchw, (0, 2, 3, 1)).astype(jnp.float32)   # NCHW -> NHWC
    n, h, w, cin = x.shape
    planes = params["conv1_w"].shape[0]
    cp = _round_up(planes, LANE)
    ho = (h + 2 - 3) // stride + 1
    wo = (w + 2 - 3) // stride + 1
    m_total = n * ho * wo

    # conv1 -> bn1 -> leaky_relu
    if stride == 1:
        z1 = _prep_conv3x3_s1(x)
        w1 = _prep_w3x3_s1(params["conv1_w"], cp)
    else:
        z1 = _prep_conv3x3_s2(x)
        w1 = _prep_w3x3_s2(params["conv1_w"], cp)
    raw1, st1 = conv_bn_stats_pallas(z1, w1)
    sc1, sh1 = _bn_scale_shift(st1, params["bn1_g"], params["bn1_b"], m_total, cp)
    out1 = bn_act_pallas(raw1, sc1, sh1, act=True, out_dtype=jnp.bfloat16)

    # conv2 -> bn2   (activation stays bf16 for the next matmul)
    out1_nhwc = out1.reshape(n, ho, wo, cp)[..., :planes]
    z2 = jnp.pad(out1_nhwc, ((0, 0), (1, 1), (1, 1), (0, 0)))
    w2 = _prep_w3x3_s1(params["conv2_w"], cp)
    raw2, st2 = conv_bn_stats_pallas(z2, w2)
    sc2, sh2 = _bn_scale_shift(st2, params["bn2_g"], params["bn2_b"], m_total, cp)

    # shortcut + residual add + leaky_relu, all fused into one pass-2 call
    if stride != 1 or cin != planes:
        xs = x[:, ::stride, ::stride, :].astype(jnp.bfloat16)     # 1x1 conv input
        ws = _prep_w1x1(params["sc_w"], cp)
        raws, sts = conv_bn_stats_pallas(xs, ws)
        rsc, rsh = _bn_scale_shift(sts, params["sc_g"], params["sc_b"], m_total, cp)
        out = bn_act_pallas(raw2, sc2, sh2, act=True, out_dtype=jnp.float32,
                            res_raw=raws, res_scale=rsc, res_shift=rsh)
    else:
        res = x.reshape(n, h * w, cin)
        res = jnp.pad(res, ((0, 0), (0, 0), (0, cp - cin)))
        out = bn_act_pallas(raw2, sc2, sh2, act=True, out_dtype=jnp.float32, res=res)

    out = out.reshape(n, ho, wo, cp)[..., :planes]
    return jnp.transpose(out, (0, 3, 1, 2))                       # NHWC -> NCHW


# ---------------------------------------------------------------------------
# Pure-JAX f32 reference (mirrors the PyTorch BasicBlock, training-mode BN).
# ---------------------------------------------------------------------------
def reference_forward(x, params, stride):
    def conv(v, w, s, pad):
        return jax.lax.conv_general_dilated(
            v, w, (s, s), [(pad, pad), (pad, pad)],
            dimension_numbers=("NCHW", "OIHW", "NCHW"))

    def bn(v, g, b):
        mean = jnp.mean(v, axis=(0, 2, 3), keepdims=True)
        var = jnp.mean((v - mean) ** 2, axis=(0, 2, 3), keepdims=True)
        return (v - mean) * jax.lax.rsqrt(var + BN_EPS) * g.reshape(1, -1, 1, 1) \
            + b.reshape(1, -1, 1, 1)

    def lrelu(v):
        return jnp.where(v >= 0, v, LEAKY_SLOPE * v)

    out = lrelu(bn(conv(x, params["conv1_w"], stride, 1), params["bn1_g"], params["bn1_b"]))
    out = bn(conv(out, params["conv2_w"], 1, 1), params["bn2_g"], params["bn2_b"])
    if stride != 1 or x.shape[1] != params["conv1_w"].shape[0]:
        sc = bn(conv(x, params["sc_w"], stride, 0), params["sc_g"], params["sc_b"])
    else:
        sc = x
    return lrelu(out + sc)


def _make_params(key, in_planes, planes, with_shortcut):
    ks = jax.random.split(key, 9)
    p = {
        "conv1_w": 0.1 * jax.random.normal(ks[0], (planes, in_planes, 3, 3), jnp.float32),
        "bn1_g": 1.0 + 0.1 * jax.random.normal(ks[1], (planes,), jnp.float32),
        "bn1_b": 0.05 * jax.random.normal(ks[2], (planes,), jnp.float32),
        "conv2_w": 0.1 * jax.random.normal(ks[3], (planes, planes, 3, 3), jnp.float32),
        "bn2_g": 1.0 + 0.1 * jax.random.normal(ks[4], (planes,), jnp.float32),
        "bn2_b": 0.05 * jax.random.normal(ks[5], (planes,), jnp.float32),
    }
    if with_shortcut:
        p.update({
            "sc_w": 0.1 * jax.random.normal(ks[6], (planes, in_planes, 1, 1), jnp.float32),
            "sc_g": 1.0 + 0.1 * jax.random.normal(ks[7], (planes,), jnp.float32),
            "sc_b": 0.05 * jax.random.normal(ks[8], (planes,), jnp.float32),
        })
    return p


if __name__ == "__main__":
    key = jax.random.PRNGKey(0)
    k1, k2, kx1, kx2 = jax.random.split(key, 4)

    # Test 1: downsampling block (stride 2, 4 -> 8 channels); the 1x1/stride-2
    # shortcut conv's BN is fused into the final pass-2 call.
    in_planes, planes, stride = 4, 8, 2
    N, H, W = 2, 16, 16
    params = _make_params(k1, in_planes, planes, with_shortcut=True)
    x = jax.random.normal(kx1, (N, in_planes, H, W), jnp.float32)
    out = jax.block_until_ready(basic_block_forward(x, params, stride))
    ref = jax.block_until_ready(reference_forward(x, params, stride))
    assert out.shape == (N, planes, H // stride, W // stride)
    # Tolerance accounts for bf16 matmul operands (accumulation is f32).
    np.testing.assert_allclose(np.asarray(out), np.asarray(ref), atol=3e-2, rtol=3e-2)

    # Test 2: identity-shortcut block (stride 1, in_planes == planes).
    params2 = _make_params(k2, 8, 8, with_shortcut=False)
    x2 = jax.random.normal(kx2, (N, 8, H, W), jnp.float32)
    out2 = jax.block_until_ready(basic_block_forward(x2, params2, 1))
    ref2 = jax.block_until_ready(reference_forward(x2, params2, 1))
    assert out2.shape == (N, 8, H, W)
    np.testing.assert_allclose(np.asarray(out2), np.asarray(ref2), atol=3e-2, rtol=3e-2)

    print("KERNEL_OK")
</pallas_src>

<mosaic_0001>
module attributes {stable_mosaic.version = 11 : i64} {
  func.func @_conv_stats_kernel(%arg0: i32, %arg1: i32, %arg2: memref<1x8x8x4xbf16, #tpu.memory_space<vmem>>, %arg3: memref<1x4x128xbf16, #tpu.memory_space<vmem>>, %arg4: memref<1x64x128xf32, #tpu.memory_space<vmem>>, %arg5: memref<1x2x128xf32, #tpu.memory_space<vmem>>) attributes {dimension_semantics = [#tpu.dimension_semantics<parallel>, #tpu.dimension_semantics<parallel>], iteration_bounds = array<i64: 2, 1>, scalar_prefetch = 0 : i64, scratch_operands = 0 : i64, tpu.core_type = #tpu.core_type<tc>, window_params = [{transform_indices = @transform_0, window_bounds = array<i64: 1, 8, 8, 4>}, {transform_indices = @transform_1, window_bounds = array<i64: 1, 4, 128>}, {transform_indices = @transform_2, window_bounds = array<i64: 1, 64, 128>}, {transform_indices = @transform_3, window_bounds = array<i64: 1, 2, 128>}]} {
    %cst = arith.constant 0.000000e+00 : f32
    %0 = vector.broadcast %cst : f32 to vector<64x128xf32>
    %c0 = arith.constant 0 : index
    %c0_0 = arith.constant 0 : index
    %c0_1 = arith.constant 0 : index
    %c0_2 = arith.constant 0 : index
    %1 = vector.load %arg2[%c0, %c0_0, %c0_1, %c0_2] : memref<1x8x8x4xbf16, #tpu.memory_space<vmem>>, vector<1x8x8x4xbf16>
    %2 = vector.shape_cast %1 : vector<1x8x8x4xbf16> to vector<8x8x4xbf16>
    %3 = vector.shape_cast %2 : vector<8x8x4xbf16> to vector<64x4xbf16>
    %c0_3 = arith.constant 0 : index
    %c0_4 = arith.constant 0 : index
    %c0_5 = arith.constant 0 : index
    %4 = vector.load %arg3[%c0_3, %c0_4, %c0_5] : memref<1x4x128xbf16, #tpu.memory_space<vmem>>, vector<1x4x128xbf16>
    %5 = vector.shape_cast %4 : vector<1x4x128xbf16> to vector<4x128xbf16>
    %cst_6 = arith.constant dense<0.000000e+00> : vector<64x128xf32>
    %6 = tpu.matmul %3, %5, %cst_6 {dimension_numbers = #tpu.dot_dimension_numbers<[1], [0], [0], [1], [0, 0, 1, 1], [], []>} : vector<64x4xbf16>, vector<4x128xbf16>, vector<64x128xf32> -> vector<64x128xf32>
    %7 = arith.addf %0, %6 : vector<64x128xf32>
    %c0_7 = arith.constant 0 : index
    %c0_8 = arith.constant 0 : index
    %c0_9 = arith.constant 0 : index
    %8 = vector.load %arg4[%c0_7, %c0_8, %c0_9] : memref<1x64x128xf32, #tpu.memory_space<vmem>>, vector<1x64x128xf32>
    %9 = vector.shape_cast %8 : vector<1x64x128xf32> to vector<64x128xf32>
    %10 = vector.shape_cast %7 : vector<64x128xf32> to vector<1x64x128xf32>
    tpu.vector_store %arg4[%c0_7, %c0_8, %c0_9], %10 {strides = array<i32>} : memref<1x64x128xf32, #tpu.memory_space<vmem>>, vector<1x64x128xf32>,
    %cst_10 = arith.constant dense<0.000000e+00> : vector<128xf32>
    %11 = vector.multi_reduction <add>, %7, %cst_10 [0] : vector<64x128xf32> to vector<128xf32>
    %12 = vector.shape_cast %11 : vector<128xf32> to vector<1x128xf32>
    %c0_11 = arith.constant 0 : index
    %c0_12 = arith.constant 0 : index
    %c0_13 = arith.constant 0 : index
    %13 = vector.load %arg5[%c0_11, %c0_12, %c0_13] : memref<1x2x128xf32, #tpu.memory_space<vmem>>, vector<1x1x128xf32>
    %14 = vector.shape_cast %13 : vector<1x1x128xf32> to vector<1x128xf32>
    %15 = vector.shape_cast %12 : vector<1x128xf32> to vector<1x1x128xf32>
    tpu.vector_store %arg5[%c0_11, %c0_12, %c0_13], %15 {strides = array<i32>} : memref<1x2x128xf32, #tpu.memory_space<vmem>>, vector<1x1x128xf32>,
    %16 = arith.mulf %7, %7 : vector<64x128xf32>
    %cst_14 = arith.constant dense<0.000000e+00> : vector<128xf32>
    %17 = vector.multi_reduction <add>, %16, %cst_14 [0] : vector<64x128xf32> to vector<128xf32>
    %18 = vector.shape_cast %17 : vector<128xf32> to vector<1x128xf32>
    %c0_15 = arith.constant 0 : index
    %c1 = arith.constant 1 : index
    %c0_16 = arith.constant 0 : index
    %19 = vector.load %arg5[%c0_15, %c1, %c0_16] : memref<1x2x128xf32, #tpu.memory_space<vmem>>, vector<1x1x128xf32>
    %20 = vector.shape_cast %19 : vector<1x1x128xf32> to vector<1x128xf32>
    %21 = vector.shape_cast %18 : vector<1x128xf32> to vector<1x1x128xf32>
    tpu.vector_store %arg5[%c0_15, %c1, %c0_16], %21 {strides = array<i32>} : memref<1x2x128xf32, #tpu.memory_space<vmem>>, vector<1x1x128xf32>,
    return
  }
  func.func @transform_0(%arg0: i32, %arg1: i32) -> (i32, i32, i32, i32) {
    %c0_i32 = arith.constant 0 : i32
    %c0_i32_0 = arith.constant 0 : i32
    %c0_i32_1 = arith.constant 0 : i32
    %c0_i32_2 = arith.constant 0 : i32
    return %arg0, %c0_i32, %c0_i32_0, %c0_i32_1 : i32, i32, i32, i32
  }
  func.func @transform_1(%arg0: i32, %arg1: i32) -> (i32, i32, i32) {
    %c0_i32 = arith.constant 0 : i32
    %c0_i32_0 = arith.constant 0 : i32
    %c0_i32_1 = arith.constant 0 : i32
    return %c0_i32, %c0_i32_0, %arg1 : i32, i32, i32
  }
  func.func @transform_2(%arg0: i32, %arg1: i32) -> (i32, i32, i32) {
    %c0_i32 = arith.constant 0 : i32
    %c0_i32_0 = arith.constant 0 : i32
    return %arg0, %c0_i32, %arg1 : i32, i32, i32
  }
  func.func @transform_3(%arg0: i32, %arg1: i32) -> (i32, i32, i32) {
    %c0_i32 = arith.constant 0 : i32
    %c0_i32_0 = arith.constant 0 : i32
    return %arg0, %c0_i32, %arg1 : i32, i32, i32
  }
}

module attributes {stable_mosaic.version = 11 : i64} {
  func.func @_conv_stats_kernel(%arg0: i32, %arg1: i32, %arg2: memref<1x9x9x16xbf16, #tpu.memory_space<vmem>>, %arg3: memref<4x16x128xbf16, #tpu.memory_space<vmem>>, %arg4: memref<1x64x128xf32, #tpu.memory_space<vmem>>, %arg5: memref<1x2x128xf32, #tpu.memory_space<vmem>>) attributes {dimension_semantics = [#tpu.dimension_semantics<parallel>, #tpu.dimension_semantics<parallel>], iteration_bounds = array<i64: 2, 1>, scalar_prefetch = 0 : i64, scratch_operands = 0 : i64, tpu.core_type = #tpu.core_type<tc>, window_params = [{transform_indices = @transform_0, window_bounds = array<i64: 1, 9, 9, 16>}, {transform_indices = @transform_1, window_bounds = array<i64: 4, 16, 128>}, {transform_indices = @transform_2, window_bounds = array<i64: 1, 64, 128>}, {transform_indices = @transform_3, window_bounds = array<i64: 1, 2, 128>}]} {
    %cst = arith.constant 0.000000e+00 : f32
    %0 = vector.broadcast %cst : f32 to vector<64x128xf32>
    %c0 = arith.constant 0 : index
    %c0_0 = arith.constant 0 : index
    %c0_1 = arith.constant 0 : index
    %c0_2 = arith.constant 0 : index
    %1 = vector.load %arg2[%c0, %c0_0, %c0_1, %c0_2] : memref<1x9x9x16xbf16, #tpu.memory_space<vmem>>, vector<1x8x8x16xbf16>
    %2 = vector.shape_cast %1 : vector<1x8x8x16xbf16> to vector<8x8x16xbf16>
    %3 = vector.shape_cast %2 : vector<8x8x16xbf16> to vector<64x16xbf16>
    %c0_3 = arith.constant 0 : index
    %c0_4 = arith.constant 0 : index
    %c0_5 = arith.constant 0 : index
    %4 = vector.load %arg3[%c0_3, %c0_4, %c0_5] : memref<4x16x128xbf16, #tpu.memory_space<vmem>>, vector<1x16x128xbf16>
    %5 = vector.shape_cast %4 : vector<1x16x128xbf16> to vector<16x128xbf16>
    %cst_6 = arith.constant dense<0.000000e+00> : vector<64x128xf32>
    %6 = tpu.matmul %3, %5, %cst_6 {dimension_numbers = #tpu.dot_dimension_numbers<[1], [0], [0], [1], [0, 0, 1, 1], [], []>} : vector<64x16xbf16>, vector<16x128xbf16>, vector<64x128xf32> -> vector<64x128xf32>
    %7 = arith.addf %0, %6 : vector<64x128xf32>
    %c0_7 = arith.constant 0 : index
    %c0_8 = arith.constant 0 : index
    %c1 = arith.constant 1 : index
    %c0_9 = arith.constant 0 : index
    %8 = vector.load %arg2[%c0_7, %c0_8, %c1, %c0_9] : memref<1x9x9x16xbf16, #tpu.memory_space<vmem>>, vector<1x8x8x16xbf16>
    %9 = vector.shape_cast %8 : vector<1x8x8x16xbf16> to vector<8x8x16xbf16>
    %10 = vector.shape_cast %9 : vector<8x8x16xbf16> to vector<64x16xbf16>
    %c1_10 = arith.constant 1 : index
    %c0_11 = arith.constant 0 : index
    %c0_12 = arith.constant 0 : index
    %11 = vector.load %arg3[%c1_10, %c0_11, %c0_12] : memref<4x16x128xbf16, #tpu.memory_space<vmem>>, vector<1x16x128xbf16>
    %12 = vector.shape_cast %11 : vector<1x16x128xbf16> to vector<16x128xbf16>
    %cst_13 = arith.constant dense<0.000000e+00> : vector<64x128xf32>
    %13 = tpu.matmul %10, %12, %cst_13 {dimension_numbers = #tpu.dot_dimension_numbers<[1], [0], [0], [1], [0, 0, 1, 1], [], []>} : vector<64x16xbf16>, vector<16x128xbf16>, vector<64x128xf32> -> vector<64x128xf32>
    %14 = arith.addf %7, %13 : vector<64x128xf32>
    %c0_14 = arith.constant 0 : index
    %c1_15 = arith.constant 1 : index
    %c0_16 = arith.constant 0 : index
    %c0_17 = arith.constant 0 : index
    %15 = vector.load %arg2[%c0_14, %c1_15, %c0_16, %c0_17] : memref<1x9x9x16xbf16, #tpu.memory_space<vmem>>, vector<1x8x8x16xbf16>
    %16 = vector.shape_cast %15 : vector<1x8x8x16xbf16> to vector<8x8x16xbf16>
    %17 = vector.shape_cast %16 : vector<8x8x16xbf16> to vector<64x16xbf16>
    %c2 = arith.constant 2 : index
    %c0_18 = arith.constant 0 : index
    %c0_19 = arith.constant 0 : index
    %18 = vector.load %arg3[%c2, %c0_18, %c0_19] : memref<4x16x128xbf16, #tpu.memory_space<vmem>>, vector<1x16x128xbf16>
    %19 = vector.shape_cast %18 : vector<1x16x128xbf16> to vector<16x128xbf16>
    %cst_20 = arith.constant dense<0.000000e+00> : vector<64x128xf32>
    %20 = tpu.matmul %17, %19, %cst_20 {dimension_numbers = #tpu.dot_dimension_numbers<[1], [0], [0], [1], [0, 0, 1, 1], [], []>} : vector<64x16xbf16>, vector<16x128xbf16>, vector<64x128xf32> -> vector<64x128xf32>
    %21 = arith.addf %14, %20 : vector<64x128xf32>
    %c0_21 = arith.constant 0 : index
    %c1_22 = arith.constant 1 : index
    %c1_23 = arith.constant 1 : index
    %c0_24 = arith.constant 0 : index
    %22 = vector.load %arg2[%c0_21, %c1_22, %c1_23, %c0_24] : memref<1x9x9x16xbf16, #tpu.memory_space<vmem>>, vector<1x8x8x16xbf16>
    %23 = vector.shape_cast %22 : vector<1x8x8x16xbf16> to vector<8x8x16xbf16>
    %24 = vector.shape_cast %23 : vector<8x8x16xbf16> to vector<64x16xbf16>
    %c3 = arith.constant 3 : index
    %c0_25 = arith.constant 0 : index
    %c0_26 = arith.constant 0 : index
    %25 = vector.load %arg3[%c3, %c0_25, %c0_26] : memref<4x16x128xbf16, #tpu.memory_space<vmem>>, vector<1x16x128xbf16>
    %26 = vector.shape_cast %25 : vector<1x16x128xbf16> to vector<16x128xbf16>
    %cst_27 = arith.constant dense<0.000000e+00> : vector<64x128xf32>
    %27 = tpu.matmul %24, %26, %cst_27 {dimension_numbers = #tpu.dot_dimension_numbers<[1], [0], [0], [1], [0, 0, 1, 1], [], []>} : vector<64x16xbf16>, vector<16x128xbf16>, vector<64x128xf32> -> vector<64x128xf32>
    %28 = arith.addf %21, %27 : vector<64x128xf32>
    %c0_28 = arith.constant 0 : index
    %c0_29 = arith.constant 0 : index
    %c0_30 = arith.constant 0 : index
    %29 = vector.load %arg4[%c0_28, %c0_29, %c0_30] : memref<1x64x128xf32, #tpu.memory_space<vmem>>, vector<1x64x128xf32>
    %30 = vector.shape_cast %29 : vector<1x64x128xf32> to vector<64x128xf32>
    %31 = vector.shape_cast %28 : vector<64x128xf32> to vector<1x64x128xf32>
    tpu.vector_store %arg4[%c0_28, %c0_29, %c0_30], %31 {strides = array<i32>} : memref<1x64x128xf32, #tpu.memory_space<vmem>>, vector<1x64x128xf32>,
    %cst_31 = arith.constant dense<0.000000e+00> : vector<128xf32>
    %32 = vector.multi_reduction <add>, %28, %cst_31 [0] : vector<64x128xf32> to vector<128xf32>
    %33 = vector.shape_cast %32 : vector<128xf32> to vector<1x128xf32>
    %c0_32 = arith.constant 0 : index
    %c0_33 = arith.constant 0 : index
    %c0_34 = arith.constant 0 : index
    %34 = vector.load %arg5[%c0_32, %c0_33, %c0_34] : memref<1x2x128xf32, #tpu.memory_space<vmem>>, vector<1x1x128xf32>
    %35 = vector.shape_cast %34 : vector<1x1x128xf32> to vector<1x128xf32>
    %36 = vector.shape_cast %33 : vector<1x128xf32> to vector<1x1x128xf32>
    tpu.vector_store %arg5[%c0_32, %c0_33, %c0_34], %36 {strides = array<i32>} : memref<1x2x128xf32, #tpu.memory_space<vmem>>, vector<1x1x128xf32>,
    %37 = arith.mulf %28, %28 : vector<64x128xf32>
    %cst_35 = arith.constant dense<0.000000e+00> : vector<128xf32>
    %38 = vector.multi_reduction <add>, %37, %cst_35 [0] : vector<64x128xf32> to vector<128xf32>
    %39 = vector.shape_cast %38 : vector<128xf32> to vector<1x128xf32>
    %c0_36 = arith.constant 0 : index
    %c1_37 = arith.constant 1 : index
    %c0_38 = arith.constant 0 : index
    %40 = vector.load %arg5[%c0_36, %c1_37, %c0_38] : memref<1x2x128xf32, #tpu.memory_space<vmem>>, vector<1x1x128xf32>
    %41 = vector.shape_cast %40 : vector<1x1x128xf32> to vector<1x128xf32>
    %42 = vector.shape_cast %39 : vector<1x128xf32> to vector<1x1x128xf32>
    tpu.vector_store %arg5[%c0_36, %c1_37, %c0_38], %42 {strides = array<i32>} : memref<1x2x128xf32, #tpu.memory_space<vmem>>, vector<1x1x128xf32>,
    return
  }
  func.func @transform_0(%arg0: i32, %arg1: i32) -> (i32, i32, i32, i32) {
    %c0_i32 = arith.constant 0 : i32
    %c0_i32_0 = arith.constant 0 : i32
    %c0_i32_1 = arith.constant 0 : i32
    %c0_i32_2 = arith.constant 0 : i32
    return %arg0, %c0_i32, %c0_i32_0, %c0_i32_1 : i32, i32, i32, i32
  }
  func.func @transform_1(%arg0: i32, %arg1: i32) -> (i32, i32, i32) {
    %c0_i32 = arith.constant 0 : i32
    %c0_i32_0 = arith.constant 0 : i32
    %c0_i32_1 = arith.constant 0 : i32
    return %c0_i32, %c0_i32_0, %arg1 : i32, i32, i32
  }
  func.func @transform_2(%arg0: i32, %arg1: i32) -> (i32, i32, i32) {
    %c0_i32 = arith.constant 0 : i32
    %c0_i32_0 = arith.constant 0 : i32
    return %arg0, %c0_i32, %arg1 : i32, i32, i32
  }
  func.func @transform_3(%arg0: i32, %arg1: i32) -> (i32, i32, i32) {
    %c0_i32 = arith.constant 0 : i32
    %c0_i32_0 = arith.constant 0 : i32
    return %arg0, %c0_i32, %arg1 : i32, i32, i32
  }
}

module attributes {stable_mosaic.version = 11 : i64} {
  func.func @_bn_act_kernel(%arg0: i32, %arg1: i32, %arg2: memref<1x64x128xf32, #tpu.memory_space<vmem>>, %arg3: memref<1x128xf32, #tpu.memory_space<vmem>>, %arg4: memref<1x128xf32, #tpu.memory_space<vmem>>, %arg5: memref<1x64x128xbf16, #tpu.memory_space<vmem>>) attributes {dimension_semantics = [#tpu.dimension_semantics<parallel>, #tpu.dimension_semantics<parallel>], iteration_bounds = array<i64: 2, 1>, scalar_prefetch = 0 : i64, scratch_operands = 0 : i64, tpu.core_type = #tpu.core_type<tc>, window_params = [{transform_indices = @transform_0, window_bounds = array<i64: 1, 64, 128>}, {transform_indices = @transform_1, window_bounds = array<i64: 1, 128>}, {transform_indices = @transform_2, window_bounds = array<i64: 1, 128>}, {transform_indices = @transform_3, window_bounds = array<i64: 1, 64, 128>}]} {
    %c0 = arith.constant 0 : index
    %c0_0 = arith.constant 0 : index
    %c0_1 = arith.constant 0 : index
    %0 = vector.load %arg2[%c0, %c0_0, %c0_1] : memref<1x64x128xf32, #tpu.memory_space<vmem>>, vector<1x64x128xf32>
    %1 = vector.shape_cast %0 : vector<1x64x128xf32> to vector<64x128xf32>
    %c0_2 = arith.constant 0 : index
    %c0_3 = arith.constant 0 : index
    %2 = vector.load %arg3[%c0_2, %c0_3] : memref<1x128xf32, #tpu.memory_space<vmem>>, vector<1x128xf32>
    %3 = vector.broadcast %2 : vector<1x128xf32> to vector<64x128xf32>
    %4 = arith.mulf %1, %3 : vector<64x128xf32>
    %c0_4 = arith.constant 0 : index
    %c0_5 = arith.constant 0 : index
    %5 = vector.load %arg4[%c0_4, %c0_5] : memref<1x128xf32, #tpu.memory_space<vmem>>, vector<1x128xf32>
    %6 = vector.broadcast %5 : vector<1x128xf32> to vector<64x128xf32>
    %7 = arith.addf %4, %6 : vector<64x128xf32>
    %cst = arith.constant 0.000000e+00 : f32
    %8 = vector.broadcast %cst : f32 to vector<64x128xf32>
    %9 = arith.cmpf oge, %7, %8 : vector<64x128xf32>
    %cst_6 = arith.constant 0.00999999977 : f32
    %10 = vector.broadcast %cst_6 : f32 to vector<64x128xf32>
    %11 = arith.mulf %10, %7 : vector<64x128xf32>
    %12 = arith.select %9, %7, %11 : vector<64x128xi1>, vector<64x128xf32>
    %13 = arith.truncf %12 : vector<64x128xf32> to vector<64x128xbf16>
    %c0_7 = arith.constant 0 : index
    %c0_8 = arith.constant 0 : index
    %c0_9 = arith.constant 0 : index
    %14 = vector.load %arg5[%c0_7, %c0_8, %c0_9] : memref<1x64x128xbf16, #tpu.memory_space<vmem>>, vector<1x64x128xbf16>
    %15 = vector.shape_cast %14 : vector<1x64x128xbf16> to vector<64x128xbf16>
    %16 = vector.shape_cast %13 : vector<64x128xbf16> to vector<1x64x128xbf16>
    tpu.vector_store %arg5[%c0_7, %c0_8, %c0_9], %16 {strides = array<i32>} : memref<1x64x128xbf16, #tpu.memory_space<vmem>>, vector<1x64x128xbf16>,
    return
  }
  func.func @transform_0(%arg0: i32, %arg1: i32) -> (i32, i32, i32) {
    %c0_i32 = arith.constant 0 : i32
    %c0_i32_0 = arith.constant 0 : i32
    return %arg0, %c0_i32, %arg1 : i32, i32, i32
  }
  func.func @transform_1(%arg0: i32, %arg1: i32) -> (i32, i32) {
    %c0_i32 = arith.constant 0 : i32
    %c0_i32_0 = arith.constant 0 : i32
    return %c0_i32, %arg1 : i32, i32
  }
  func.func @transform_2(%arg0: i32, %arg1: i32) -> (i32, i32) {
    %c0_i32 = arith.constant 0 : i32
    %c0_i32_0 = arith.constant 0 : i32
    return %c0_i32, %arg1 : i32, i32
  }
  func.func @transform_3(%arg0: i32, %arg1: i32) -> (i32, i32, i32) {
    %c0_i32 = arith.constant 0 : i32
    %c0_i32_0 = arith.constant 0 : i32
    return %arg0, %c0_i32, %arg1 : i32, i32, i32
  }
}

module attributes {stable_mosaic.version = 11 : i64} {
  func.func @_bn_act_kernel(%arg0: i32, %arg1: i32, %arg2: memref<1x64x128xf32, #tpu.memory_space<vmem>>, %arg3: memref<1x128xf32, #tpu.memory_space<vmem>>, %arg4: memref<1x128xf32, #tpu.memory_space<vmem>>, %arg5: memref<1x64x128xf32, #tpu.memory_space<vmem>>, %arg6: memref<1x128xf32, #tpu.memory_space<vmem>>, %arg7: memref<1x128xf32, #tpu.memory_space<vmem>>, %arg8: memref<1x64x128xf32, #tpu.memory_space<vmem>>) attributes {dimension_semantics = [#tpu.dimension_semantics<parallel>, #tpu.dimension_semantics<parallel>], iteration_bounds = array<i64: 2, 1>, scalar_prefetch = 0 : i64, scratch_operands = 0 : i64, tpu.core_type = #tpu.core_type<tc>, window_params = [{transform_indices = @transform_0, window_bounds = array<i64: 1, 64, 128>}, {transform_indices = @transform_1, window_bounds = array<i64: 1, 128>}, {transform_indices = @transform_2, window_bounds = array<i64: 1, 128>}, {transform_indices = @transform_3, window_bounds = array<i64: 1, 64, 128>}, {transform_indices = @transform_4, window_bounds = array<i64: 1, 128>}, {transform_indices = @transform_5, window_bounds = array<i64: 1, 128>}, {transform_indices = @transform_6, window_bounds = array<i64: 1, 64, 128>}]} {
    %c0 = arith.constant 0 : index
    %c0_0 = arith.constant 0 : index
    %c0_1 = arith.constant 0 : index
    %0 = vector.load %arg2[%c0, %c0_0, %c0_1] : memref<1x64x128xf32, #tpu.memory_space<vmem>>, vector<1x64x128xf32>
    %1 = vector.shape_cast %0 : vector<1x64x128xf32> to vector<64x128xf32>
    %c0_2 = arith.constant 0 : index
    %c0_3 = arith.constant 0 : index
    %2 = vector.load %arg3[%c0_2, %c0_3] : memref<1x128xf32, #tpu.memory_space<vmem>>, vector<1x128xf32>
    %3 = vector.broadcast %2 : vector<1x128xf32> to vector<64x128xf32>
    %4 = arith.mulf %1, %3 : vector<64x128xf32>
    %c0_4 = arith.constant 0 : index
    %c0_5 = arith.constant 0 : index
    %5 = vector.load %arg4[%c0_4, %c0_5] : memref<1x128xf32, #tpu.memory_space<vmem>>, vector<1x128xf32>
    %6 = vector.broadcast %5 : vector<1x128xf32> to vector<64x128xf32>
    %7 = arith.addf %4, %6 : vector<64x128xf32>
    %c0_6 = arith.constant 0 : index
    %c0_7 = arith.constant 0 : index
    %c0_8 = arith.constant 0 : index
    %8 = vector.load %arg5[%c0_6, %c0_7, %c0_8] : memref<1x64x128xf32, #tpu.memory_space<vmem>>, vector<1x64x128xf32>
    %9 = vector.shape_cast %8 : vector<1x64x128xf32> to vector<64x128xf32>
    %c0_9 = arith.constant 0 : index
    %c0_10 = arith.constant 0 : index
    %10 = vector.load %arg6[%c0_9, %c0_10] : memref<1x128xf32, #tpu.memory_space<vmem>>, vector<1x128xf32>
    %11 = vector.broadcast %10 : vector<1x128xf32> to vector<64x128xf32>
    %12 = arith.mulf %9, %11 : vector<64x128xf32>
    %c0_11 = arith.constant 0 : index
    %c0_12 = arith.constant 0 : index
    %13 = vector.load %arg7[%c0_11, %c0_12] : memref<1x128xf32, #tpu.memory_space<vmem>>, vector<1x128xf32>
    %14 = vector.broadcast %13 : vector<1x128xf32> to vector<64x128xf32>
    %15 = arith.addf %12, %14 : vector<64x128xf32>
    %16 = arith.addf %7, %15 : vector<64x128xf32>
    %cst = arith.constant 0.000000e+00 : f32
    %17 = vector.broadcast %cst : f32 to vector<64x128xf32>
    %18 = arith.cmpf oge, %16, %17 : vector<64x128xf32>
    %cst_13 = arith.constant 0.00999999977 : f32
    %19 = vector.broadcast %cst_13 : f32 to vector<64x128xf32>
    %20 = arith.mulf %19, %16 : vector<64x128xf32>
    %21 = arith.select %18, %16, %20 : vector<64x128xi1>, vector<64x128xf32>
    %c0_14 = arith.constant 0 : index
    %c0_15 = arith.constant 0 : index
    %c0_16 = arith.constant 0 : index
    %22 = vector.load %arg8[%c0_14, %c0_15, %c0_16] : memref<1x64x128xf32, #tpu.memory_space<vmem>>, vector<1x64x128xf32>
    %23 = vector.shape_cast %22 : vector<1x64x128xf32> to vector<64x128xf32>
    %24 = vector.shape_cast %21 : vector<64x128xf32> to vector<1x64x128xf32>
    tpu.vector_store %arg8[%c0_14, %c0_15, %c0_16], %24 {strides = array<i32>} : memref<1x64x128xf32, #tpu.memory_space<vmem>>, vector<1x64x128xf32>,
    return
  }
  func.func @transform_0(%arg0: i32, %arg1: i32) -> (i32, i32, i32) {
    %c0_i32 = arith.constant 0 : i32
    %c0_i32_0 = arith.constant 0 : i32
    return %arg0, %c0_i32, %arg1 : i32, i32, i32
  }
  func.func @transform_1(%arg0: i32, %arg1: i32) -> (i32, i32) {
    %c0_i32 = arith.constant 0 : i32
    %c0_i32_0 = arith.constant 0 : i32
    return %c0_i32, %arg1 : i32, i32
  }
  func.func @transform_2(%arg0: i32, %arg1: i32) -> (i32, i32) {
    %c0_i32 = arith.constant 0 : i32
    %c0_i32_0 = arith.constant 0 : i32
    return %c0_i32, %arg1 : i32, i32
  }
  func.func @transform_3(%arg0: i32, %arg1: i32) -> (i32, i32, i32) {
    %c0_i32 = arith.constant 0 : i32
    %c0_i32_0 = arith.constant 0 : i32
    return %arg0, %c0_i32, %arg1 : i32, i32, i32
  }
  func.func @transform_4(%arg0: i32, %arg1: i32) -> (i32, i32) {
    %c0_i32 = arith.constant 0 : i32
    %c0_i32_0 = arith.constant 0 : i32
    return %c0_i32, %arg1 : i32, i32
  }
  func.func @transform_5(%arg0: i32, %arg1: i32) -> (i32, i32) {
    %c0_i32 = arith.constant 0 : i32
    %c0_i32_0 = arith.constant 0 : i32
    return %c0_i32, %arg1 : i32, i32
  }
  func.func @transform_6(%arg0: i32, %arg1: i32) -> (i32, i32, i32) {
    %c0_i32 = arith.constant 0 : i32
    %c0_i32_0 = arith.constant 0 : i32
    return %arg0, %c0_i32, %arg1 : i32, i32, i32
  }
}

module attributes {stable_mosaic.version = 11 : i64} {
  func.func @_conv_stats_kernel(%arg0: i32, %arg1: i32, %arg2: memref<1x10x10x8xbf16, #tpu.memory_space<vmem>>, %arg3: memref<9x8x128xbf16, #tpu.memory_space<vmem>>, %arg4: memref<1x64x128xf32, #tpu.memory_space<vmem>>, %arg5: memref<1x2x128xf32, #tpu.memory_space<vmem>>) attributes {dimension_semantics = [#tpu.dimension_semantics<parallel>, #tpu.dimension_semantics<parallel>], iteration_bounds = array<i64: 2, 1>, scalar_prefetch = 0 : i64, scratch_operands = 0 : i64, tpu.core_type = #tpu.core_type<tc>, window_params = [{transform_indices = @transform_0, window_bounds = array<i64: 1, 10, 10, 8>}, {transform_indices = @transform_1, window_bounds = array<i64: 9, 8, 128>}, {transform_indices = @transform_2, window_bounds = array<i64: 1, 64, 128>}, {transform_indices = @transform_3, window_bounds = array<i64: 1, 2, 128>}]} {
    %cst = arith.constant 0.000000e+00 : f32
    %0 = vector.broadcast %cst : f32 to vector<64x128xf32>
    %c0 = arith.constant 0 : index
    %c0_0 = arith.constant 0 : index
    %c0_1 = arith.constant 0 : index
    %c0_2 = arith.constant 0 : index
    %1 = vector.load %arg2[%c0, %c0_0, %c0_1, %c0_2] : memref<1x10x10x8xbf16, #tpu.memory_space<vmem>>, vector<1x8x8x8xbf16>
    %2 = vector.shape_cast %1 : vector<1x8x8x8xbf16> to vector<8x8x8xbf16>
    %3 = vector.shape_cast %2 : vector<8x8x8xbf16> to vector<64x8xbf16>
    %c0_3 = arith.constant 0 : index
    %c0_4 = arith.constant 0 : index
    %c0_5 = arith.constant 0 : index
    %4 = vector.load %arg3[%c0_3, %c0_4, %c0_5] : memref<9x8x128xbf16, #tpu.memory_space<vmem>>, vector<1x8x128xbf16>
    %5 = vector.shape_cast %4 : vector<1x8x128xbf16> to vector<8x128xbf16>
    %cst_6 = arith.constant dense<0.000000e+00> : vector<64x128xf32>
    %6 = tpu.matmul %3, %5, %cst_6 {dimension_numbers = #tpu.dot_dimension_numbers<[1], [0], [0], [1], [0, 0, 1, 1], [], []>} : vector<64x8xbf16>, vector<8x128xbf16>, vector<64x128xf32> -> vector<64x128xf32>
    %7 = arith.addf %0, %6 : vector<64x128xf32>
    %c0_7 = arith.constant 0 : index
    %c0_8 = arith.constant 0 : index
    %c1 = arith.constant 1 : index
    %c0_9 = arith.constant 0 : index
    %8 = vector.load %arg2[%c0_7, %c0_8, %c1, %c0_9] : memref<1x10x10x8xbf16, #tpu.memory_space<vmem>>, vector<1x8x8x8xbf16>
    %9 = vector.shape_cast %8 : vector<1x8x8x8xbf16> to vector<8x8x8xbf16>
    %10 = vector.shape_cast %9 : vector<8x8x8xbf16> to vector<64x8xbf16>
    %c1_10 = arith.constant 1 : index
    %c0_11 = arith.constant 0 : index
    %c0_12 = arith.constant 0 : index
    %11 = vector.load %arg3[%c1_10, %c0_11, %c0_12] : memref<9x8x128xbf16, #tpu.memory_space<vmem>>, vector<1x8x128xbf16>
    %12 = vector.shape_cast %11 : vector<1x8x128xbf16> to vector<8x128xbf16>
    %cst_13 = arith.constant dense<0.000000e+00> : vector<64x128xf32>
    %13 = tpu.matmul %10, %12, %cst_13 {dimension_numbers = #tpu.dot_dimension_numbers<[1], [0], [0], [1], [0, 0, 1, 1], [], []>} : vector<64x8xbf16>, vector<8x128xbf16>, vector<64x128xf32> -> vector<64x128xf32>
    %14 = arith.addf %7, %13 : vector<64x128xf32>
    %c0_14 = arith.constant 0 : index
    %c0_15 = arith.constant 0 : index
    %c2 = arith.constant 2 : index
    %c0_16 = arith.constant 0 : index
    %15 = vector.load %arg2[%c0_14, %c0_15, %c2, %c0_16] : memref<1x10x10x8xbf16, #tpu.memory_space<vmem>>, vector<1x8x8x8xbf16>
    %16 = vector.shape_cast %15 : vector<1x8x8x8xbf16> to vector<8x8x8xbf16>
    %17 = vector.shape_cast %16 : vector<8x8x8xbf16> to vector<64x8xbf16>
    %c2_17 = arith.constant 2 : index
    %c0_18 = arith.constant 0 : index
    %c0_19 = arith.constant 0 : index
    %18 = vector.load %arg3[%c2_17, %c0_18, %c0_19] : memref<9x8x128xbf16, #tpu.memory_space<vmem>>, vector<1x8x128xbf16>
    %19 = vector.shape_cast %18 : vector<1x8x128xbf16> to vector<8x128xbf16>
    %cst_20 = arith.constant dense<0.000000e+00> : vector<64x128xf32>
    %20 = tpu.matmul %17, %19, %cst_20 {dimension_numbers = #tpu.dot_dimension_numbers<[1], [0], [0], [1], [0, 0, 1, 1], [], []>} : vector<64x8xbf16>, vector<8x128xbf16>, vector<64x128xf32> -> vector<64x128xf32>
    %21 = arith.addf %14, %20 : vector<64x128xf32>
    %c0_21 = arith.constant 0 : index
    %c1_22 = arith.constant 1 : index
    %c0_23 = arith.constant 0 : index
    %c0_24 = arith.constant 0 : index
    %22 = vector.load %arg2[%c0_21, %c1_22, %c0_23, %c0_24] : memref<1x10x10x8xbf16, #tpu.memory_space<vmem>>, vector<1x8x8x8xbf16>
    %23 = vector.shape_cast %22 : vector<1x8x8x8xbf16> to vector<8x8x8xbf16>
    %24 = vector.shape_cast %23 : vector<8x8x8xbf16> to vector<64x8xbf16>
    %c3 = arith.constant 3 : index
    %c0_25 = arith.constant 0 : index
    %c0_26 = arith.constant 0 : index
    %25 = vector.load %arg3[%c3, %c0_25, %c0_26] : memref<9x8x128xbf16, #tpu.memory_space<vmem>>, vector<1x8x128xbf16>
    %26 = vector.shape_cast %25 : vector<1x8x128xbf16> to vector<8x128xbf16>
    %cst_27 = arith.constant dense<0.000000e+00> : vector<64x128xf32>
    %27 = tpu.matmul %24, %26, %cst_27 {dimension_numbers = #tpu.dot_dimension_numbers<[1], [0], [0], [1], [0, 0, 1, 1], [], []>} : vector<64x8xbf16>, vector<8x128xbf16>, vector<64x128xf32> -> vector<64x128xf32>
    %28 = arith.addf %21, %27 : vector<64x128xf32>
    %c0_28 = arith.constant 0 : index
    %c1_29 = arith.constant 1 : index
    %c1_30 = arith.constant 1 : index
    %c0_31 = arith.constant 0 : index
    %29 = vector.load %arg2[%c0_28, %c1_29, %c1_30, %c0_31] : memref<1x10x10x8xbf16, #tpu.memory_space<vmem>>, vector<1x8x8x8xbf16>
    %30 = vector.shape_cast %29 : vector<1x8x8x8xbf16> to vector<8x8x8xbf16>
    %31 = vector.shape_cast %30 : vector<8x8x8xbf16> to vector<64x8xbf16>
    %c4 = arith.constant 4 : index
    %c0_32 = arith.constant 0 : index
    %c0_33 = arith.constant 0 : index
    %32 = vector.load %arg3[%c4, %c0_32, %c0_33] : memref<9x8x128xbf16, #tpu.memory_space<vmem>>, vector<1x8x128xbf16>
    %33 = vector.shape_cast %32 : vector<1x8x128xbf16> to vector<8x128xbf16>
    %cst_34 = arith.constant dense<0.000000e+00> : vector<64x128xf32>
    %34 = tpu.matmul %31, %33, %cst_34 {dimension_numbers = #tpu.dot_dimension_numbers<[1], [0], [0], [1], [0, 0, 1, 1], [], []>} : vector<64x8xbf16>, vector<8x128xbf16>, vector<64x128xf32> -> vector<64x128xf32>
    %35 = arith.addf %28, %34 : vector<64x128xf32>
    %c0_35 = arith.constant 0 : index
    %c1_36 = arith.constant 1 : index
    %c2_37 = arith.constant 2 : index
    %c0_38 = arith.constant 0 : index
    %36 = vector.load %arg2[%c0_35, %c1_36, %c2_37, %c0_38] : memref<1x10x10x8xbf16, #tpu.memory_space<vmem>>, vector<1x8x8x8xbf16>
    %37 = vector.shape_cast %36 : vector<1x8x8x8xbf16> to vector<8x8x8xbf16>
    %38 = vector.shape_cast %37 : vector<8x8x8xbf16> to vector<64x8xbf16>
    %c5 = arith.constant 5 : index
    %c0_39 = arith.constant 0 : index
    %c0_40 = arith.constant 0 : index
    %39 = vector.load %arg3[%c5, %c0_39, %c0_40] : memref<9x8x128xbf16, #tpu.memory_space<vmem>>, vector<1x8x128xbf16>
    %40 = vector.shape_cast %39 : vector<1x8x128xbf16> to vector<8x128xbf16>
    %cst_41 = arith.constant dense<0.000000e+00> : vector<64x128xf32>
    %41 = tpu.matmul %38, %40, %cst_41 {dimension_numbers = #tpu.dot_dimension_numbers<[1], [0], [0], [1], [0, 0, 1, 1], [], []>} : vector<64x8xbf16>, vector<8x128xbf16>, vector<64x128xf32> -> vector<64x128xf32>
    %42 = arith.addf %35, %41 : vector<64x128xf32>
    %c0_42 = arith.constant 0 : index
    %c2_43 = arith.constant 2 : index
    %c0_44 = arith.constant 0 : index
    %c0_45 = arith.constant 0 : index
    %43 = vector.load %arg2[%c0_42, %c2_43, %c0_44, %c0_45] : memref<1x10x10x8xbf16, #tpu.memory_space<vmem>>, vector<1x8x8x8xbf16>
    %44 = vector.shape_cast %43 : vector<1x8x8x8xbf16> to vector<8x8x8xbf16>
    %45 = vector.shape_cast %44 : vector<8x8x8xbf16> to vector<64x8xbf16>
    %c6 = arith.constant 6 : index
    %c0_46 = arith.constant 0 : index
    %c0_47 = arith.constant 0 : index
    %46 = vector.load %arg3[%c6, %c0_46, %c0_47] : memref<9x8x128xbf16, #tpu.memory_space<vmem>>, vector<1x8x128xbf16>
    %47 = vector.shape_cast %46 : vector<1x8x128xbf16> to vector<8x128xbf16>
    %cst_48 = arith.constant dense<0.000000e+00> : vector<64x128xf32>
    %48 = tpu.matmul %45, %47, %cst_48 {dimension_numbers = #tpu.dot_dimension_numbers<[1], [0], [0], [1], [0, 0, 1, 1], [], []>} : vector<64x8xbf16>, vector<8x128xbf16>, vector<64x128xf32> -> vector<64x128xf32>
    %49 = arith.addf %42, %48 : vector<64x128xf32>
    %c0_49 = arith.constant 0 : index
    %c2_50 = arith.constant 2 : index
    %c1_51 = arith.constant 1 : index
    %c0_52 = arith.constant 0 : index
    %50 = vector.load %arg2[%c0_49, %c2_50, %c1_51, %c0_52] : memref<1x10x10x8xbf16, #tpu.memory_space<vmem>>, vector<1x8x8x8xbf16>
    %51 = vector.shape_cast %50 : vector<1x8x8x8xbf16> to vector<8x8x8xbf16>
    %52 = vector.shape_cast %51 : vector<8x8x8xbf16> to vector<64x8xbf16>
    %c7 = arith.constant 7 : index
    %c0_53 = arith.constant 0 : index
    %c0_54 = arith.constant 0 : index
    %53 = vector.load %arg3[%c7, %c0_53, %c0_54] : memref<9x8x128xbf16, #tpu.memory_space<vmem>>, vector<1x8x128xbf16>
    %54 = vector.shape_cast %53 : vector<1x8x128xbf16> to vector<8x128xbf16>
    %cst_55 = arith.constant dense<0.000000e+00> : vector<64x128xf32>
    %55 = tpu.matmul %52, %54, %cst_55 {dimension_numbers = #tpu.dot_dimension_numbers<[1], [0], [0], [1], [0, 0, 1, 1], [], []>} : vector<64x8xbf16>, vector<8x128xbf16>, vector<64x128xf32> -> vector<64x128xf32>
    %56 = arith.addf %49, %55 : vector<64x128xf32>
    %c0_56 = arith.constant 0 : index
    %c2_57 = arith.constant 2 : index
    %c2_58 = arith.constant 2 : index
    %c0_59 = arith.constant 0 : index
    %57 = vector.load %arg2[%c0_56, %c2_57, %c2_58, %c0_59] : memref<1x10x10x8xbf16, #tpu.memory_space<vmem>>, vector<1x8x8x8xbf16>
    %58 = vector.shape_cast %57 : vector<1x8x8x8xbf16> to vector<8x8x8xbf16>
    %59 = vector.shape_cast %58 : vector<8x8x8xbf16> to vector<64x8xbf16>
    %c8 = arith.constant 8 : index
    %c0_60 = arith.constant 0 : index
    %c0_61 = arith.constant 0 : index
    %60 = vector.load %arg3[%c8, %c0_60, %c0_61] : memref<9x8x128xbf16, #tpu.memory_space<vmem>>, vector<1x8x128xbf16>
    %61 = vector.shape_cast %60 : vector<1x8x128xbf16> to vector<8x128xbf16>
    %cst_62 = arith.constant dense<0.000000e+00> : vector<64x128xf32>
    %62 = tpu.matmul %59, %61, %cst_62 {dimension_numbers = #tpu.dot_dimension_numbers<[1], [0], [0], [1], [0, 0, 1, 1], [], []>} : vector<64x8xbf16>, vector<8x128xbf16>, vector<64x128xf32> -> vector<64x128xf32>
    %63 = arith.addf %56, %62 : vector<64x128xf32>
    %c0_63 = arith.constant 0 : index
    %c0_64 = arith.constant 0 : index
    %c0_65 = arith.constant 0 : index
    %64 = vector.load %arg4[%c0_63, %c0_64, %c0_65] : memref<1x64x128xf32, #tpu.memory_space<vmem>>, vector<1x64x128xf32>
    %65 = vector.shape_cast %64 : vector<1x64x128xf32> to vector<64x128xf32>
    %66 = vector.shape_cast %63 : vector<64x128xf32> to vector<1x64x128xf32>
    tpu.vector_store %arg4[%c0_63, %c0_64, %c0_65], %66 {strides = array<i32>} : memref<1x64x128xf32, #tpu.memory_space<vmem>>, vector<1x64x128xf32>,
    %cst_66 = arith.constant dense<0.000000e+00> : vector<128xf32>
    %67 = vector.multi_reduction <add>, %63, %cst_66 [0] : vector<64x128xf32> to vector<128xf32>
    %68 = vector.shape_cast %67 : vector<128xf32> to vector<1x128xf32>
    %c0_67 = arith.constant 0 : index
    %c0_68 = arith.constant 0 : index
    %c0_69 = arith.constant 0 : index
    %69 = vector.load %arg5[%c0_67, %c0_68, %c0_69] : memref<1x2x128xf32, #tpu.memory_space<vmem>>, vector<1x1x128xf32>
    %70 = vector.shape_cast %69 : vector<1x1x128xf32> to vector<1x128xf32>
    %71 = vector.shape_cast %68 : vector<1x128xf32> to vector<1x1x128xf32>
    tpu.vector_store %arg5[%c0_67, %c0_68, %c0_69], %71 {strides = array<i32>} : memref<1x2x128xf32, #tpu.memory_space<vmem>>, vector<1x1x128xf32>,
    %72 = arith.mulf %63, %63 : vector<64x128xf32>
    %cst_70 = arith.constant dense<0.000000e+00> : vector<128xf32>
    %73 = vector.multi_reduction <add>, %72, %cst_70 [0] : vector<64x128xf32> to vector<128xf32>
    %74 = vector.shape_cast %73 : vector<128xf32> to vector<1x128xf32>
    %c0_71 = arith.constant 0 : index
    %c1_72 = arith.constant 1 : index
    %c0_73 = arith.constant 0 : index
    %75 = vector.load %arg5[%c0_71, %c1_72, %c0_73] : memref<1x2x128xf32, #tpu.memory_space<vmem>>, vector<1x1x128xf32>
    %76 = vector.shape_cast %75 : vector<1x1x128xf32> to vector<1x128xf32>
    %77 = vector.shape_cast %74 : vector<1x128xf32> to vector<1x1x128xf32>
    tpu.vector_store %arg5[%c0_71, %c1_72, %c0_73], %77 {strides = array<i32>} : memref<1x2x128xf32, #tpu.memory_space<vmem>>, vector<1x1x128xf32>,
    return
  }
  func.func @transform_0(%arg0: i32, %arg1: i32) -> (i32, i32, i32, i32) {
    %c0_i32 = arith.constant 0 : i32
    %c0_i32_0 = arith.constant 0 : i32
    %c0_i32_1 = arith.constant 0 : i32
    %c0_i32_2 = arith.constant 0 : i32
    return %arg0, %c0_i32, %c0_i32_0, %c0_i32_1 : i32, i32, i32, i32
  }
  func.func @transform_1(%arg0: i32, %arg1: i32) -> (i32, i32, i32) {
    %c0_i32 = arith.constant 0 : i32
    %c0_i32_0 = arith.constant 0 : i32
    %c0_i32_1 = arith.constant 0 : i32
    return %c0_i32, %c0_i32_0, %arg1 : i32, i32, i32
  }
  func.func @transform_2(%arg0: i32, %arg1: i32) -> (i32, i32, i32) {
    %c0_i32 = arith.constant 0 : i32
    %c0_i32_0 = arith.constant 0 : i32
    return %arg0, %c0_i32, %arg1 : i32, i32, i32
  }
  func.func @transform_3(%arg0: i32, %arg1: i32) -> (i32, i32, i32) {
    %c0_i32 = arith.constant 0 : i32
    %c0_i32_0 = arith.constant 0 : i32
    return %arg0, %c0_i32, %arg1 : i32, i32, i32
  }
}

</mosaic_0001>

<llo_original>
// kernel: basic_block_forward.8
$region0: #{basic_block_forward.8}
  #allocation0 [shape = 'u32[]', space=smem, size = 0x4, offset = 0x4, fixed_abs, tag = 'smem constant byte address 0x4 - core index']
  #allocation1 [shape = 'u32[144,128]{1,0:T(1,128)}', space=vmem, size = 0x12000, scoped, tag = 'internal scratch']
  %s0 = inlined_call_operand.vmem [shape: bf16[2,8,8,4], index: 0, kind: input, shape index: {}]
  %s1 = inlined_call_operand.vmem [shape: bf16[1,4,128], index: 1, kind: input, shape index: {}]
  %s2 = inlined_call_operand.vmem [shape: f32[2,64,128], index: 2, kind: output, shape index: {0}]
  %s3 = inlined_call_operand.vmem [shape: f32[2,2,128], index: 3, kind: output, shape index: {1}]
  %4 = xla_tuple %s2, %s3
  %s5 = sld [smem:[#allocation0]]
  $region49: #{basic_block_forward.8} parent=0
    _
  %s7 = ssub.s32 1, %s5
  %s8 = scalar_select 0, %s7, %s5
  loop: start=0, step=1, limit=4
  $region2: #{basic_block_forward.8} parent=0 // loop_pre_header
    _
  $region3: #{basic_block_forward.8} parent=0 // loop_header
    %s10 = sphi 0, %s14
    %p11 = scmp.ge.s32.totalorder %s10, 4
    %s17 = sphi 0, %s29
    %s18 = sphi 0, %s25
    %s19 = sphi 0, %s17
    %s20 = sphi 0, %s18
    %s21 = sphi 0, %s19
    %s22 = sphi 0, %s20
    %s32 = sphi 0, %s34
    %s35 = sphi 0, %s32
    %s36 = sphi 0, %s35
    %s52 = sphi 0, %s36
    %s58 = sphi 0, %s60
    %s61 = sphi 0, %s58
    %s62 = sphi 0, %s61
    %s78 = sphi 0, %s62
    %s86 = sphi 0, %s88
    %s89 = sphi 0, %s86
    %s90 = sphi 0, %s89
    %s106 = sphi 0, %s90
    %s114 = sphi 0, %s116
    %s117 = sphi 0, %s114
    %s118 = sphi 0, %s117
    %s134 = sphi 0, %s118
  $region4: #{basic_block_forward.8} parent=0 // loop_header_branch
    %13 = sbr.rel (%p11) target = $region8
  $region5: #{basic_block_forward.8} parent=0 // loop_body
    %s15 = ssub.s32 %s10, 1
    %s16 = ssub.s32 %s10, 2
    %s23 = sadd.s32 1, %s18
    %p24 = scmp.ge.s32.totalorder %s23, 1
    %s25 = scalar_select %p24, 0, %s23
    %s26 = sadd.s32 1, %s17
    %s27 = scalar_select %p24, %s26, %s17
    %p28 = scmp.ge.s32.totalorder %s27, 2
    %s29 = scalar_select %p28, 0, %s27
    %s30 = ssub.s32 %s17, %s29
    %p31 = scmp.eq.s32.totalorder %s30, 0
    %s33 = sadd.s32 %s32, 1
    %s34 = scalar_select %p31, %s32, %s33
    %p37 = pneg %p31
    %p38 = scmp.eq.s32.totalorder %s10, 1
    %p39 = por %p37, %p38
    %p40 = scmp.ne.s32.totalorder %s32, %s35
    %p41 = scmp.eq.s32.totalorder %s10, 0
    %p42 = por %p40, %p41
    %p43 = scmp.ne.s32.totalorder %s32, %s35
    %p44 = scmp.eq.s32.totalorder %s15, 1
    %p45 = por %p43, %p44
    %p46 = scmp.ne.s32.totalorder %s35, %s36
    %p47 = scmp.eq.s32.totalorder %s15, 0
    %p48 = por %p46, %p47
    %p49 = scmp.ne.s32.totalorder %s35, %s36
    %p50 = scmp.eq.s32.totalorder %s16, 1
    %p51 = por %p49, %p50
    %p53 = scmp.ne.s32.totalorder %s36, %s52
    %p54 = scmp.eq.s32.totalorder %s16, 0
    %p55 = por %p53, %p54
    %s56 = ssub.s32 %s18, %s25
    %p57 = scmp.eq.s32.totalorder %s56, 0
    %s59 = sadd.s32 %s58, 1
    %s60 = scalar_select %p57, %s58, %s59
    %p63 = pneg %p57
    %p64 = scmp.eq.s32.totalorder %s10, 1
    %p65 = por %p63, %p64
    %p66 = scmp.ne.s32.totalorder %s58, %s61
    %p67 = scmp.eq.s32.totalorder %s10, 0
    %p68 = por %p66, %p67
    %p69 = scmp.ne.s32.totalorder %s58, %s61
    %p70 = scmp.eq.s32.totalorder %s15, 1
    %p71 = por %p69, %p70
    %p72 = scmp.ne.s32.totalorder %s61, %s62
    %p73 = scmp.eq.s32.totalorder %s15, 0
    %p74 = por %p72, %p73
    %p75 = scmp.ne.s32.totalorder %s61, %s62
    %p76 = scmp.eq.s32.totalorder %s16, 1
    %p77 = por %p75, %p76
    %p79 = scmp.ne.s32.totalorder %s62, %s78
    %p80 = scmp.eq.s32.totalorder %s16, 0
    %p81 = por %p79, %p80
    %s82 = ssub.s32 %s17, %s29
    %s83 = ssub.s32 %s18, %s25
    %s84 = sor.u32 %s82, %s83
    %p85 = scmp.eq.s32.totalorder %s84, 0
    %s87 = sadd.s32 %s86, 1
    %s88 = scalar_select %p85, %s86, %s87
    %p91 = pneg %p85
    %p92 = scmp.eq.s32.totalorder %s10, 1
    %p93 = por %p91, %p92
    %p94 = scmp.ne.s32.totalorder %s86, %s89
    %p95 = scmp.eq.s32.totalorder %s10, 0
    %p96 = por %p94, %p95
    %p97 = scmp.ne.s32.totalorder %s86, %s89
    %p98 = scmp.eq.s32.totalorder %s15, 1
    %p99 = por %p97, %p98
    %p100 = scmp.ne.s32.totalorder %s89, %s90
    %p101 = scmp.eq.s32.totalorder %s15, 0
    %p102 = por %p100, %p101
    %p103 = scmp.ne.s32.totalorder %s89, %s90
    %p104 = scmp.eq.s32.totalorder %s16, 1
    %p105 = por %p103, %p104
    %p107 = scmp.ne.s32.totalorder %s90, %s106
    %p108 = scmp.eq.s32.totalorder %s16, 0
    %p109 = por %p107, %p108
    %s110 = ssub.s32 %s17, %s29
    %s111 = ssub.s32 %s18, %s25
    %s112 = sor.u32 %s110, %s111
    %p113 = scmp.eq.s32.totalorder %s112, 0
    %s115 = sadd.s32 %s114, 1
    %s116 = scalar_select %p113, %s114, %s115
    %p119 = pneg %p113
    %p120 = scmp.eq.s32.totalorder %s10, 1
    %p121 = por %p119, %p120
    %p122 = scmp.ne.s32.totalorder %s114, %s117
    %p123 = scmp.eq.s32.totalorder %s10, 0
    %p124 = por %p122, %p123
    %p125 = scmp.ne.s32.totalorder %s114, %s117
    %p126 = scmp.eq.s32.totalorder %s15, 1
    %p127 = por %p125, %p126
    %p128 = scmp.ne.s32.totalorder %s117, %s118
    %p129 = scmp.eq.s32.totalorder %s15, 0
    %p130 = por %p128, %p129
    %p131 = scmp.ne.s32.totalorder %s117, %s118
    %p132 = scmp.eq.s32.totalorder %s16, 1
    %p133 = por %p131, %p132
    %p135 = scmp.ne.s32.totalorder %s118, %s134
    %p136 = scmp.eq.s32.totalorder %s16, 0
    %p137 = por %p135, %p136
    %p138 = scmp.le.s32.totalorder 1, %s10
    %p139 = scmp.lt.s32.totalorder %s10, 3
    %p140 = pnand %p138, %p139
    %p141 = pneg %p140
    // Predicated region
    $region9: #{basic_block_forward.8} parent=5 // pred_check
      _
    $region10: #{basic_block_forward.8} parent=5 // pred_check_branch
      %143 = sbr.rel (%p140) target = $region12
    $region11: #{basic_block_forward.8} parent=5 // pred_region
      %s144 = ssub.s32 %s10, 1
      // Predicated region
      $region13: #{basic_block_forward.8} parent=11 // pred_check
        %p145 = pneg %p74
      $region14: #{basic_block_forward.8} parent=11 // pred_check_branch
        %147 = sbr.rel (%p145) target = $region16
      $region15: #{basic_block_forward.8} parent=11 // pred_region
        %p148 = scmp.lt.s32.totalorder %s20, 0
        %s149 = scalar_select %p148, %s20, 0
        %s150 = smul.addr %s149, 2
        %s151 = scalar_lea.vmem %s1, %s150
      $region16: #{basic_block_forward.8} parent=11 // pred_fallthru
        _
    $region12: #{basic_block_forward.8} parent=5 // pred_fallthru
      _
    %p152 = scmp.lt.s32.totalorder %s10, 2
    // Predicated region
    $region17: #{basic_block_forward.8} parent=5 // pred_check
      %p153 = pneg %p152
    $region18: #{basic_block_forward.8} parent=5 // pred_check_branch
      %155 = sbr.rel (%p153) target = $region20
    $region19: #{basic_block_forward.8} parent=5 // pred_region
      // Predicated region
      $region21: #{basic_block_forward.8} parent=19 // pred_check
        %p156 = pneg %p42
      $region22: #{basic_block_forward.8} parent=19 // pred_check_branch
        %158 = sbr.rel (%p156) target = $region24
      $region23: #{basic_block_forward.8} parent=19 // pred_region
        %p159 = scmp.lt.s32.totalorder %s17, 1
        %s160 = scalar_select %p159, %s17, 1
        %s161 = smul.addr %s160, 8
        %s162 = smul.addr %s161, 4
        %s163 = scalar_lea.vmem %s0, %s162
      $region24: #{basic_block_forward.8} parent=19 // pred_fallthru
        _
    $region20: #{basic_block_forward.8} parent=5 // pred_fallthru
      _
    %p164 = scmp.le.s32.totalorder 1, %s10
    %p165 = scmp.lt.s32.totalorder %s10, 3
    %p166 = pnand %p164, %p165
    %p167 = pneg %p166
    // Predicated region
    $region25: #{basic_block_forward.8} parent=5 // pred_check
      _
    $region26: #{basic_block_forward.8} parent=5 // pred_check_branch
      %169 = sbr.rel (%p166) target = $region28
    $region27: #{basic_block_forward.8} parent=5 // pred_region
      %s170 = ssub.s32 %s10, 1
      %p171 = scmp.lt.s32.totalorder %s19, 1
      %s172 = scalar_select %p171, %s19, 1
      %s173 = smul.addr %s172, 8
      %s174 = smul.addr %s173, 4
      %s175 = scalar_lea.vmem %s0, %s174
      %p176 = pneg %p48
      %p177 = pneg %p45
      %p178 = scmp.lt.s32.totalorder %s20, 0
      %s179 = scalar_select %p178, %s20, 0
      %s180 = smul.addr %s179, 2
      %s181 = scalar_lea.vmem %s1, %s180
      %p182 = pneg %p74
      %p183 = pneg %p71
      %p184 = pneg %p102
      %p185 = pneg %p99
      %p186 = scmp.lt.s32.totalorder %s19, 1
      %s187 = scalar_select %p186, %s19, 1
      %p188 = scmp.lt.s32.totalorder %s20, 0
      %s189 = scalar_select %p188, %s20, 0
      %s190 = smul.addr %s187, 8
      %s191 = sadd.s32 %s189, %s190
      %s192 = smul.addr %s191, 8
      %s193 = scalar_lea.vmem %s2, %s192
      %p194 = pneg %p130
      %p195 = pneg %p127
      %p196 = scmp.lt.s32.totalorder %s19, 1
      %s197 = scalar_select %p196, %s19, 1
      %p198 = scmp.lt.s32.totalorder %s20, 0
      %s199 = scalar_select %p198, %s20, 0
      %s200 = sadd.s32 %s199, %s197
      %s201 = smul.addr %s200, 2
      %s202 = scalar_lea.vmem %s3, %s201
      %p203 = scmp.lt.s32.totalorder %s19, 1
      %s204 = scalar_select %p203, %s19, 1
      %s205 = smul.addr %s204, 8
      %s206 = smul.addr %s205, 4
      %s207 = scalar_lea.vmem %s0, %s206
      %p208 = scmp.lt.s32.totalorder %s20, 0
      %s209 = scalar_select %p208, %s20, 0
      %s210 = smul.addr %s209, 2
      %s211 = scalar_lea.vmem %s1, %s210
      %p212 = scmp.lt.s32.totalorder %s19, 1
      %s213 = scalar_select %p212, %s19, 1
      %p214 = scmp.lt.s32.totalorder %s20, 0
      %s215 = scalar_select %p214, %s20, 0
      %s216 = smul.addr %s213, 8
      %s217 = sadd.s32 %s215, %s216
      %s218 = smul.addr %s217, 8
      %s219 = scalar_lea.vmem %s2, %s218
      %p220 = scmp.lt.s32.totalorder %s19, 1
      %s221 = scalar_select %p220, %s19, 1
      %p222 = scmp.lt.s32.totalorder %s20, 0
      %s223 = scalar_select %p222, %s20, 0
      %s224 = sadd.s32 %s223, %s221
      %s225 = smul.addr %s224, 2
      %s226 = scalar_lea.vmem %s3, %s225
      %v228 = vld [vmem:[%s207] sm:$0xf]
      %v229 = vld [vmem:[%s207 + $0x4] sm:$0xf]
      %v230 = vld [vmem:[%s207 + $0x8] sm:$0xf]
      %v231 = vld [vmem:[%s207 + $0xc] sm:$0xf]
      %v232 = vld [vmem:[%s207 + $0x10] sm:$0xf]
      %v233 = vld [vmem:[%s207 + $0x14] sm:$0xf]
      %v234 = vld [vmem:[%s207 + $0x18] sm:$0xf]
      %v235 = vld [vmem:[%s207 + $0x1c] sm:$0xf]
      %v236 = vld [vmem:[%s211] sm:$0x3]
      %v245 = vunpack.c.l.b16 %v228
      %v246 = vunpack.c.l.b16 %v229
      %v247 = vunpack.c.l.b16 %v230
      %v248 = vunpack.c.l.b16 %v231
      %v249 = vunpack.c.l.b16 %v232
      %v250 = vunpack.c.l.b16 %v233
      %v251 = vunpack.c.l.b16 %v234
      %v252 = vunpack.c.l.b16 %v235
      %v253 = vpack.c.b16 %v246, %v245
      %v254 = vpack.c.b16 %v248, %v247
      %v255 = vpack.c.b16 %v250, %v249
      %v256 = vpack.c.b16 %v252, %v251
      %vm257 = vcmask 31744
      %v259 = vsel %vm257, %v253, 0
      %v262 = vsel %vm257, %v254, 0
      %v265 = vsel %vm257, %v255, 0
      %v268 = vsel %vm257, %v256, 0
      %vm270 = vcmask 1041408
      %v272 = vsel %vm270, %v236, 0
      %274 = vmatprep.subr.bf16.mxu0 0
      %275 = vmatpush1.bf16.msra.mxu0 %v272
      %276 = vmatprep.subr.bf16.mxu0 0
      %277 = vmatpush1.bf16.msra.mxu0 0
      %278 = vmatprep.subr.bf16.mxu0 0
      %279 = vmatpush1.bf16.msra.mxu0 0
      %280 = vmatprep.subr.bf16.mxu0 0
      %281 = vmatpush1.bf16.msra.mxu0 0
      %282 = vmatprep.subr.bf16.mxu0 0
      %283 = vmatpush1.bf16.msra.mxu0 0
      %284 = vmatprep.subr.bf16.mxu0 0
      %285 = vmatpush1.bf16.msra.mxu0 0
      %286 = vmatprep.subr.bf16.mxu0 0
      %287 = vmatpush1.bf16.msra.mxu0 0
      %288 = vmatprep.subr.bf16.mxu0 0
      %289 = vmatpush1.bf16.msra.mxu0 0
      %290 = vmatprep.subr.bf16.mxu0 0
      %291 = vmatpush1.bf16.msra.mxu0 0
      %292 = vmatprep.subr.bf16.mxu0 0
      %293 = vmatpush1.bf16.msra.mxu0 0
      %294 = vmatprep.subr.bf16.mxu0 0
      %295 = vmatpush1.bf16.msra.mxu0 0
      %296 = vmatprep.subr.bf16.mxu0 0
      %297 = vmatpush1.bf16.msra.mxu0 0
      %298 = vmatprep.subr.bf16.mxu0 0
      %299 = vmatpush1.bf16.msra.mxu0 0
      %300 = vmatprep.subr.bf16.mxu0 0
      %301 = vmatpush1.bf16.msra.mxu0 0
      %302 = vmatprep.subr.bf16.mxu0 0
      %303 = vmatpush1.bf16.msra.mxu0 0
      %304 = vmatprep.subr.bf16.mxu0 0
      %305 = vmatpush1.bf16.msra.mxu0 0
      %306 = vmatprep.mubr.bf16.mxu0 0
      %307 = vmatmul.mubr.bf16.gmra.mrb[0].mxu0 %v259
      %v308 = vpop.f32.mrb[0].mxu0
      %v309 = vadd.f32 0.0, %v308
      %v310 = vpop.f32.mrb[0].mxu0
      %v311 = vpop.f32.mrb[0].mxu0
      %v312 = vadd.f32 0.0, %v311
      %v313 = vpop.f32.mrb[0].mxu0
      %314 = vmatprep.mubr.bf16.mxu0 0
      %315 = vmatmul.mubr.bf16.gmra.mrb[0].mxu0 %v262
      %v316 = vpop.f32.mrb[0].mxu0
      %v317 = vadd.f32 0.0, %v316
      %v318 = vpop.f32.mrb[0].mxu0
      %v319 = vpop.f32.mrb[0].mxu0
      %v320 = vadd.f32 0.0, %v319
      %v321 = vpop.f32.mrb[0].mxu0
      %322 = vmatprep.mubr.bf16.mxu0 0
      %323 = vmatmul.mubr.bf16.gmra.mrb[0].mxu0 %v265
      %v324 = vpop.f32.mrb[0].mxu0
      %v325 = vadd.f32 0.0, %v324
      %v326 = vpop.f32.mrb[0].mxu0
      %v327 = vpop.f32.mrb[0].mxu0
      %v328 = vadd.f32 0.0, %v327
      %v329 = vpop.f32.mrb[0].mxu0
      %330 = vmatprep.mubr.bf16.mxu0 0
      %331 = vmatmul.mubr.bf16.gmra.mrb[0].mxu0 %v268
      %v332 = vpop.f32.mrb[0].mxu0
      %v333 = vadd.f32 0.0, %v332
      %v334 = vpop.f32.mrb[0].mxu0
      %v335 = vpop.f32.mrb[0].mxu0
      %v336 = vadd.f32 0.0, %v335
      %v337 = vpop.f32.mrb[0].mxu0
      %338 = vdwg.mxu0
      %339 = vst [vmem:[%s219] sm:$0xff] %v309
      %340 = vst [vmem:[%s219 + $0x8] sm:$0xff] %v312
      %341 = vst [vmem:[%s219 + $0x10] sm:$0xff] %v317
      %342 = vst [vmem:[%s219 + $0x18] sm:$0xff] %v320
      %343 = vst [vmem:[%s219 + $0x20] sm:$0xff] %v325
      %344 = vst [vmem:[%s219 + $0x28] sm:$0xff] %v328
      %345 = vst [vmem:[%s219 + $0x30] sm:$0xff] %v333
      %346 = vst [vmem:[%s219 + $0x38] sm:$0xff] %v336
      %v347 = vadd.f32 %v309, %v312
      %v348 = vadd.f32 %v347, %v317
      %v349 = vadd.f32 %v348, %v320
      %v350 = vadd.f32 %v349, %v325
      %v351 = vadd.f32 %v350, %v328
      %v352 = vadd.f32 %v351, %v333
      %v353 = vadd.f32 %v352, %v336
      %v354 = vrot.slane %v353, 4
      %v355 = vadd.f32 %v353, %v354
      %v356 = vrot.slane %v355, 2
      %v357 = vadd.f32 %v355, %v356
      %v358 = vrot.slane %v357, 1
      %v359 = vadd.f32 %v357, %v358
      %360 = vst [vmem:[%s226] sm:$0x1] %v359
      %v361 = vmul.f32 %v309, %v309
      %v362 = vmul.f32 %v312, %v312
      %v363 = vmul.f32 %v317, %v317
      %v364 = vmul.f32 %v320, %v320
      %v365 = vmul.f32 %v325, %v325
      %v366 = vmul.f32 %v328, %v328
      %v367 = vmul.f32 %v333, %v333
      %v368 = vmul.f32 %v336, %v336
      %v369 = vadd.f32 %v361, %v362
      %v370 = vadd.f32 %v369, %v363
      %v371 = vadd.f32 %v370, %v364
      %v372 = vadd.f32 %v371, %v365
      %v373 = vadd.f32 %v372, %v366
      %v374 = vadd.f32 %v373, %v367
      %v375 = vadd.f32 %v374, %v368
      %v376 = vrot.slane %v375, 4
      %v377 = vadd.f32 %v375, %v376
      %v378 = vrot.slane %v377, 2
      %v379 = vadd.f32 %v377, %v378
      %v380 = vrot.slane %v379, 1
      %v381 = vadd.f32 %v379, %v380
      %382 = vst [vmem:[%s226 + $0x1] sm:$0x1] %v381
      %p383 = scmp.lt.s32.totalorder %s19, 1
      %s384 = scalar_select %p383, %s19, 1
      %p385 = scmp.lt.s32.totalorder %s20, 0
      %s386 = scalar_select %p385, %s20, 0
      %s387 = smul.addr %s384, 8
      %s388 = sadd.s32 %s386, %s387
      %s389 = smul.addr %s388, 8
      %s390 = scalar_lea.vmem %s2, %s389
      %p391 = scmp.lt.s32.totalorder %s19, 1
      %s392 = scalar_select %p391, %s19, 1
      %p393 = scmp.lt.s32.totalorder %s20, 0
      %s394 = scalar_select %p393, %s20, 0
      %s395 = sadd.s32 %s394, %s392
      %s396 = smul.addr %s395, 2
      %s397 = scalar_lea.vmem %s3, %s396
      // Predicated region
      $region29: #{basic_block_forward.8} parent=27 // pred_check
        %p398 = pneg %p99
      $region30: #{basic_block_forward.8} parent=27 // pred_check_branch
        %400 = sbr.rel (%p398) target = $region32
      $region31: #{basic_block_forward.8} parent=27 // pred_region
        _
      $region32: #{basic_block_forward.8} parent=27 // pred_fallthru
        _
      // Predicated region
      $region33: #{basic_block_forward.8} parent=27 // pred_check
        %p401 = pneg %p127
      $region34: #{basic_block_forward.8} parent=27 // pred_check_branch
        %403 = sbr.rel (%p401) target = $region36
      $region35: #{basic_block_forward.8} parent=27 // pred_region
        _
      $region36: #{basic_block_forward.8} parent=27 // pred_fallthru
        _
    $region28: #{basic_block_forward.8} parent=5 // pred_fallthru
      _
    %p404 = scmp.le.s32.totalorder 2, %s10
    // Predicated region
    $region37: #{basic_block_forward.8} parent=5 // pred_check
      %p405 = pneg %p404
    $region38: #{basic_block_forward.8} parent=5 // pred_check_branch
      %407 = sbr.rel (%p405) target = $region40
    $region39: #{basic_block_forward.8} parent=5 // pred_region
      %s408 = ssub.s32 %s10, 2
      // Predicated region
      $region41: #{basic_block_forward.8} parent=39 // pred_check
        %p409 = pneg %p105
      $region42: #{basic_block_forward.8} parent=39 // pred_check_branch
        %411 = sbr.rel (%p409) target = $region44
      $region43: #{basic_block_forward.8} parent=39 // pred_region
        %p412 = scmp.lt.s32.totalorder %s21, 1
        %s413 = scalar_select %p412, %s21, 1
        %p414 = scmp.lt.s32.totalorder %s22, 0
        %s415 = scalar_select %p414, %s22, 0
        %s416 = smul.addr %s413, 8
        %s417 = sadd.s32 %s415, %s416
        %s418 = smul.addr %s417, 8
        %s419 = scalar_lea.vmem %s2, %s418
      $region44: #{basic_block_forward.8} parent=39 // pred_fallthru
        _
      // Predicated region
      $region45: #{basic_block_forward.8} parent=39 // pred_check
        %p420 = pneg %p133
      $region46: #{basic_block_forward.8} parent=39 // pred_check_branch
        %422 = sbr.rel (%p420) target = $region48
      $region47: #{basic_block_forward.8} parent=39 // pred_region
        %p423 = scmp.lt.s32.totalorder %s21, 1
        %s424 = scalar_select %p423, %s21, 1
        %p425 = scmp.lt.s32.totalorder %s22, 0
        %s426 = scalar_select %p425, %s22, 0
        %s427 = sadd.s32 %s426, %s424
        %s428 = smul.addr %s427, 2
        %s429 = scalar_lea.vmem %s3, %s428
      $region48: #{basic_block_forward.8} parent=39 // pred_fallthru
        _
    $region40: #{basic_block_forward.8} parent=5 // pred_fallthru
      _
  $region6: #{basic_block_forward.8} parent=0 // loop_footer
    %s14 = sadd.s32 1, %s10
  $region7: #{basic_block_forward.8} parent=0 // loop_footer_branch
    %9 = sbr.rel target = $region3
  $region8: #{basic_block_forward.8} parent=0 // loop_exit
    _

// kernel: basic_block_forward.6
$region0: #{basic_block_forward.6}
  #allocation0 [shape = 'u32[]', space=smem, size = 0x4, offset = 0x4, fixed_abs, tag = 'smem constant byte address 0x4 - core index']
  #allocation1 [shape = 'u32[144,128]{1,0:T(1,128)}', space=vmem, size = 0x12000, scoped, tag = 'internal scratch']
  %s0 = inlined_call_operand.vmem [shape: f32[2,64,128], index: 0, kind: input, shape index: {}]
  %s1 = inlined_call_operand.vmem [shape: f32[1,128], index: 1, kind: input, shape index: {}]
  %s2 = inlined_call_operand.vmem [shape: f32[1,128], index: 2, kind: input, shape index: {}]
  %s3 = inlined_call_operand.vmem [shape: bf16[2,64,128], index: 3, kind: output, shape index: {}]
  %s4 = sld [smem:[#allocation0]]
  $region45: #{basic_block_forward.6} parent=0
    _
  %s6 = ssub.s32 1, %s4
  %s7 = scalar_select 0, %s6, %s4
  loop: start=0, step=1, limit=4
  $region2: #{basic_block_forward.6} parent=0 // loop_pre_header
    _
  $region3: #{basic_block_forward.6} parent=0 // loop_header
    %s9 = sphi 0, %s13
    %p10 = scmp.ge.s32.totalorder %s9, 4
    %s16 = sphi 0, %s28
    %s17 = sphi 0, %s24
    %s18 = sphi 0, %s16
    %s19 = sphi 0, %s17
    %s20 = sphi 0, %s18
    %s21 = sphi 0, %s19
    %s33 = sphi 0, %s35
    %s36 = sphi 0, %s33
    %s37 = sphi 0, %s36
    %s53 = sphi 0, %s37
    %s59 = sphi 0, %s61
    %s62 = sphi 0, %s59
    %s63 = sphi 0, %s62
    %s79 = sphi 0, %s63
    %s85 = sphi 0, %s87
    %s88 = sphi 0, %s85
    %s89 = sphi 0, %s88
    %s105 = sphi 0, %s89
    %s113 = sphi 0, %s115
    %s116 = sphi 0, %s113
    %s117 = sphi 0, %s116
    %s133 = sphi 0, %s117
  $region4: #{basic_block_forward.6} parent=0 // loop_header_branch
    %12 = sbr.rel (%p10) target = $region8
  $region5: #{basic_block_forward.6} parent=0 // loop_body
    %s14 = ssub.s32 %s9, 1
    %s15 = ssub.s32 %s9, 2
    %s22 = sadd.s32 1, %s17
    %p23 = scmp.ge.s32.totalorder %s22, 1
    %s24 = scalar_select %p23, 0, %s22
    %s25 = sadd.s32 1, %s16
    %s26 = scalar_select %p23, %s25, %s16
    %p27 = scmp.ge.s32.totalorder %s26, 2
    %s28 = scalar_select %p27, 0, %s26
    %s29 = ssub.s32 %s16, %s28
    %s30 = ssub.s32 %s17, %s24
    %s31 = sor.u32 %s29, %s30
    %p32 = scmp.eq.s32.totalorder %s31, 0
    %s34 = sadd.s32 %s33, 1
    %s35 = scalar_select %p32, %s33, %s34
    %p38 = pneg %p32
    %p39 = scmp.eq.s32.totalorder %s9, 1
    %p40 = por %p38, %p39
    %p41 = scmp.ne.s32.totalorder %s33, %s36
    %p42 = scmp.eq.s32.totalorder %s9, 0
    %p43 = por %p41, %p42
    %p44 = scmp.ne.s32.totalorder %s33, %s36
    %p45 = scmp.eq.s32.totalorder %s14, 1
    %p46 = por %p44, %p45
    %p47 = scmp.ne.s32.totalorder %s36, %s37
    %p48 = scmp.eq.s32.totalorder %s14, 0
    %p49 = por %p47, %p48
    %p50 = scmp.ne.s32.totalorder %s36, %s37
    %p51 = scmp.eq.s32.totalorder %s15, 1
    %p52 = por %p50, %p51
    %p54 = scmp.ne.s32.totalorder %s37, %s53
    %p55 = scmp.eq.s32.totalorder %s15, 0
    %p56 = por %p54, %p55
    %s57 = ssub.s32 %s17, %s24
    %p58 = scmp.eq.s32.totalorder %s57, 0
    %s60 = sadd.s32 %s59, 1
    %s61 = scalar_select %p58, %s59, %s60
    %p64 = pneg %p58
    %p65 = scmp.eq.s32.totalorder %s9, 1
    %p66 = por %p64, %p65
    %p67 = scmp.ne.s32.totalorder %s59, %s62
    %p68 = scmp.eq.s32.totalorder %s9, 0
    %p69 = por %p67, %p68
    %p70 = scmp.ne.s32.totalorder %s59, %s62
    %p71 = scmp.eq.s32.totalorder %s14, 1
    %p72 = por %p70, %p71
    %p73 = scmp.ne.s32.totalorder %s62, %s63
    %p74 = scmp.eq.s32.totalorder %s14, 0
    %p75 = por %p73, %p74
    %p76 = scmp.ne.s32.totalorder %s62, %s63
    %p77 = scmp.eq.s32.totalorder %s15, 1
    %p78 = por %p76, %p77
    %p80 = scmp.ne.s32.totalorder %s63, %s79
    %p81 = scmp.eq.s32.totalorder %s15, 0
    %p82 = por %p80, %p81
    %s83 = ssub.s32 %s17, %s24
    %p84 = scmp.eq.s32.totalorder %s83, 0
    %s86 = sadd.s32 %s85, 1
    %s87 = scalar_select %p84, %s85, %s86
    %p90 = pneg %p84
    %p91 = scmp.eq.s32.totalorder %s9, 1
    %p92 = por %p90, %p91
    %p93 = scmp.ne.s32.totalorder %s85, %s88
    %p94 = scmp.eq.s32.totalorder %s9, 0
    %p95 = por %p93, %p94
    %p96 = scmp.ne.s32.totalorder %s85, %s88
    %p97 = scmp.eq.s32.totalorder %s14, 1
    %p98 = por %p96, %p97
    %p99 = scmp.ne.s32.totalorder %s88, %s89
    %p100 = scmp.eq.s32.totalorder %s14, 0
    %p101 = por %p99, %p100
    %p102 = scmp.ne.s32.totalorder %s88, %s89
    %p103 = scmp.eq.s32.totalorder %s15, 1
    %p104 = por %p102, %p103
    %p106 = scmp.ne.s32.totalorder %s89, %s105
    %p107 = scmp.eq.s32.totalorder %s15, 0
    %p108 = por %p106, %p107
    %s109 = ssub.s32 %s16, %s28
    %s110 = ssub.s32 %s17, %s24
    %s111 = sor.u32 %s109, %s110
    %p112 = scmp.eq.s32.totalorder %s111, 0
    %s114 = sadd.s32 %s113, 1
    %s115 = scalar_select %p112, %s113, %s114
    %p118 = pneg %p112
    %p119 = scmp.eq.s32.totalorder %s9, 1
    %p120 = por %p118, %p119
    %p121 = scmp.ne.s32.totalorder %s113, %s116
    %p122 = scmp.eq.s32.totalorder %s9, 0
    %p123 = por %p121, %p122
    %p124 = scmp.ne.s32.totalorder %s113, %s116
    %p125 = scmp.eq.s32.totalorder %s14, 1
    %p126 = por %p124, %p125
    %p127 = scmp.ne.s32.totalorder %s116, %s117
    %p128 = scmp.eq.s32.totalorder %s14, 0
    %p129 = por %p127, %p128
    %p130 = scmp.ne.s32.totalorder %s116, %s117
    %p131 = scmp.eq.s32.totalorder %s15, 1
    %p132 = por %p130, %p131
    %p134 = scmp.ne.s32.totalorder %s117, %s133
    %p135 = scmp.eq.s32.totalorder %s15, 0
    %p136 = por %p134, %p135
    %p137 = scmp.le.s32.totalorder 1, %s9
    %p138 = scmp.lt.s32.totalorder %s9, 3
    %p139 = pnand %p137, %p138
    %p140 = pneg %p139
    // Predicated region
    $region9: #{basic_block_forward.6} parent=5 // pred_check
      _
    $region10: #{basic_block_forward.6} parent=5 // pred_check_branch
      %142 = sbr.rel (%p139) target = $region12
    $region11: #{basic_block_forward.6} parent=5 // pred_region
      %s143 = ssub.s32 %s9, 1
      // Predicated region
      $region13: #{basic_block_forward.6} parent=11 // pred_check
        %p144 = pneg %p75
      $region14: #{basic_block_forward.6} parent=11 // pred_check_branch
        %146 = sbr.rel (%p144) target = $region16
      $region15: #{basic_block_forward.6} parent=11 // pred_region
        %p147 = scmp.lt.s32.totalorder %s19, 0
        %s148 = scalar_select %p147, %s19, 0
        %s149 = scalar_lea.vmem %s1, %s148
      $region16: #{basic_block_forward.6} parent=11 // pred_fallthru
        _
      // Predicated region
      $region17: #{basic_block_forward.6} parent=11 // pred_check
        %p150 = pneg %p101
      $region18: #{basic_block_forward.6} parent=11 // pred_check_branch
        %152 = sbr.rel (%p150) target = $region20
      $region19: #{basic_block_forward.6} parent=11 // pred_region
        %p153 = scmp.lt.s32.totalorder %s19, 0
        %s154 = scalar_select %p153, %s19, 0
        %s155 = scalar_lea.vmem %s2, %s154
      $region20: #{basic_block_forward.6} parent=11 // pred_fallthru
        _
    $region12: #{basic_block_forward.6} parent=5 // pred_fallthru
      _
    %p156 = scmp.lt.s32.totalorder %s9, 2
    // Predicated region
    $region21: #{basic_block_forward.6} parent=5 // pred_check
      %p157 = pneg %p156
    $region22: #{basic_block_forward.6} parent=5 // pred_check_branch
      %159 = sbr.rel (%p157) target = $region24
    $region23: #{basic_block_forward.6} parent=5 // pred_region
      // Predicated region
      $region25: #{basic_block_forward.6} parent=23 // pred_check
        %p160 = pneg %p43
      $region26: #{basic_block_forward.6} parent=23 // pred_check_branch
        %162 = sbr.rel (%p160) target = $region28
      $region27: #{basic_block_forward.6} parent=23 // pred_region
        %p163 = scmp.lt.s32.totalorder %s16, 1
        %s164 = scalar_select %p163, %s16, 1
        %p165 = scmp.lt.s32.totalorder %s17, 0
        %s166 = scalar_select %p165, %s17, 0
        %s167 = smul.addr %s164, 8
        %s168 = sadd.s32 %s166, %s167
        %s169 = smul.addr %s168, 8
        %s170 = scalar_lea.vmem %s0, %s169
      $region28: #{basic_block_forward.6} parent=23 // pred_fallthru
        _
    $region24: #{basic_block_forward.6} parent=5 // pred_fallthru
      _
    %p171 = scmp.le.s32.totalorder 1, %s9
    %p172 = scmp.lt.s32.totalorder %s9, 3
    %p173 = pnand %p171, %p172
    %p174 = pneg %p173
    // Predicated region
    $region29: #{basic_block_forward.6} parent=5 // pred_check
      _
    $region30: #{basic_block_forward.6} parent=5 // pred_check_branch
      %176 = sbr.rel (%p173) target = $region32
    $region31: #{basic_block_forward.6} parent=5 // pred_region
      %s177 = ssub.s32 %s9, 1
      %p178 = scmp.lt.s32.totalorder %s18, 1
      %s179 = scalar_select %p178, %s18, 1
      %p180 = scmp.lt.s32.totalorder %s19, 0
      %s181 = scalar_select %p180, %s19, 0
      %s182 = smul.addr %s179, 8
      %s183 = sadd.s32 %s181, %s182
      %s184 = smul.addr %s183, 8
      %s185 = scalar_lea.vmem %s0, %s184
      %p186 = pneg %p49
      %p187 = pneg %p46
      %p188 = scmp.lt.s32.totalorder %s19, 0
      %s189 = scalar_select %p188, %s19, 0
      %s190 = scalar_lea.vmem %s1, %s189
      %p191 = pneg %p75
      %p192 = pneg %p72
      %p193 = scmp.lt.s32.totalorder %s19, 0
      %s194 = scalar_select %p193, %s19, 0
      %s195 = scalar_lea.vmem %s2, %s194
      %p196 = pneg %p101
      %p197 = pneg %p98
      %p198 = pneg %p129
      %p199 = pneg %p126
      %p200 = scmp.lt.s32.totalorder %s18, 1
      %s201 = scalar_select %p200, %s18, 1
      %p202 = scmp.lt.s32.totalorder %s19, 0
      %s203 = scalar_select %p202, %s19, 0
      %s204 = smul.addr %s201, 8
      %s205 = sadd.s32 %s203, %s204
      %s206 = smul.addr %s205, 4
      %s207 = scalar_lea.vmem %s3, %s206
      %p208 = scmp.lt.s32.totalorder %s18, 1
      %s209 = scalar_select %p208, %s18, 1
      %p210 = scmp.lt.s32.totalorder %s19, 0
      %s211 = scalar_select %p210, %s19, 0
      %s212 = smul.addr %s209, 8
      %s213 = sadd.s32 %s211, %s212
      %s214 = smul.addr %s213, 8
      %s215 = scalar_lea.vmem %s0, %s214
      %p216 = scmp.lt.s32.totalorder %s19, 0
      %s217 = scalar_select %p216, %s19, 0
      %s218 = scalar_lea.vmem %s1, %s217
      %p219 = scmp.lt.s32.totalorder %s19, 0
      %s220 = scalar_select %p219, %s19, 0
      %s221 = scalar_lea.vmem %s2, %s220
      %p222 = scmp.lt.s32.totalorder %s18, 1
      %s223 = scalar_select %p222, %s18, 1
      %p224 = scmp.lt.s32.totalorder %s19, 0
      %s225 = scalar_select %p224, %s19, 0
      %s226 = smul.addr %s223, 8
      %s227 = sadd.s32 %s225, %s226
      %s228 = smul.addr %s227, 4
      %s229 = scalar_lea.vmem %s3, %s228
      %v230 = vld [vmem:[%s215] sm:$0xff]
      %v231 = vld [vmem:[%s215 + $0x8] sm:$0xff]
      %v232 = vld [vmem:[%s215 + $0x10] sm:$0xff]
      %v233 = vld [vmem:[%s215 + $0x18] sm:$0xff]
      %v234 = vld [vmem:[%s215 + $0x20] sm:$0xff]
      %v235 = vld [vmem:[%s215 + $0x28] sm:$0xff]
      %v236 = vld [vmem:[%s215 + $0x30] sm:$0xff]
      %v237 = vld [vmem:[%s215 + $0x38] sm:$0xff]
      %v238 = vld [vmem:[%s218] sm:$0x1]
      %v240 = vlaneseq
      %v241 = vshrl.u32 %v240, 7
      %v242 = vsub.s32 0, %v241
      %v243 = vrot.slane %v238, %v242
      %v245 = vmul.f32 %v230, %v243
      %v246 = vmul.f32 %v231, %v243
      %v247 = vmul.f32 %v232, %v243
      %v248 = vmul.f32 %v233, %v243
      %v249 = vmul.f32 %v234, %v243
      %v250 = vmul.f32 %v235, %v243
      %v251 = vmul.f32 %v236, %v243
      %v252 = vmul.f32 %v237, %v243
      %v253 = vld [vmem:[%s221] sm:$0x1]
      %v255 = vlaneseq
      %v256 = vshrl.u32 %v255, 7
      %v257 = vsub.s32 0, %v256
      %v258 = vrot.slane %v253, %v257
      %v260 = vadd.f32 %v245, %v258
      %v261 = vadd.f32 %v246, %v258
      %v262 = vadd.f32 %v247, %v258
      %v263 = vadd.f32 %v248, %v258
      %v264 = vadd.f32 %v249, %v258
      %v265 = vadd.f32 %v250, %v258
      %v266 = vadd.f32 %v251, %v258
      %v267 = vadd.f32 %v252, %v258
      %vm268 = vcmp.ge.f32.partialorder %v260, 0.0
      %vm269 = vcmp.ge.f32.partialorder %v261, 0.0
      %vm270 = vcmp.ge.f32.partialorder %v262, 0.0
      %vm271 = vcmp.ge.f32.partialorder %v263, 0.0
      %vm272 = vcmp.ge.f32.partialorder %v264, 0.0
      %vm273 = vcmp.ge.f32.partialorder %v265, 0.0
      %vm274 = vcmp.ge.f32.partialorder %v266, 0.0
      %vm275 = vcmp.ge.f32.partialorder %v267, 0.0
      %v276 = vmul.f32 %v260, 0.01
      %v277 = vmul.f32 %v261, 0.01
      %v278 = vmul.f32 %v262, 0.01
      %v279 = vmul.f32 %v263, 0.01
      %v280 = vmul.f32 %v264, 0.01
      %v281 = vmul.f32 %v265, 0.01
      %v282 = vmul.f32 %v266, 0.01
      %v283 = vmul.f32 %v267, 0.01
      %v284 = vsel %vm268, %v260, %v276
      %v285 = vsel %vm269, %v261, %v277
      %v286 = vsel %vm270, %v262, %v278
      %v287 = vsel %vm271, %v263, %v279
      %v288 = vsel %vm272, %v264, %v280
      %v289 = vsel %vm273, %v265, %v281
      %v290 = vsel %vm274, %v266, %v282
      %v291 = vsel %vm275, %v267, %v283
      %v292 = vpack.c.bf16 %v285, %v284
      %v293 = vpack.c.bf16 %v287, %v286
      %v294 = vpack.c.bf16 %v289, %v288
      %v295 = vpack.c.bf16 %v291, %v290
      %v300 = vunpack.c.l.b16 %v292
      %v301 = vunpack.c.h.b16 %v292
      %v302 = vunpack.c.l.b16 %v293
      %v303 = vunpack.c.h.b16 %v293
      %v304 = vunpack.c.l.b16 %v294
      %v305 = vunpack.c.h.b16 %v294
      %v306 = vunpack.c.l.b16 %v295
      %v307 = vunpack.c.h.b16 %v295
      %v308 = vpack.c.b16 %v300, %v300
      %v309 = vpack.c.b16 %v301, %v301
      %v310 = vpack.c.b16 %v302, %v302
      %v311 = vpack.c.b16 %v303, %v303
      %v312 = vpack.c.b16 %v304, %v304
      %v313 = vpack.c.b16 %v305, %v305
      %v314 = vpack.c.b16 %v306, %v306
      %v315 = vpack.c.b16 %v307, %v307
      %324 = vst [vmem:[%s229] sm:$0xf] %v308
      %325 = vst [vmem:[%s229 + $0x4] sm:$0xf] %v309
      %326 = vst [vmem:[%s229 + $0x8] sm:$0xf] %v310
      %327 = vst [vmem:[%s229 + $0xc] sm:$0xf] %v311
      %328 = vst [vmem:[%s229 + $0x10] sm:$0xf] %v312
      %329 = vst [vmem:[%s229 + $0x14] sm:$0xf] %v313
      %330 = vst [vmem:[%s229 + $0x18] sm:$0xf] %v314
      %331 = vst [vmem:[%s229 + $0x1c] sm:$0xf] %v315
      %p332 = scmp.lt.s32.totalorder %s18, 1
      %s333 = scalar_select %p332, %s18, 1
      %p334 = scmp.lt.s32.totalorder %s19, 0
      %s335 = scalar_select %p334, %s19, 0
      %s336 = smul.addr %s333, 8
      %s337 = sadd.s32 %s335, %s336
      %s338 = smul.addr %s337, 4
      %s339 = scalar_lea.vmem %s3, %s338
      // Predicated region
      $region33: #{basic_block_forward.6} parent=31 // pred_check
        %p340 = pneg %p126
      $region34: #{basic_block_forward.6} parent=31 // pred_check_branch
        %342 = sbr.rel (%p340) target = $region36
      $region35: #{basic_block_forward.6} parent=31 // pred_region
        _
      $region36: #{basic_block_forward.6} parent=31 // pred_fallthru
        _
    $region32: #{basic_block_forward.6} parent=5 // pred_fallthru
      _
    %p343 = scmp.le.s32.totalorder 2, %s9
    // Predicated region
    $region37: #{basic_block_forward.6} parent=5 // pred_check
      %p344 = pneg %p343
    $region38: #{basic_block_forward.6} parent=5 // pred_check_branch
      %346 = sbr.rel (%p344) target = $region40
    $region39: #{basic_block_forward.6} parent=5 // pred_region
      %s347 = ssub.s32 %s9, 2
      // Predicated region
      $region41: #{basic_block_forward.6} parent=39 // pred_check
        %p348 = pneg %p132
      $region42: #{basic_block_forward.6} parent=39 // pred_check_branch
        %350 = sbr.rel (%p348) target = $region44
      $region43: #{basic_block_forward.6} parent=39 // pred_region
        %p351 = scmp.lt.s32.totalorder %s20, 1
        %s352 = scalar_select %p351, %s20, 1
        %p353 = scmp.lt.s32.totalorder %s21, 0
        %s354 = scalar_select %p353, %s21, 0
        %s355 = smul.addr %s352, 8
        %s356 = sadd.s32 %s354, %s355
        %s357 = smul.addr %s356, 4
        %s358 = scalar_lea.vmem %s3, %s357
      $region44: #{basic_block_forward.6} parent=39 // pred_fallthru
        _
    $region40: #{basic_block_forward.6} parent=5 // pred_fallthru
      _
  $region6: #{basic_block_forward.6} parent=0 // loop_footer
    %s13 = sadd.s32 1, %s9
  $region7: #{basic_block_forward.6} parent=0 // loop_footer_branch
    %8 = sbr.rel target = $region3
  $region8: #{basic_block_forward.6} parent=0 // loop_exit
    _

// kernel: basic_block_forward.5
$region0: #{basic_block_forward.5}
  #allocation0 [shape = 'u32[]', space=smem, size = 0x4, offset = 0x4, fixed_abs, tag = 'smem constant byte address 0x4 - core index']
  #allocation1 [shape = 'u32[144,128]{1,0:T(1,128)}', space=vmem, size = 0x12000, scoped, tag = 'internal scratch']
  %s0 = inlined_call_operand.vmem [shape: bf16[2,9,9,16], index: 0, kind: input, shape index: {}]
  %s1 = inlined_call_operand.vmem [shape: bf16[4,16,128], index: 1, kind: input, shape index: {}]
  %s2 = inlined_call_operand.vmem [shape: f32[2,64,128], index: 2, kind: output, shape index: {0}]
  %s3 = inlined_call_operand.vmem [shape: f32[2,2,128], index: 3, kind: output, shape index: {1}]
  %4 = xla_tuple %s2, %s3
  %s5 = sld [smem:[#allocation0]]
  $region49: #{basic_block_forward.5} parent=0
    _
  %s7 = ssub.s32 1, %s5
  %s8 = scalar_select 0, %s7, %s5
  loop: start=0, step=1, limit=4
  $region2: #{basic_block_forward.5} parent=0 // loop_pre_header
    _
  $region3: #{basic_block_forward.5} parent=0 // loop_header
    %s10 = sphi 0, %s14
    %p11 = scmp.ge.s32.totalorder %s10, 4
    %s17 = sphi 0, %s29
    %s18 = sphi 0, %s25
    %s19 = sphi 0, %s17
    %s20 = sphi 0, %s18
    %s21 = sphi 0, %s19
    %s22 = sphi 0, %s20
    %s32 = sphi 0, %s34
    %s35 = sphi 0, %s32
    %s36 = sphi 0, %s35
    %s52 = sphi 0, %s36
    %s58 = sphi 0, %s60
    %s61 = sphi 0, %s58
    %s62 = sphi 0, %s61
    %s78 = sphi 0, %s62
    %s86 = sphi 0, %s88
    %s89 = sphi 0, %s86
    %s90 = sphi 0, %s89
    %s106 = sphi 0, %s90
    %s114 = sphi 0, %s116
    %s117 = sphi 0, %s114
    %s118 = sphi 0, %s117
    %s134 = sphi 0, %s118
  $region4: #{basic_block_forward.5} parent=0 // loop_header_branch
    %13 = sbr.rel (%p11) target = $region8
  $region5: #{basic_block_forward.5} parent=0 // loop_body
    %s15 = ssub.s32 %s10, 1
    %s16 = ssub.s32 %s10, 2
    %s23 = sadd.s32 1, %s18
    %p24 = scmp.ge.s32.totalorder %s23, 1
    %s25 = scalar_select %p24, 0, %s23
    %s26 = sadd.s32 1, %s17
    %s27 = scalar_select %p24, %s26, %s17
    %p28 = scmp.ge.s32.totalorder %s27, 2
    %s29 = scalar_select %p28, 0, %s27
    %s30 = ssub.s32 %s17, %s29
    %p31 = scmp.eq.s32.totalorder %s30, 0
    %s33 = sadd.s32 %s32, 1
    %s34 = scalar_select %p31, %s32, %s33
    %p37 = pneg %p31
    %p38 = scmp.eq.s32.totalorder %s10, 1
    %p39 = por %p37, %p38
    %p40 = scmp.ne.s32.totalorder %s32, %s35
    %p41 = scmp.eq.s32.totalorder %s10, 0
    %p42 = por %p40, %p41
    %p43 = scmp.ne.s32.totalorder %s32, %s35
    %p44 = scmp.eq.s32.totalorder %s15, 1
    %p45 = por %p43, %p44
    %p46 = scmp.ne.s32.totalorder %s35, %s36
    %p47 = scmp.eq.s32.totalorder %s15, 0
    %p48 = por %p46, %p47
    %p49 = scmp.ne.s32.totalorder %s35, %s36
    %p50 = scmp.eq.s32.totalorder %s16, 1
    %p51 = por %p49, %p50
    %p53 = scmp.ne.s32.totalorder %s36, %s52
    %p54 = scmp.eq.s32.totalorder %s16, 0
    %p55 = por %p53, %p54
    %s56 = ssub.s32 %s18, %s25
    %p57 = scmp.eq.s32.totalorder %s56, 0
    %s59 = sadd.s32 %s58, 1
    %s60 = scalar_select %p57, %s58, %s59
    %p63 = pneg %p57
    %p64 = scmp.eq.s32.totalorder %s10, 1
    %p65 = por %p63, %p64
    %p66 = scmp.ne.s32.totalorder %s58, %s61
    %p67 = scmp.eq.s32.totalorder %s10, 0
    %p68 = por %p66, %p67
    %p69 = scmp.ne.s32.totalorder %s58, %s61
    %p70 = scmp.eq.s32.totalorder %s15, 1
    %p71 = por %p69, %p70
    %p72 = scmp.ne.s32.totalorder %s61, %s62
    %p73 = scmp.eq.s32.totalorder %s15, 0
    %p74 = por %p72, %p73
    %p75 = scmp.ne.s32.totalorder %s61, %s62
    %p76 = scmp.eq.s32.totalorder %s16, 1
    %p77 = por %p75, %p76
    %p79 = scmp.ne.s32.totalorder %s62, %s78
    %p80 = scmp.eq.s32.totalorder %s16, 0
    %p81 = por %p79, %p80
    %s82 = ssub.s32 %s17, %s29
    %s83 = ssub.s32 %s18, %s25
    %s84 = sor.u32 %s82, %s83
    %p85 = scmp.eq.s32.totalorder %s84, 0
    %s87 = sadd.s32 %s86, 1
    %s88 = scalar_select %p85, %s86, %s87
    %p91 = pneg %p85
    %p92 = scmp.eq.s32.totalorder %s10, 1
    %p93 = por %p91, %p92
    %p94 = scmp.ne.s32.totalorder %s86, %s89
    %p95 = scmp.eq.s32.totalorder %s10, 0
    %p96 = por %p94, %p95
    %p97 = scmp.ne.s32.totalorder %s86, %s89
    %p98 = scmp.eq.s32.totalorder %s15, 1
    %p99 = por %p97, %p98
    %p100 = scmp.ne.s32.totalorder %s89, %s90
    %p101 = scmp.eq.s32.totalorder %s15, 0
    %p102 = por %p100, %p101
    %p103 = scmp.ne.s32.totalorder %s89, %s90
    %p104 = scmp.eq.s32.totalorder %s16, 1
    %p105 = por %p103, %p104
    %p107 = scmp.ne.s32.totalorder %s90, %s106
    %p108 = scmp.eq.s32.totalorder %s16, 0
    %p109 = por %p107, %p108
    %s110 = ssub.s32 %s17, %s29
    %s111 = ssub.s32 %s18, %s25
    %s112 = sor.u32 %s110, %s111
    %p113 = scmp.eq.s32.totalorder %s112, 0
    %s115 = sadd.s32 %s114, 1
    %s116 = scalar_select %p113, %s114, %s115
    %p119 = pneg %p113
    %p120 = scmp.eq.s32.totalorder %s10, 1
    %p121 = por %p119, %p120
    %p122 = scmp.ne.s32.totalorder %s114, %s117
    %p123 = scmp.eq.s32.totalorder %s10, 0
    %p124 = por %p122, %p123
    %p125 = scmp.ne.s32.totalorder %s114, %s117
    %p126 = scmp.eq.s32.totalorder %s15, 1
    %p127 = por %p125, %p126
    %p128 = scmp.ne.s32.totalorder %s117, %s118
    %p129 = scmp.eq.s32.totalorder %s15, 0
    %p130 = por %p128, %p129
    %p131 = scmp.ne.s32.totalorder %s117, %s118
    %p132 = scmp.eq.s32.totalorder %s16, 1
    %p133 = por %p131, %p132
    %p135 = scmp.ne.s32.totalorder %s118, %s134
    %p136 = scmp.eq.s32.totalorder %s16, 0
    %p137 = por %p135, %p136
    %p138 = scmp.le.s32.totalorder 1, %s10
    %p139 = scmp.lt.s32.totalorder %s10, 3
    %p140 = pnand %p138, %p139
    %p141 = pneg %p140
    // Predicated region
    $region9: #{basic_block_forward.5} parent=5 // pred_check
      _
    $region10: #{basic_block_forward.5} parent=5 // pred_check_branch
      %143 = sbr.rel (%p140) target = $region12
    $region11: #{basic_block_forward.5} parent=5 // pred_region
      %s144 = ssub.s32 %s10, 1
      // Predicated region
      $region13: #{basic_block_forward.5} parent=11 // pred_check
        %p145 = pneg %p74
      $region14: #{basic_block_forward.5} parent=11 // pred_check_branch
        %147 = sbr.rel (%p145) target = $region16
      $region15: #{basic_block_forward.5} parent=11 // pred_region
        %p148 = scmp.lt.s32.totalorder %s20, 0
        %s149 = scalar_select %p148, %s20, 0
        %s150 = smul.addr %s149, 4
        %s151 = scalar_lea.vmem %s1, %s150
      $region16: #{basic_block_forward.5} parent=11 // pred_fallthru
        _
    $region12: #{basic_block_forward.5} parent=5 // pred_fallthru
      _
    %p152 = scmp.lt.s32.totalorder %s10, 2
    // Predicated region
    $region17: #{basic_block_forward.5} parent=5 // pred_check
      %p153 = pneg %p152
    $region18: #{basic_block_forward.5} parent=5 // pred_check_branch
      %155 = sbr.rel (%p153) target = $region20
    $region19: #{basic_block_forward.5} parent=5 // pred_region
      // Predicated region
      $region21: #{basic_block_forward.5} parent=19 // pred_check
        %p156 = pneg %p42
      $region22: #{basic_block_forward.5} parent=19 // pred_check_branch
        %158 = sbr.rel (%p156) target = $region24
      $region23: #{basic_block_forward.5} parent=19 // pred_region
        %p159 = scmp.lt.s32.totalorder %s17, 1
        %s160 = scalar_select %p159, %s17, 1
        %s161 = smul.addr %s160, 18
        %s162 = smul.addr %s161, 4
        %s163 = scalar_lea.vmem %s0, %s162
      $region24: #{basic_block_forward.5} parent=19 // pred_fallthru
        _
    $region20: #{basic_block_forward.5} parent=5 // pred_fallthru
      _
    %p164 = scmp.le.s32.totalorder 1, %s10
    %p165 = scmp.lt.s32.totalorder %s10, 3
    %p166 = pnand %p164, %p165
    %p167 = pneg %p166
    // Predicated region
    $region25: #{basic_block_forward.5} parent=5 // pred_check
      _
    $region26: #{basic_block_forward.5} parent=5 // pred_check_branch
      %169 = sbr.rel (%p166) target = $region28
    $region27: #{basic_block_forward.5} parent=5 // pred_region
      %s170 = ssub.s32 %s10, 1
      %p171 = scmp.lt.s32.totalorder %s19, 1
      %s172 = scalar_select %p171, %s19, 1
      %s173 = smul.addr %s172, 18
      %s174 = smul.addr %s173, 4
      %s175 = scalar_lea.vmem %s0, %s174
      %p176 = pneg %p48
      %p177 = pneg %p45
      %p178 = scmp.lt.s32.totalorder %s20, 0
      %s179 = scalar_select %p178, %s20, 0
      %s180 = smul.addr %s179, 4
      %s181 = scalar_lea.vmem %s1, %s180
      %p182 = pneg %p74
      %p183 = pneg %p71
      %p184 = pneg %p102
      %p185 = pneg %p99
      %p186 = scmp.lt.s32.totalorder %s19, 1
      %s187 = scalar_select %p186, %s19, 1
      %p188 = scmp.lt.s32.totalorder %s20, 0
      %s189 = scalar_select %p188, %s20, 0
      %s190 = smul.addr %s187, 8
      %s191 = sadd.s32 %s189, %s190
      %s192 = smul.addr %s191, 8
      %s193 = scalar_lea.vmem %s2, %s192
      %p194 = pneg %p130
      %p195 = pneg %p127
      %p196 = scmp.lt.s32.totalorder %s19, 1
      %s197 = scalar_select %p196, %s19, 1
      %p198 = scmp.lt.s32.totalorder %s20, 0
      %s199 = scalar_select %p198, %s20, 0
      %s200 = sadd.s32 %s199, %s197
      %s201 = smul.addr %s200, 2
      %s202 = scalar_lea.vmem %s3, %s201
      %p203 = scmp.lt.s32.totalorder %s19, 1
      %s204 = scalar_select %p203, %s19, 1
      %s205 = smul.addr %s204, 18
      %s206 = smul.addr %s205, 4
      %s207 = scalar_lea.vmem %s0, %s206
      %p208 = scmp.lt.s32.totalorder %s20, 0
      %s209 = scalar_select %p208, %s20, 0
      %s210 = smul.addr %s209, 4
      %s211 = scalar_lea.vmem %s1, %s210
      %p212 = scmp.lt.s32.totalorder %s19, 1
      %s213 = scalar_select %p212, %s19, 1
      %p214 = scmp.lt.s32.totalorder %s20, 0
      %s215 = scalar_select %p214, %s20, 0
      %s216 = smul.addr %s213, 8
      %s217 = sadd.s32 %s215, %s216
      %s218 = smul.addr %s217, 8
      %s219 = scalar_lea.vmem %s2, %s218
      %p220 = scmp.lt.s32.totalorder %s19, 1
      %s221 = scalar_select %p220, %s19, 1
      %p222 = scmp.lt.s32.totalorder %s20, 0
      %s223 = scalar_select %p222, %s20, 0
      %s224 = sadd.s32 %s223, %s221
      %s225 = smul.addr %s224, 2
      %s226 = scalar_lea.vmem %s3, %s225
      %v228 = vld [vmem:[%s207] sm:$0xf]
      %v229 = vld [vmem:[%s207 + $0x8] sm:$0xf]
      %v230 = vld [vmem:[%s207 + $0x10] sm:$0xf]
      %v231 = vld [vmem:[%s207 + $0x18] sm:$0xf]
      %v232 = vld [vmem:[%s207 + $0x20] sm:$0xf]
      %v233 = vld [vmem:[%s207 + $0x28] sm:$0xf]
      %v234 = vld [vmem:[%s207 + $0x30] sm:$0xf]
      %v235 = vld [vmem:[%s207 + $0x38] sm:$0xf]
      %v236 = vld [vmem:[%s211] sm:$0xf]
      %v237 = vld [vmem:[%s211 + $0x4] sm:$0xf]
      %v238 = vld [vmem:[%s207 + $0x4] sm:$0x1]
      %v239 = vld [vmem:[%s207 + $0xc] sm:$0x1]
      %v240 = vld [vmem:[%s207 + $0x14] sm:$0x1]
      %v241 = vld [vmem:[%s207 + $0x1c] sm:$0x1]
      %v242 = vld [vmem:[%s207 + $0x24] sm:$0x1]
      %v243 = vld [vmem:[%s207 + $0x2c] sm:$0x1]
      %v244 = vld [vmem:[%s207 + $0x34] sm:$0x1]
      %v245 = vld [vmem:[%s207 + $0x3c] sm:$0x1]
      %vm246 = vsmask.f32 3328
      %vm247 = vsmask.f32 7440
      %vm248 = vmor %vm246, %vm247
      %v250 = vshrl.u32 %v228, 16
      %v252 = vrot.slane %v250, 4
      %v253 = vshll.u32 %v228, 16
      %v255 = vrot.slane %v253, 5
      %v256 = vor.u32 %v252, %v255
      %v257 = vrot.slane %v256, 4
      %v259 = vshll.u32 %v238, 16
      %v261 = vrot.slane %v259, 5
      %v262 = vsel %vm248, %v257, %v261
      %v264 = vshrl.u32 %v229, 16
      %v266 = vrot.slane %v264, 4
      %v267 = vshll.u32 %v229, 16
      %v269 = vrot.slane %v267, 5
      %v270 = vor.u32 %v266, %v269
      %v271 = vrot.slane %v270, 4
      %v273 = vshll.u32 %v239, 16
      %v275 = vrot.slane %v273, 5
      %v276 = vsel %vm248, %v271, %v275
      %v278 = vshrl.u32 %v230, 16
      %v280 = vrot.slane %v278, 4
      %v281 = vshll.u32 %v230, 16
      %v283 = vrot.slane %v281, 5
      %v284 = vor.u32 %v280, %v283
      %v285 = vrot.slane %v284, 4
      %v287 = vshll.u32 %v240, 16
      %v289 = vrot.slane %v287, 5
      %v290 = vsel %vm248, %v285, %v289
      %v292 = vshrl.u32 %v231, 16
      %v294 = vrot.slane %v292, 4
      %v295 = vshll.u32 %v231, 16
      %v297 = vrot.slane %v295, 5
      %v298 = vor.u32 %v294, %v297
      %v299 = vrot.slane %v298, 4
      %v301 = vshll.u32 %v241, 16
      %v303 = vrot.slane %v301, 5
      %v304 = vsel %vm248, %v299, %v303
      %v306 = vshrl.u32 %v232, 16
      %v308 = vrot.slane %v306, 4
      %v309 = vshll.u32 %v232, 16
      %v311 = vrot.slane %v309, 5
      %v312 = vor.u32 %v308, %v311
      %v313 = vrot.slane %v312, 4
      %v315 = vshll.u32 %v242, 16
      %v317 = vrot.slane %v315, 5
      %v318 = vsel %vm248, %v313, %v317
      %v320 = vshrl.u32 %v233, 16
      %v322 = vrot.slane %v320, 4
      %v323 = vshll.u32 %v233, 16
      %v325 = vrot.slane %v323, 5
      %v326 = vor.u32 %v322, %v325
      %v327 = vrot.slane %v326, 4
      %v329 = vshll.u32 %v243, 16
      %v331 = vrot.slane %v329, 5
      %v332 = vsel %vm248, %v327, %v331
      %v334 = vshrl.u32 %v234, 16
      %v336 = vrot.slane %v334, 4
      %v337 = vshll.u32 %v234, 16
      %v339 = vrot.slane %v337, 5
      %v340 = vor.u32 %v336, %v339
      %v341 = vrot.slane %v340, 4
      %v343 = vshll.u32 %v244, 16
      %v345 = vrot.slane %v343, 5
      %v346 = vsel %vm248, %v341, %v345
      %v348 = vshrl.u32 %v235, 16
      %v350 = vrot.slane %v348, 4
      %v351 = vshll.u32 %v235, 16
      %v353 = vrot.slane %v351, 5
      %v354 = vor.u32 %v350, %v353
      %v355 = vrot.slane %v354, 4
      %v357 = vshll.u32 %v245, 16
      %v359 = vrot.slane %v357, 5
      %v360 = vsel %vm248, %v355, %v359
      %s361 = scalar_lea.vmem %s211, 8
      %v362 = vld [vmem:[%s361] sm:$0xf]
      %v363 = vld [vmem:[%s361 + $0x4] sm:$0xf]
      %v364 = vunpack.c.l.b16 %v262
      %v365 = vunpack.c.l.b16 %v276
      %v366 = vunpack.c.l.b16 %v290
      %v367 = vunpack.c.l.b16 %v304
      %v368 = vunpack.c.l.b16 %v318
      %v369 = vunpack.c.l.b16 %v332
      %v370 = vunpack.c.l.b16 %v346
      %v371 = vunpack.c.l.b16 %v360
      %v372 = vpack.c.b16 %v365, %v364
      %v373 = vpack.c.b16 %v367, %v366
      %v374 = vpack.c.b16 %v369, %v368
      %v375 = vpack.c.b16 %v371, %v370
      %v378 = vunpack.c.l.b16 %v362
      %v379 = vunpack.c.l.b16 %v363
      %v380 = vpack.c.b16 %v379, %v378
      %vm382 = vcmask 130048
      %v384 = vsel %vm382, %v372, 0
      %v387 = vsel %vm382, %v373, 0
      %v390 = vsel %vm382, %v374, 0
      %v393 = vsel %vm382, %v375, 0
      %395 = vmatprep.subr.bf16.mxu0 0
      %396 = vmatpush1.bf16.msra.mxu0 %v380
      %397 = vmatprep.subr.bf16.mxu0 0
      %398 = vmatpush1.bf16.msra.mxu0 0
      %399 = vmatprep.subr.bf16.mxu0 0
      %400 = vmatpush1.bf16.msra.mxu0 0
      %401 = vmatprep.subr.bf16.mxu0 0
      %402 = vmatpush1.bf16.msra.mxu0 0
      %403 = vmatprep.subr.bf16.mxu0 0
      %404 = vmatpush1.bf16.msra.mxu0 0
      %405 = vmatprep.subr.bf16.mxu0 0
      %406 = vmatpush1.bf16.msra.mxu0 0
      %407 = vmatprep.subr.bf16.mxu0 0
      %408 = vmatpush1.bf16.msra.mxu0 0
      %409 = vmatprep.subr.bf16.mxu0 0
      %410 = vmatpush1.bf16.msra.mxu0 0
      %411 = vmatprep.subr.bf16.mxu0 0
      %412 = vmatpush1.bf16.msra.mxu0 0
      %413 = vmatprep.subr.bf16.mxu0 0
      %414 = vmatpush1.bf16.msra.mxu0 0
      %415 = vmatprep.subr.bf16.mxu0 0
      %416 = vmatpush1.bf16.msra.mxu0 0
      %417 = vmatprep.subr.bf16.mxu0 0
      %418 = vmatpush1.bf16.msra.mxu0 0
      %419 = vmatprep.subr.bf16.mxu0 0
      %420 = vmatpush1.bf16.msra.mxu0 0
      %421 = vmatprep.subr.bf16.mxu0 0
      %422 = vmatpush1.bf16.msra.mxu0 0
      %423 = vmatprep.subr.bf16.mxu0 0
      %424 = vmatpush1.bf16.msra.mxu0 0
      %425 = vmatprep.subr.bf16.mxu0 0
      %426 = vmatpush1.bf16.msra.mxu0 0
      %427 = vmatprep.mubr.bf16.mxu0 0
      %428 = vmatmul.mubr.bf16.gmra.mrb[0].mxu0 %v384
      %v429 = vpop.f32.mrb[0].mxu0
      %v430 = vadd.f32 0.0, %v429
      %v431 = vpop.f32.mrb[0].mxu0
      %v432 = vpop.f32.mrb[0].mxu0
      %v433 = vadd.f32 0.0, %v432
      %v434 = vpop.f32.mrb[0].mxu0
      %435 = vmatprep.mubr.bf16.mxu0 0
      %436 = vmatmul.mubr.bf16.gmra.mrb[0].mxu0 %v387
      %v437 = vpop.f32.mrb[0].mxu0
      %v438 = vadd.f32 0.0, %v437
      %v439 = vpop.f32.mrb[0].mxu0
      %v440 = vpop.f32.mrb[0].mxu0
      %v441 = vadd.f32 0.0, %v440
      %v442 = vpop.f32.mrb[0].mxu0
      %443 = vmatprep.mubr.bf16.mxu0 0
      %444 = vmatmul.mubr.bf16.gmra.mrb[0].mxu0 %v390
      %v445 = vpop.f32.mrb[0].mxu0
      %v446 = vadd.f32 0.0, %v445
      %v447 = vpop.f32.mrb[0].mxu0
      %v448 = vpop.f32.mrb[0].mxu0
      %v449 = vadd.f32 0.0, %v448
      %v450 = vpop.f32.mrb[0].mxu0
      %451 = vmatprep.mubr.bf16.mxu0 0
      %452 = vmatmul.mubr.bf16.gmra.mrb[0].mxu0 %v393
      %v453 = vpop.f32.mrb[0].mxu0
      %v454 = vadd.f32 0.0, %v453
      %v455 = vpop.f32.mrb[0].mxu0
      %v456 = vpop.f32.mrb[0].mxu0
      %v457 = vadd.f32 0.0, %v456
      %v458 = vpop.f32.mrb[0].mxu0
      %459 = vdwg.mxu0
      %v468 = vunpack.c.l.b16 %v228
      %v469 = vunpack.c.l.b16 %v229
      %v470 = vunpack.c.l.b16 %v230
      %v471 = vunpack.c.l.b16 %v231
      %v472 = vunpack.c.l.b16 %v232
      %v473 = vunpack.c.l.b16 %v233
      %v474 = vunpack.c.l.b16 %v234
      %v475 = vunpack.c.l.b16 %v235
      %v476 = vpack.c.b16 %v469, %v468
      %v477 = vpack.c.b16 %v471, %v470
      %v478 = vpack.c.b16 %v473, %v472
      %v479 = vpack.c.b16 %v475, %v474
      %v482 = vunpack.c.l.b16 %v236
      %v483 = vunpack.c.l.b16 %v237
      %v484 = vpack.c.b16 %v483, %v482
      %v487 = vsel %vm382, %v476, 0
      %v490 = vsel %vm382, %v477, 0
      %v493 = vsel %vm382, %v478, 0
      %v496 = vsel %vm382, %v479, 0
      %498 = vmatprep.subr.bf16.mxu0 0
      %499 = vmatpush1.bf16.msra.mxu0 %v484
      %500 = vmatprep.subr.bf16.mxu0 0
      %501 = vmatpush1.bf16.msra.mxu0 0
      %502 = vmatprep.subr.bf16.mxu0 0
      %503 = vmatpush1.bf16.msra.mxu0 0
      %504 = vmatprep.subr.bf16.mxu0 0
      %505 = vmatpush1.bf16.msra.mxu0 0
      %506 = vmatprep.subr.bf16.mxu0 0
      %507 = vmatpush1.bf16.msra.mxu0 0
      %508 = vmatprep.subr.bf16.mxu0 0
      %509 = vmatpush1.bf16.msra.mxu0 0
      %510 = vmatprep.subr.bf16.mxu0 0
      %511 = vmatpush1.bf16.msra.mxu0 0
      %512 = vmatprep.subr.bf16.mxu0 0
      %513 = vmatpush1.bf16.msra.mxu0 0
      %514 = vmatprep.subr.bf16.mxu0 0
      %515 = vmatpush1.bf16.msra.mxu0 0
      %516 = vmatprep.subr.bf16.mxu0 0
      %517 = vmatpush1.bf16.msra.mxu0 0
      %518 = vmatprep.subr.bf16.mxu0 0
      %519 = vmatpush1.bf16.msra.mxu0 0
      %520 = vmatprep.subr.bf16.mxu0 0
      %521 = vmatpush1.bf16.msra.mxu0 0
      %522 = vmatprep.subr.bf16.mxu0 0
      %523 = vmatpush1.bf16.msra.mxu0 0
      %524 = vmatprep.subr.bf16.mxu0 0
      %525 = vmatpush1.bf16.msra.mxu0 0
      %526 = vmatprep.subr.bf16.mxu0 0
      %527 = vmatpush1.bf16.msra.mxu0 0
      %528 = vmatprep.subr.bf16.mxu0 0
      %529 = vmatpush1.bf16.msra.mxu0 0
      %530 = vmatprep.mubr.bf16.mxu0 0
      %531 = vmatmul.mubr.bf16.gmra.mrb[0].mxu0 %v487
      %v532 = vpop.f32.mrb[0].mxu0
      %v533 = vadd.f32 %v430, %v532
      %v534 = vpop.f32.mrb[0].mxu0
      %v535 = vpop.f32.mrb[0].mxu0
      %v536 = vadd.f32 %v433, %v535
      %v537 = vpop.f32.mrb[0].mxu0
      %538 = vmatprep.mubr.bf16.mxu0 0
      %539 = vmatmul.mubr.bf16.gmra.mrb[0].mxu0 %v490
      %v540 = vpop.f32.mrb[0].mxu0
      %v541 = vadd.f32 %v438, %v540
      %v542 = vpop.f32.mrb[0].mxu0
      %v543 = vpop.f32.mrb[0].mxu0
      %v544 = vadd.f32 %v441, %v543
      %v545 = vpop.f32.mrb[0].mxu0
      %546 = vmatprep.mubr.bf16.mxu0 0
      %547 = vmatmul.mubr.bf16.gmra.mrb[0].mxu0 %v493
      %v548 = vpop.f32.mrb[0].mxu0
      %v549 = vadd.f32 %v446, %v548
      %v550 = vpop.f32.mrb[0].mxu0
      %v551 = vpop.f32.mrb[0].mxu0
      %v552 = vadd.f32 %v449, %v551
      %v553 = vpop.f32.mrb[0].mxu0
      %554 = vmatprep.mubr.bf16.mxu0 0
      %555 = vmatmul.mubr.bf16.gmra.mrb[0].mxu0 %v496
      %v556 = vpop.f32.mrb[0].mxu0
      %v557 = vadd.f32 %v454, %v556
      %v558 = vpop.f32.mrb[0].mxu0
      %v559 = vpop.f32.mrb[0].mxu0
      %v560 = vadd.f32 %v457, %v559
      %v561 = vpop.f32.mrb[0].mxu0
      %562 = vdwg.mxu0
      %s563 = scalar_lea.vmem %s207, 8
      %v564 = vld [vmem:[%s563] sm:$0xf]
      %v565 = vld [vmem:[%s563 + $0x8] sm:$0xf]
      %v566 = vld [vmem:[%s563 + $0x10] sm:$0xf]
      %v567 = vld [vmem:[%s563 + $0x18] sm:$0xf]
      %v568 = vld [vmem:[%s563 + $0x20] sm:$0xf]
      %v569 = vld [vmem:[%s563 + $0x28] sm:$0xf]
      %v570 = vld [vmem:[%s563 + $0x30] sm:$0xf]
      %v571 = vld [vmem:[%s563 + $0x38] sm:$0xf]
      %s572 = scalar_lea.vmem %s211, 16
      %v573 = vld [vmem:[%s572] sm:$0xf]
      %v574 = vld [vmem:[%s572 + $0x4] sm:$0xf]
      %v583 = vunpack.c.l.b16 %v564
      %v584 = vunpack.c.l.b16 %v565
      %v585 = vunpack.c.l.b16 %v566
      %v586 = vunpack.c.l.b16 %v567
      %v587 = vunpack.c.l.b16 %v568
      %v588 = vunpack.c.l.b16 %v569
      %v589 = vunpack.c.l.b16 %v570
      %v590 = vunpack.c.l.b16 %v571
      %v591 = vpack.c.b16 %v584, %v583
      %v592 = vpack.c.b16 %v586, %v585
      %v593 = vpack.c.b16 %v588, %v587
      %v594 = vpack.c.b16 %v590, %v589
      %v597 = vunpack.c.l.b16 %v573
      %v598 = vunpack.c.l.b16 %v574
      %v599 = vpack.c.b16 %v598, %v597
      %v602 = vsel %vm382, %v591, 0
      %v605 = vsel %vm382, %v592, 0
      %v608 = vsel %vm382, %v593, 0
      %v611 = vsel %vm382, %v594, 0
      %613 = vmatprep.subr.bf16.mxu0 0
      %614 = vmatpush1.bf16.msra.mxu0 %v599
      %615 = vmatprep.subr.bf16.mxu0 0
      %616 = vmatpush1.bf16.msra.mxu0 0
      %617 = vmatprep.subr.bf16.mxu0 0
      %618 = vmatpush1.bf16.msra.mxu0 0
      %619 = vmatprep.subr.bf16.mxu0 0
      %620 = vmatpush1.bf16.msra.mxu0 0
      %621 = vmatprep.subr.bf16.mxu0 0
      %622 = vmatpush1.bf16.msra.mxu0 0
      %623 = vmatprep.subr.bf16.mxu0 0
      %624 = vmatpush1.bf16.msra.mxu0 0
      %625 = vmatprep.subr.bf16.mxu0 0
      %626 = vmatpush1.bf16.msra.mxu0 0
      %627 = vmatprep.subr.bf16.mxu0 0
      %628 = vmatpush1.bf16.msra.mxu0 0
      %629 = vmatprep.subr.bf16.mxu0 0
      %630 = vmatpush1.bf16.msra.mxu0 0
      %631 = vmatprep.subr.bf16.mxu0 0
      %632 = vmatpush1.bf16.msra.mxu0 0
      %633 = vmatprep.subr.bf16.mxu0 0
      %634 = vmatpush1.bf16.msra.mxu0 0
      %635 = vmatprep.subr.bf16.mxu0 0
      %636 = vmatpush1.bf16.msra.mxu0 0
      %637 = vmatprep.subr.bf16.mxu0 0
      %638 = vmatpush1.bf16.msra.mxu0 0
      %639 = vmatprep.subr.bf16.mxu0 0
      %640 = vmatpush1.bf16.msra.mxu0 0
      %641 = vmatprep.subr.bf16.mxu0 0
      %642 = vmatpush1.bf16.msra.mxu0 0
      %643 = vmatprep.subr.bf16.mxu0 0
      %644 = vmatpush1.bf16.msra.mxu0 0
      %645 = vmatprep.mubr.bf16.mxu0 0
      %646 = vmatmul.mubr.bf16.gmra.mrb[0].mxu0 %v602
      %v647 = vpop.f32.mrb[0].mxu0
      %v648 = vadd.f32 0.0, %v647
      %v649 = vpop.f32.mrb[0].mxu0
      %v650 = vpop.f32.mrb[0].mxu0
      %v651 = vadd.f32 0.0, %v650
      %v652 = vpop.f32.mrb[0].mxu0
      %653 = vmatprep.mubr.bf16.mxu0 0
      %654 = vmatmul.mubr.bf16.gmra.mrb[0].mxu0 %v605
      %v655 = vpop.f32.mrb[0].mxu0
      %v656 = vadd.f32 0.0, %v655
      %v657 = vpop.f32.mrb[0].mxu0
      %v658 = vpop.f32.mrb[0].mxu0
      %v659 = vadd.f32 0.0, %v658
      %v660 = vpop.f32.mrb[0].mxu0
      %661 = vmatprep.mubr.bf16.mxu0 0
      %662 = vmatmul.mubr.bf16.gmra.mrb[0].mxu0 %v608
      %v663 = vpop.f32.mrb[0].mxu0
      %v664 = vadd.f32 0.0, %v663
      %v665 = vpop.f32.mrb[0].mxu0
      %v666 = vpop.f32.mrb[0].mxu0
      %v667 = vadd.f32 0.0, %v666
      %v668 = vpop.f32.mrb[0].mxu0
      %669 = vmatprep.mubr.bf16.mxu0 0
      %670 = vmatmul.mubr.bf16.gmra.mrb[0].mxu0 %v611
      %v671 = vpop.f32.mrb[0].mxu0
      %v672 = vadd.f32 0.0, %v671
      %v673 = vpop.f32.mrb[0].mxu0
      %v674 = vpop.f32.mrb[0].mxu0
      %v675 = vadd.f32 0.0, %v674
      %v676 = vpop.f32.mrb[0].mxu0
      %677 = vdwg.mxu0
      %v678 = vadd.f32 %v533, %v648
      %v679 = vadd.f32 %v536, %v651
      %v680 = vadd.f32 %v541, %v656
      %v681 = vadd.f32 %v544, %v659
      %v682 = vadd.f32 %v549, %v664
      %v683 = vadd.f32 %v552, %v667
      %v684 = vadd.f32 %v557, %v672
      %v685 = vadd.f32 %v560, %v675
      %v686 = vld [vmem:[%s563] sm:$0xf]
      %v687 = vld [vmem:[%s563 + $0x4] sm:$0x1]
      %v688 = vld [vmem:[%s563 + $0x8] sm:$0xf]
      %v689 = vld [vmem:[%s563 + $0xc] sm:$0x1]
      %v690 = vld [vmem:[%s563 + $0x10] sm:$0xf]
      %v691 = vld [vmem:[%s563 + $0x14] sm:$0x1]
      %v692 = vld [vmem:[%s563 + $0x18] sm:$0xf]
      %v693 = vld [vmem:[%s563 + $0x1c] sm:$0x1]
      %v694 = vld [vmem:[%s563 + $0x20] sm:$0xf]
      %v695 = vld [vmem:[%s563 + $0x24] sm:$0x1]
      %v696 = vld [vmem:[%s563 + $0x28] sm:$0xf]
      %v697 = vld [vmem:[%s563 + $0x2c] sm:$0x1]
      %v698 = vld [vmem:[%s563 + $0x30] sm:$0xf]
      %v699 = vld [vmem:[%s563 + $0x34] sm:$0x1]
      %v700 = vld [vmem:[%s563 + $0x38] sm:$0xf]
      %v701 = vld [vmem:[%s563 + $0x3c] sm:$0x1]
      %v703 = vshrl.u32 %v686, 16
      %v705 = vrot.slane %v703, 4
      %v706 = vshll.u32 %v686, 16
      %v708 = vrot.slane %v706, 5
      %v709 = vor.u32 %v705, %v708
      %v710 = vrot.slane %v709, 4
      %v712 = vshll.u32 %v687, 16
      %v714 = vrot.slane %v712, 5
      %v715 = vsel %vm248, %v710, %v714
      %v717 = vshrl.u32 %v688, 16
      %v719 = vrot.slane %v717, 4
      %v720 = vshll.u32 %v688, 16
      %v722 = vrot.slane %v720, 5
      %v723 = vor.u32 %v719, %v722
      %v724 = vrot.slane %v723, 4
      %v726 = vshll.u32 %v689, 16
      %v728 = vrot.slane %v726, 5
      %v729 = vsel %vm248, %v724, %v728
      %v731 = vshrl.u32 %v690, 16
      %v733 = vrot.slane %v731, 4
      %v734 = vshll.u32 %v690, 16
      %v736 = vrot.slane %v734, 5
      %v737 = vor.u32 %v733, %v736
      %v738 = vrot.slane %v737, 4
      %v740 = vshll.u32 %v691, 16
      %v742 = vrot.slane %v740, 5
      %v743 = vsel %vm248, %v738, %v742
      %v745 = vshrl.u32 %v692, 16
      %v747 = vrot.slane %v745, 4
      %v748 = vshll.u32 %v692, 16
      %v750 = vrot.slane %v748, 5
      %v751 = vor.u32 %v747, %v750
      %v752 = vrot.slane %v751, 4
      %v754 = vshll.u32 %v693, 16
      %v756 = vrot.slane %v754, 5
      %v757 = vsel %vm248, %v752, %v756
      %v759 = vshrl.u32 %v694, 16
      %v761 = vrot.slane %v759, 4
      %v762 = vshll.u32 %v694, 16
      %v764 = vrot.slane %v762, 5
      %v765 = vor.u32 %v761, %v764
      %v766 = vrot.slane %v765, 4
      %v768 = vshll.u32 %v695, 16
      %v770 = vrot.slane %v768, 5
      %v771 = vsel %vm248, %v766, %v770
      %v773 = vshrl.u32 %v696, 16
      %v775 = vrot.slane %v773, 4
      %v776 = vshll.u32 %v696, 16
      %v778 = vrot.slane %v776, 5
      %v779 = vor.u32 %v775, %v778
      %v780 = vrot.slane %v779, 4
      %v782 = vshll.u32 %v697, 16
      %v784 = vrot.slane %v782, 5
      %v785 = vsel %vm248, %v780, %v784
      %v787 = vshrl.u32 %v698, 16
      %v789 = vrot.slane %v787, 4
      %v790 = vshll.u32 %v698, 16
      %v792 = vrot.slane %v790, 5
      %v793 = vor.u32 %v789, %v792
      %v794 = vrot.slane %v793, 4
      %v796 = vshll.u32 %v699, 16
      %v798 = vrot.slane %v796, 5
      %v799 = vsel %vm248, %v794, %v798
      %v801 = vshrl.u32 %v700, 16
      %v803 = vrot.slane %v801, 4
      %v804 = vshll.u32 %v700, 16
      %v806 = vrot.slane %v804, 5
      %v807 = vor.u32 %v803, %v806
      %v808 = vrot.slane %v807, 4
      %v810 = vshll.u32 %v701, 16
      %v812 = vrot.slane %v810, 5
      %v813 = vsel %vm248, %v808, %v812
      %s814 = scalar_lea.vmem %s211, 24
      %v815 = vld [vmem:[%s814] sm:$0xf]
      %v816 = vld [vmem:[%s814 + $0x4] sm:$0xf]
      %v817 = vunpack.c.l.b16 %v715
      %v818 = vunpack.c.l.b16 %v729
      %v819 = vunpack.c.l.b16 %v743
      %v820 = vunpack.c.l.b16 %v757
      %v821 = vunpack.c.l.b16 %v771
      %v822 = vunpack.c.l.b16 %v785
      %v823 = vunpack.c.l.b16 %v799
      %v824 = vunpack.c.l.b16 %v813
      %v825 = vpack.c.b16 %v818, %v817
      %v826 = vpack.c.b16 %v820, %v819
      %v827 = vpack.c.b16 %v822, %v821
      %v828 = vpack.c.b16 %v824, %v823
      %v831 = vunpack.c.l.b16 %v815
      %v832 = vunpack.c.l.b16 %v816
      %v833 = vpack.c.b16 %v832, %v831
      %v836 = vsel %vm382, %v825, 0
      %v839 = vsel %vm382, %v826, 0
      %v842 = vsel %vm382, %v827, 0
      %v845 = vsel %vm382, %v828, 0
      %847 = vmatprep.subr.bf16.mxu0 0
      %848 = vmatpush1.bf16.msra.mxu0 %v833
      %849 = vmatprep.subr.bf16.mxu0 0
      %850 = vmatpush1.bf16.msra.mxu0 0
      %851 = vmatprep.subr.bf16.mxu0 0
      %852 = vmatpush1.bf16.msra.mxu0 0
      %853 = vmatprep.subr.bf16.mxu0 0
      %854 = vmatpush1.bf16.msra.mxu0 0
      %855 = vmatprep.subr.bf16.mxu0 0
      %856 = vmatpush1.bf16.msra.mxu0 0
      %857 = vmatprep.subr.bf16.mxu0 0
      %858 = vmatpush1.bf16.msra.mxu0 0
      %859 = vmatprep.subr.bf16.mxu0 0
      %860 = vmatpush1.bf16.msra.mxu0 0
      %861 = vmatprep.subr.bf16.mxu0 0
      %862 = vmatpush1.bf16.msra.mxu0 0
      %863 = vmatprep.subr.bf16.mxu0 0
      %864 = vmatpush1.bf16.msra.mxu0 0
      %865 = vmatprep.subr.bf16.mxu0 0
      %866 = vmatpush1.bf16.msra.mxu0 0
      %867 = vmatprep.subr.bf16.mxu0 0
      %868 = vmatpush1.bf16.msra.mxu0 0
      %869 = vmatprep.subr.bf16.mxu0 0
      %870 = vmatpush1.bf16.msra.mxu0 0
      %871 = vmatprep.subr.bf16.mxu0 0
      %872 = vmatpush1.bf16.msra.mxu0 0
      %873 = vmatprep.subr.bf16.mxu0 0
      %874 = vmatpush1.bf16.msra.mxu0 0
      %875 = vmatprep.subr.bf16.mxu0 0
      %876 = vmatpush1.bf16.msra.mxu0 0
      %877 = vmatprep.subr.bf16.mxu0 0
      %878 = vmatpush1.bf16.msra.mxu0 0
      %879 = vmatprep.mubr.bf16.mxu0 0
      %880 = vmatmul.mubr.bf16.gmra.mrb[0].mxu0 %v836
      %v881 = vpop.f32.mrb[0].mxu0
      %v882 = vadd.f32 0.0, %v881
      %v883 = vpop.f32.mrb[0].mxu0
      %v884 = vpop.f32.mrb[0].mxu0
      %v885 = vadd.f32 0.0, %v884
      %v886 = vpop.f32.mrb[0].mxu0
      %887 = vmatprep.mubr.bf16.mxu0 0
      %888 = vmatmul.mubr.bf16.gmra.mrb[0].mxu0 %v839
      %v889 = vpop.f32.mrb[0].mxu0
      %v890 = vadd.f32 0.0, %v889
      %v891 = vpop.f32.mrb[0].mxu0
      %v892 = vpop.f32.mrb[0].mxu0
      %v893 = vadd.f32 0.0, %v892
      %v894 = vpop.f32.mrb[0].mxu0
      %895 = vmatprep.mubr.bf16.mxu0 0
      %896 = vmatmul.mubr.bf16.gmra.mrb[0].mxu0 %v842
      %v897 = vpop.f32.mrb[0].mxu0
      %v898 = vadd.f32 0.0, %v897
      %v899 = vpop.f32.mrb[0].mxu0
      %v900 = vpop.f32.mrb[0].mxu0
      %v901 = vadd.f32 0.0, %v900
      %v902 = vpop.f32.mrb[0].mxu0
      %903 = vmatprep.mubr.bf16.mxu0 0
      %904 = vmatmul.mubr.bf16.gmra.mrb[0].mxu0 %v845
      %v905 = vpop.f32.mrb[0].mxu0
      %v906 = vadd.f32 0.0, %v905
      %v907 = vpop.f32.mrb[0].mxu0
      %v908 = vpop.f32.mrb[0].mxu0
      %v909 = vadd.f32 0.0, %v908
      %v910 = vpop.f32.mrb[0].mxu0
      %911 = vdwg.mxu0
      %v912 = vadd.f32 %v678, %v882
      %v913 = vadd.f32 %v679, %v885
      %v914 = vadd.f32 %v680, %v890
      %v915 = vadd.f32 %v681, %v893
      %v916 = vadd.f32 %v682, %v898
      %v917 = vadd.f32 %v683, %v901
      %v918 = vadd.f32 %v684, %v906
      %v919 = vadd.f32 %v685, %v909
      %920 = vst [vmem:[%s219] sm:$0xff] %v912
      %921 = vst [vmem:[%s219 + $0x8] sm:$0xff] %v913
      %922 = vst [vmem:[%s219 + $0x10] sm:$0xff] %v914
      %923 = vst [vmem:[%s219 + $0x18] sm:$0xff] %v915
      %924 = vst [vmem:[%s219 + $0x20] sm:$0xff] %v916
      %925 = vst [vmem:[%s219 + $0x28] sm:$0xff] %v917
      %926 = vst [vmem:[%s219 + $0x30] sm:$0xff] %v918
      %927 = vst [vmem:[%s219 + $0x38] sm:$0xff] %v919
      %v928 = vadd.f32 %v912, %v913
      %v929 = vadd.f32 %v928, %v914
      %v930 = vadd.f32 %v929, %v915
      %v931 = vadd.f32 %v930, %v916
      %v932 = vadd.f32 %v931, %v917
      %v933 = vadd.f32 %v932, %v918
      %v934 = vadd.f32 %v933, %v919
      %v935 = vrot.slane %v934, 4
      %v936 = vadd.f32 %v934, %v935
      %v937 = vrot.slane %v936, 2
      %v938 = vadd.f32 %v936, %v937
      %v939 = vrot.slane %v938, 1
      %v940 = vadd.f32 %v938, %v939
      %941 = vst [vmem:[%s226] sm:$0x1] %v940
      %v942 = vmul.f32 %v912, %v912
      %v943 = vmul.f32 %v913, %v913
      %v944 = vmul.f32 %v914, %v914
      %v945 = vmul.f32 %v915, %v915
      %v946 = vmul.f32 %v916, %v916
      %v947 = vmul.f32 %v917, %v917
      %v948 = vmul.f32 %v918, %v918
      %v949 = vmul.f32 %v919, %v919
      %v950 = vadd.f32 %v942, %v943
      %v951 = vadd.f32 %v950, %v944
      %v952 = vadd.f32 %v951, %v945
      %v953 = vadd.f32 %v952, %v946
      %v954 = vadd.f32 %v953, %v947
      %v955 = vadd.f32 %v954, %v948
      %v956 = vadd.f32 %v955, %v949
      %v957 = vrot.slane %v956, 4
      %v958 = vadd.f32 %v956, %v957
      %v959 = vrot.slane %v958, 2
      %v960 = vadd.f32 %v958, %v959
      %v961 = vrot.slane %v960, 1
      %v962 = vadd.f32 %v960, %v961
      %963 = vst [vmem:[%s226 + $0x1] sm:$0x1] %v962
      %p964 = scmp.lt.s32.totalorder %s19, 1
      %s965 = scalar_select %p964, %s19, 1
      %p966 = scmp.lt.s32.totalorder %s20, 0
      %s967 = scalar_select %p966, %s20, 0
      %s968 = smul.addr %s965, 8
      %s969 = sadd.s32 %s967, %s968
      %s970 = smul.addr %s969, 8
      %s971 = scalar_lea.vmem %s2, %s970
      %p972 = scmp.lt.s32.totalorder %s19, 1
      %s973 = scalar_select %p972, %s19, 1
      %p974 = scmp.lt.s32.totalorder %s20, 0
      %s975 = scalar_select %p974, %s20, 0
      %s976 = sadd.s32 %s975, %s973
      %s977 = smul.addr %s976, 2
      %s978 = scalar_lea.vmem %s3, %s977
      // Predicated region
      $region29: #{basic_block_forward.5} parent=27 // pred_check
        %p979 = pneg %p99
      $region30: #{basic_block_forward.5} parent=27 // pred_check_branch
        %981 = sbr.rel (%p979) target = $region32
      $region31: #{basic_block_forward.5} parent=27 // pred_region
        _
      $region32: #{basic_block_forward.5} parent=27 // pred_fallthru
        _
      // Predicated region
      $region33: #{basic_block_forward.5} parent=27 // pred_check
        %p982 = pneg %p127
      $region34: #{basic_block_forward.5} parent=27 // pred_check_branch
        %984 = sbr.rel (%p982) target = $region36
      $region35: #{basic_block_forward.5} parent=27 // pred_region
        _
      $region36: #{basic_block_forward.5} parent=27 // pred_fallthru
        _
    $region28: #{basic_block_forward.5} parent=5 // pred_fallthru
      _
    %p985 = scmp.le.s32.totalorder 2, %s10
    // Predicated region
    $region37: #{basic_block_forward.5} parent=5 // pred_check
      %p986 = pneg %p985
    $region38: #{basic_block_forward.5} parent=5 // pred_check_branch
      %988 = sbr.rel (%p986) target = $region40
    $region39: #{basic_block_forward.5} parent=5 // pred_region
      %s989 = ssub.s32 %s10, 2
      // Predicated region
      $region41: #{basic_block_forward.5} parent=39 // pred_check
        %p990 = pneg %p105
      $region42: #{basic_block_forward.5} parent=39 // pred_check_branch
        %992 = sbr.rel (%p990) target = $region44
      $region43: #{basic_block_forward.5} parent=39 // pred_region
        %p993 = scmp.lt.s32.totalorder %s21, 1
        %s994 = scalar_select %p993, %s21, 1
        %p995 = scmp.lt.s32.totalorder %s22, 0
        %s996 = scalar_select %p995, %s22, 0
        %s997 = smul.addr %s994, 8
        %s998 = sadd.s32 %s996, %s997
        %s999 = smul.addr %s998, 8
        %s1000 = scalar_lea.vmem %s2, %s999
      $region44: #{basic_block_forward.5} parent=39 // pred_fallthru
        _
      // Predicated region
      $region45: #{basic_block_forward.5} parent=39 // pred_check
        %p1001 = pneg %p133
      $region46: #{basic_block_forward.5} parent=39 // pred_check_branch
        %1003 = sbr.rel (%p1001) target = $region48
      $region47: #{basic_block_forward.5} parent=39 // pred_region
        %p1004 = scmp.lt.s32.totalorder %s21, 1
        %s1005 = scalar_select %p1004, %s21, 1
        %p1006 = scmp.lt.s32.totalorder %s22, 0
        %s1007 = scalar_select %p1006, %s22, 0
        %s1008 = sadd.s32 %s1007, %s1005
        %s1009 = smul.addr %s1008, 2
        %s1010 = scalar_lea.vmem %s3, %s1009
      $region48: #{basic_block_forward.5} parent=39 // pred_fallthru
        _
    $region40: #{basic_block_forward.5} parent=5 // pred_fallthru
      _
  $region6: #{basic_block_forward.5} parent=0 // loop_footer
    %s14 = sadd.s32 1, %s10
  $region7: #{basic_block_forward.5} parent=0 // loop_footer_branch
    %9 = sbr.rel target = $region3
  $region8: #{basic_block_forward.5} parent=0 // loop_exit
    _

// kernel: basic_block_forward.9
$region0: #{basic_block_forward.9}
  #allocation0 [shape = 'u32[]', space=smem, size = 0x4, offset = 0x4, fixed_abs, tag = 'smem constant byte address 0x4 - core index']
  #allocation1 [shape = 'u32[144,128]{1,0:T(1,128)}', space=vmem, size = 0x12000, scoped, tag = 'internal scratch']
  %s0 = inlined_call_operand.vmem [shape: f32[2,64,128], index: 0, kind: input, shape index: {}]
  %s1 = inlined_call_operand.vmem [shape: f32[1,128], index: 1, kind: input, shape index: {}]
  %s2 = inlined_call_operand.vmem [shape: f32[1,128], index: 2, kind: input, shape index: {}]
  %s3 = inlined_call_operand.vmem [shape: f32[2,64,128], index: 3, kind: input, shape index: {}]
  %s4 = inlined_call_operand.vmem [shape: f32[1,128], index: 4, kind: input, shape index: {}]
  %s5 = inlined_call_operand.vmem [shape: f32[1,128], index: 5, kind: input, shape index: {}]
  %s6 = inlined_call_operand.vmem [shape: f32[2,64,128], index: 6, kind: output, shape index: {}]
  %s7 = sld [smem:[#allocation0]]
  $region57: #{basic_block_forward.9} parent=0
    _
  %s9 = ssub.s32 1, %s7
  %s10 = scalar_select 0, %s9, %s7
  loop: start=0, step=1, limit=4
  $region2: #{basic_block_forward.9} parent=0 // loop_pre_header
    _
  $region3: #{basic_block_forward.9} parent=0 // loop_header
    %s12 = sphi 0, %s16
    %p13 = scmp.ge.s32.totalorder %s12, 4
    %s19 = sphi 0, %s31
    %s20 = sphi 0, %s27
    %s21 = sphi 0, %s19
    %s22 = sphi 0, %s20
    %s23 = sphi 0, %s21
    %s24 = sphi 0, %s22
    %s36 = sphi 0, %s38
    %s39 = sphi 0, %s36
    %s40 = sphi 0, %s39
    %s56 = sphi 0, %s40
    %s62 = sphi 0, %s64
    %s65 = sphi 0, %s62
    %s66 = sphi 0, %s65
    %s82 = sphi 0, %s66
    %s88 = sphi 0, %s90
    %s91 = sphi 0, %s88
    %s92 = sphi 0, %s91
    %s108 = sphi 0, %s92
    %s116 = sphi 0, %s118
    %s119 = sphi 0, %s116
    %s120 = sphi 0, %s119
    %s136 = sphi 0, %s120
    %s142 = sphi 0, %s144
    %s145 = sphi 0, %s142
    %s146 = sphi 0, %s145
    %s162 = sphi 0, %s146
    %s168 = sphi 0, %s170
    %s171 = sphi 0, %s168
    %s172 = sphi 0, %s171
    %s188 = sphi 0, %s172
    %s196 = sphi 0, %s198
    %s199 = sphi 0, %s196
    %s200 = sphi 0, %s199
    %s216 = sphi 0, %s200
  $region4: #{basic_block_forward.9} parent=0 // loop_header_branch
    %15 = sbr.rel (%p13) target = $region8
  $region5: #{basic_block_forward.9} parent=0 // loop_body
    %s17 = ssub.s32 %s12, 1
    %s18 = ssub.s32 %s12, 2
    %s25 = sadd.s32 1, %s20
    %p26 = scmp.ge.s32.totalorder %s25, 1
    %s27 = scalar_select %p26, 0, %s25
    %s28 = sadd.s32 1, %s19
    %s29 = scalar_select %p26, %s28, %s19
    %p30 = scmp.ge.s32.totalorder %s29, 2
    %s31 = scalar_select %p30, 0, %s29
    %s32 = ssub.s32 %s19, %s31
    %s33 = ssub.s32 %s20, %s27
    %s34 = sor.u32 %s32, %s33
    %p35 = scmp.eq.s32.totalorder %s34, 0
    %s37 = sadd.s32 %s36, 1
    %s38 = scalar_select %p35, %s36, %s37
    %p41 = pneg %p35
    %p42 = scmp.eq.s32.totalorder %s12, 1
    %p43 = por %p41, %p42
    %p44 = scmp.ne.s32.totalorder %s36, %s39
    %p45 = scmp.eq.s32.totalorder %s12, 0
    %p46 = por %p44, %p45
    %p47 = scmp.ne.s32.totalorder %s36, %s39
    %p48 = scmp.eq.s32.totalorder %s17, 1
    %p49 = por %p47, %p48
    %p50 = scmp.ne.s32.totalorder %s39, %s40
    %p51 = scmp.eq.s32.totalorder %s17, 0
    %p52 = por %p50, %p51
    %p53 = scmp.ne.s32.totalorder %s39, %s40
    %p54 = scmp.eq.s32.totalorder %s18, 1
    %p55 = por %p53, %p54
    %p57 = scmp.ne.s32.totalorder %s40, %s56
    %p58 = scmp.eq.s32.totalorder %s18, 0
    %p59 = por %p57, %p58
    %s60 = ssub.s32 %s20, %s27
    %p61 = scmp.eq.s32.totalorder %s60, 0
    %s63 = sadd.s32 %s62, 1
    %s64 = scalar_select %p61, %s62, %s63
    %p67 = pneg %p61
    %p68 = scmp.eq.s32.totalorder %s12, 1
    %p69 = por %p67, %p68
    %p70 = scmp.ne.s32.totalorder %s62, %s65
    %p71 = scmp.eq.s32.totalorder %s12, 0
    %p72 = por %p70, %p71
    %p73 = scmp.ne.s32.totalorder %s62, %s65
    %p74 = scmp.eq.s32.totalorder %s17, 1
    %p75 = por %p73, %p74
    %p76 = scmp.ne.s32.totalorder %s65, %s66
    %p77 = scmp.eq.s32.totalorder %s17, 0
    %p78 = por %p76, %p77
    %p79 = scmp.ne.s32.totalorder %s65, %s66
    %p80 = scmp.eq.s32.totalorder %s18, 1
    %p81 = por %p79, %p80
    %p83 = scmp.ne.s32.totalorder %s66, %s82
    %p84 = scmp.eq.s32.totalorder %s18, 0
    %p85 = por %p83, %p84
    %s86 = ssub.s32 %s20, %s27
    %p87 = scmp.eq.s32.totalorder %s86, 0
    %s89 = sadd.s32 %s88, 1
    %s90 = scalar_select %p87, %s88, %s89
    %p93 = pneg %p87
    %p94 = scmp.eq.s32.totalorder %s12, 1
    %p95 = por %p93, %p94
    %p96 = scmp.ne.s32.totalorder %s88, %s91
    %p97 = scmp.eq.s32.totalorder %s12, 0
    %p98 = por %p96, %p97
    %p99 = scmp.ne.s32.totalorder %s88, %s91
    %p100 = scmp.eq.s32.totalorder %s17, 1
    %p101 = por %p99, %p100
    %p102 = scmp.ne.s32.totalorder %s91, %s92
    %p103 = scmp.eq.s32.totalorder %s17, 0
    %p104 = por %p102, %p103
    %p105 = scmp.ne.s32.totalorder %s91, %s92
    %p106 = scmp.eq.s32.totalorder %s18, 1
    %p107 = por %p105, %p106
    %p109 = scmp.ne.s32.totalorder %s92, %s108
    %p110 = scmp.eq.s32.totalorder %s18, 0
    %p111 = por %p109, %p110
    %s112 = ssub.s32 %s19, %s31
    %s113 = ssub.s32 %s20, %s27
    %s114 = sor.u32 %s112, %s113
    %p115 = scmp.eq.s32.totalorder %s114, 0
    %s117 = sadd.s32 %s116, 1
    %s118 = scalar_select %p115, %s116, %s117
    %p121 = pneg %p115
    %p122 = scmp.eq.s32.totalorder %s12, 1
    %p123 = por %p121, %p122
    %p124 = scmp.ne.s32.totalorder %s116, %s119
    %p125 = scmp.eq.s32.totalorder %s12, 0
    %p126 = por %p124, %p125
    %p127 = scmp.ne.s32.totalorder %s116, %s119
    %p128 = scmp.eq.s32.totalorder %s17, 1
    %p129 = por %p127, %p128
    %p130 = scmp.ne.s32.totalorder %s119, %s120
    %p131 = scmp.eq.s32.totalorder %s17, 0
    %p132 = por %p130, %p131
    %p133 = scmp.ne.s32.totalorder %s119, %s120
    %p134 = scmp.eq.s32.totalorder %s18, 1
    %p135 = por %p133, %p134
    %p137 = scmp.ne.s32.totalorder %s120, %s136
    %p138 = scmp.eq.s32.totalorder %s18, 0
    %p139 = por %p137, %p138
    %s140 = ssub.s32 %s20, %s27
    %p141 = scmp.eq.s32.totalorder %s140, 0
    %s143 = sadd.s32 %s142, 1
    %s144 = scalar_select %p141, %s142, %s143
    %p147 = pneg %p141
    %p148 = scmp.eq.s32.totalorder %s12, 1
    %p149 = por %p147, %p148
    %p150 = scmp.ne.s32.totalorder %s142, %s145
    %p151 = scmp.eq.s32.totalorder %s12, 0
    %p152 = por %p150, %p151
    %p153 = scmp.ne.s32.totalorder %s142, %s145
    %p154 = scmp.eq.s32.totalorder %s17, 1
    %p155 = por %p153, %p154
    %p156 = scmp.ne.s32.totalorder %s145, %s146
    %p157 = scmp.eq.s32.totalorder %s17, 0
    %p158 = por %p156, %p157
    %p159 = scmp.ne.s32.totalorder %s145, %s146
    %p160 = scmp.eq.s32.totalorder %s18, 1
    %p161 = por %p159, %p160
    %p163 = scmp.ne.s32.totalorder %s146, %s162
    %p164 = scmp.eq.s32.totalorder %s18, 0
    %p165 = por %p163, %p164
    %s166 = ssub.s32 %s20, %s27
    %p167 = scmp.eq.s32.totalorder %s166, 0
    %s169 = sadd.s32 %s168, 1
    %s170 = scalar_select %p167, %s168, %s169
    %p173 = pneg %p167
    %p174 = scmp.eq.s32.totalorder %s12, 1
    %p175 = por %p173, %p174
    %p176 = scmp.ne.s32.totalorder %s168, %s171
    %p177 = scmp.eq.s32.totalorder %s12, 0
    %p178 = por %p176, %p177
    %p179 = scmp.ne.s32.totalorder %s168, %s171
    %p180 = scmp.eq.s32.totalorder %s17, 1
    %p181 = por %p179, %p180
    %p182 = scmp.ne.s32.totalorder %s171, %s172
    %p183 = scmp.eq.s32.totalorder %s17, 0
    %p184 = por %p182, %p183
    %p185 = scmp.ne.s32.totalorder %s171, %s172
    %p186 = scmp.eq.s32.totalorder %s18, 1
    %p187 = por %p185, %p186
    %p189 = scmp.ne.s32.totalorder %s172, %s188
    %p190 = scmp.eq.s32.totalorder %s18, 0
    %p191 = por %p189, %p190
    %s192 = ssub.s32 %s19, %s31
    %s193 = ssub.s32 %s20, %s27
    %s194 = sor.u32 %s192, %s193
    %p195 = scmp.eq.s32.totalorder %s194, 0
    %s197 = sadd.s32 %s196, 1
    %s198 = scalar_select %p195, %s196, %s197
    %p201 = pneg %p195
    %p202 = scmp.eq.s32.totalorder %s12, 1
    %p203 = por %p201, %p202
    %p204 = scmp.ne.s32.totalorder %s196, %s199
    %p205 = scmp.eq.s32.totalorder %s12, 0
    %p206 = por %p204, %p205
    %p207 = scmp.ne.s32.totalorder %s196, %s199
    %p208 = scmp.eq.s32.totalorder %s17, 1
    %p209 = por %p207, %p208
    %p210 = scmp.ne.s32.totalorder %s199, %s200
    %p211 = scmp.eq.s32.totalorder %s17, 0
    %p212 = por %p210, %p211
    %p213 = scmp.ne.s32.totalorder %s199, %s200
    %p214 = scmp.eq.s32.totalorder %s18, 1
    %p215 = por %p213, %p214
    %p217 = scmp.ne.s32.totalorder %s200, %s216
    %p218 = scmp.eq.s32.totalorder %s18, 0
    %p219 = por %p217, %p218
    %p220 = scmp.le.s32.totalorder 1, %s12
    %p221 = scmp.lt.s32.totalorder %s12, 3
    %p222 = pnand %p220, %p221
    %p223 = pneg %p222
    // Predicated region
    $region9: #{basic_block_forward.9} parent=5 // pred_check
      _
    $region10: #{basic_block_forward.9} parent=5 // pred_check_branch
      %225 = sbr.rel (%p222) target = $region12
    $region11: #{basic_block_forward.9} parent=5 // pred_region
      %s226 = ssub.s32 %s12, 1
      // Predicated region
      $region13: #{basic_block_forward.9} parent=11 // pred_check
        %p227 = pneg %p78
      $region14: #{basic_block_forward.9} parent=11 // pred_check_branch
        %229 = sbr.rel (%p227) target = $region16
      $region15: #{basic_block_forward.9} parent=11 // pred_region
        %p230 = scmp.lt.s32.totalorder %s22, 0
        %s231 = scalar_select %p230, %s22, 0
        %s232 = scalar_lea.vmem %s1, %s231
      $region16: #{basic_block_forward.9} parent=11 // pred_fallthru
        _
      // Predicated region
      $region17: #{basic_block_forward.9} parent=11 // pred_check
        %p233 = pneg %p104
      $region18: #{basic_block_forward.9} parent=11 // pred_check_branch
        %235 = sbr.rel (%p233) target = $region20
      $region19: #{basic_block_forward.9} parent=11 // pred_region
        %p236 = scmp.lt.s32.totalorder %s22, 0
        %s237 = scalar_select %p236, %s22, 0
        %s238 = scalar_lea.vmem %s2, %s237
      $region20: #{basic_block_forward.9} parent=11 // pred_fallthru
        _
      // Predicated region
      $region21: #{basic_block_forward.9} parent=11 // pred_check
        %p239 = pneg %p158
      $region22: #{basic_block_forward.9} parent=11 // pred_check_branch
        %241 = sbr.rel (%p239) target = $region24
      $region23: #{basic_block_forward.9} parent=11 // pred_region
        %p242 = scmp.lt.s32.totalorder %s22, 0
        %s243 = scalar_select %p242, %s22, 0
        %s244 = scalar_lea.vmem %s4, %s243
      $region24: #{basic_block_forward.9} parent=11 // pred_fallthru
        _
      // Predicated region
      $region25: #{basic_block_forward.9} parent=11 // pred_check
        %p245 = pneg %p184
      $region26: #{basic_block_forward.9} parent=11 // pred_check_branch
        %247 = sbr.rel (%p245) target = $region28
      $region27: #{basic_block_forward.9} parent=11 // pred_region
        %p248 = scmp.lt.s32.totalorder %s22, 0
        %s249 = scalar_select %p248, %s22, 0
        %s250 = scalar_lea.vmem %s5, %s249
      $region28: #{basic_block_forward.9} parent=11 // pred_fallthru
        _
    $region12: #{basic_block_forward.9} parent=5 // pred_fallthru
      _
    %p251 = scmp.lt.s32.totalorder %s12, 2
    // Predicated region
    $region29: #{basic_block_forward.9} parent=5 // pred_check
      %p252 = pneg %p251
    $region30: #{basic_block_forward.9} parent=5 // pred_check_branch
      %254 = sbr.rel (%p252) target = $region32
    $region31: #{basic_block_forward.9} parent=5 // pred_region
      // Predicated region
      $region33: #{basic_block_forward.9} parent=31 // pred_check
        %p255 = pneg %p46
      $region34: #{basic_block_forward.9} parent=31 // pred_check_branch
        %257 = sbr.rel (%p255) target = $region36
      $region35: #{basic_block_forward.9} parent=31 // pred_region
        %p258 = scmp.lt.s32.totalorder %s19, 1
        %s259 = scalar_select %p258, %s19, 1
        %p260 = scmp.lt.s32.totalorder %s20, 0
        %s261 = scalar_select %p260, %s20, 0
        %s262 = smul.addr %s259, 8
        %s263 = sadd.s32 %s261, %s262
        %s264 = smul.addr %s263, 8
        %s265 = scalar_lea.vmem %s0, %s264
      $region36: #{basic_block_forward.9} parent=31 // pred_fallthru
        _
      // Predicated region
      $region37: #{basic_block_forward.9} parent=31 // pred_check
        %p266 = pneg %p126
      $region38: #{basic_block_forward.9} parent=31 // pred_check_branch
        %268 = sbr.rel (%p266) target = $region40
      $region39: #{basic_block_forward.9} parent=31 // pred_region
        %p269 = scmp.lt.s32.totalorder %s19, 1
        %s270 = scalar_select %p269, %s19, 1
        %p271 = scmp.lt.s32.totalorder %s20, 0
        %s272 = scalar_select %p271, %s20, 0
        %s273 = smul.addr %s270, 8
        %s274 = sadd.s32 %s272, %s273
        %s275 = smul.addr %s274, 8
        %s276 = scalar_lea.vmem %s3, %s275
      $region40: #{basic_block_forward.9} parent=31 // pred_fallthru
        _
    $region32: #{basic_block_forward.9} parent=5 // pred_fallthru
      _
    %p277 = scmp.le.s32.totalorder 1, %s12
    %p278 = scmp.lt.s32.totalorder %s12, 3
    %p279 = pnand %p277, %p278
    %p280 = pneg %p279
    // Predicated region
    $region41: #{basic_block_forward.9} parent=5 // pred_check
      _
    $region42: #{basic_block_forward.9} parent=5 // pred_check_branch
      %282 = sbr.rel (%p279) target = $region44
    $region43: #{basic_block_forward.9} parent=5 // pred_region
      %s283 = ssub.s32 %s12, 1
      %p284 = scmp.lt.s32.totalorder %s21, 1
      %s285 = scalar_select %p284, %s21, 1
      %p286 = scmp.lt.s32.totalorder %s22, 0
      %s287 = scalar_select %p286, %s22, 0
      %s288 = smul.addr %s285, 8
      %s289 = sadd.s32 %s287, %s288
      %s290 = smul.addr %s289, 8
      %s291 = scalar_lea.vmem %s0, %s290
      %p292 = pneg %p52
      %p293 = pneg %p49
      %p294 = scmp.lt.s32.totalorder %s22, 0
      %s295 = scalar_select %p294, %s22, 0
      %s296 = scalar_lea.vmem %s1, %s295
      %p297 = pneg %p78
      %p298 = pneg %p75
      %p299 = scmp.lt.s32.totalorder %s22, 0
      %s300 = scalar_select %p299, %s22, 0
      %s301 = scalar_lea.vmem %s2, %s300
      %p302 = pneg %p104
      %p303 = pneg %p101
      %p304 = scmp.lt.s32.totalorder %s21, 1
      %s305 = scalar_select %p304, %s21, 1
      %p306 = scmp.lt.s32.totalorder %s22, 0
      %s307 = scalar_select %p306, %s22, 0
      %s308 = smul.addr %s305, 8
      %s309 = sadd.s32 %s307, %s308
      %s310 = smul.addr %s309, 8
      %s311 = scalar_lea.vmem %s3, %s310
      %p312 = pneg %p132
      %p313 = pneg %p129
      %p314 = scmp.lt.s32.totalorder %s22, 0
      %s315 = scalar_select %p314, %s22, 0
      %s316 = scalar_lea.vmem %s4, %s315
      %p317 = pneg %p158
      %p318 = pneg %p155
      %p319 = scmp.lt.s32.totalorder %s22, 0
      %s320 = scalar_select %p319, %s22, 0
      %s321 = scalar_lea.vmem %s5, %s320
      %p322 = pneg %p184
      %p323 = pneg %p181
      %p324 = pneg %p212
      %p325 = pneg %p209
      %p326 = scmp.lt.s32.totalorder %s21, 1
      %s327 = scalar_select %p326, %s21, 1
      %p328 = scmp.lt.s32.totalorder %s22, 0
      %s329 = scalar_select %p328, %s22, 0
      %s330 = smul.addr %s327, 8
      %s331 = sadd.s32 %s329, %s330
      %s332 = smul.addr %s331, 8
      %s333 = scalar_lea.vmem %s6, %s332
      %p334 = scmp.lt.s32.totalorder %s21, 1
      %s335 = scalar_select %p334, %s21, 1
      %p336 = scmp.lt.s32.totalorder %s22, 0
      %s337 = scalar_select %p336, %s22, 0
      %s338 = smul.addr %s335, 8
      %s339 = sadd.s32 %s337, %s338
      %s340 = smul.addr %s339, 8
      %s341 = scalar_lea.vmem %s0, %s340
      %p342 = scmp.lt.s32.totalorder %s22, 0
      %s343 = scalar_select %p342, %s22, 0
      %s344 = scalar_lea.vmem %s1, %s343
      %p345 = scmp.lt.s32.totalorder %s22, 0
      %s346 = scalar_select %p345, %s22, 0
      %s347 = scalar_lea.vmem %s2, %s346
      %p348 = scmp.lt.s32.totalorder %s21, 1
      %s349 = scalar_select %p348, %s21, 1
      %p350 = scmp.lt.s32.totalorder %s22, 0
      %s351 = scalar_select %p350, %s22, 0
      %s352 = smul.addr %s349, 8
      %s353 = sadd.s32 %s351, %s352
      %s354 = smul.addr %s353, 8
      %s355 = scalar_lea.vmem %s3, %s354
      %p356 = scmp.lt.s32.totalorder %s22, 0
      %s357 = scalar_select %p356, %s22, 0
      %s358 = scalar_lea.vmem %s4, %s357
      %p359 = scmp.lt.s32.totalorder %s22, 0
      %s360 = scalar_select %p359, %s22, 0
      %s361 = scalar_lea.vmem %s5, %s360
      %p362 = scmp.lt.s32.totalorder %s21, 1
      %s363 = scalar_select %p362, %s21, 1
      %p364 = scmp.lt.s32.totalorder %s22, 0
      %s365 = scalar_select %p364, %s22, 0
      %s366 = smul.addr %s363, 8
      %s367 = sadd.s32 %s365, %s366
      %s368 = smul.addr %s367, 8
      %s369 = scalar_lea.vmem %s6, %s368
      %v370 = vld [vmem:[%s341] sm:$0xff]
      %v371 = vld [vmem:[%s341 + $0x8] sm:$0xff]
      %v372 = vld [vmem:[%s341 + $0x10] sm:$0xff]
      %v373 = vld [vmem:[%s341 + $0x18] sm:$0xff]
      %v374 = vld [vmem:[%s341 + $0x20] sm:$0xff]
      %v375 = vld [vmem:[%s341 + $0x28] sm:$0xff]
      %v376 = vld [vmem:[%s341 + $0x30] sm:$0xff]
      %v377 = vld [vmem:[%s341 + $0x38] sm:$0xff]
      %v378 = vld [vmem:[%s344] sm:$0x1]
      %v380 = vlaneseq
      %v381 = vshrl.u32 %v380, 7
      %v382 = vsub.s32 0, %v381
      %v383 = vrot.slane %v378, %v382
      %v385 = vmul.f32 %v370, %v383
      %v386 = vmul.f32 %v371, %v383
      %v387 = vmul.f32 %v372, %v383
      %v388 = vmul.f32 %v373, %v383
      %v389 = vmul.f32 %v374, %v383
      %v390 = vmul.f32 %v375, %v383
      %v391 = vmul.f32 %v376, %v383
      %v392 = vmul.f32 %v377, %v383
      %v393 = vld [vmem:[%s347] sm:$0x1]
      %v395 = vlaneseq
      %v396 = vshrl.u32 %v395, 7
      %v397 = vsub.s32 0, %v396
      %v398 = vrot.slane %v393, %v397
      %v400 = vadd.f32 %v385, %v398
      %v401 = vadd.f32 %v386, %v398
      %v402 = vadd.f32 %v387, %v398
      %v403 = vadd.f32 %v388, %v398
      %v404 = vadd.f32 %v389, %v398
      %v405 = vadd.f32 %v390, %v398
      %v406 = vadd.f32 %v391, %v398
      %v407 = vadd.f32 %v392, %v398
      %v408 = vld [vmem:[%s355] sm:$0xff]
      %v409 = vld [vmem:[%s355 + $0x8] sm:$0xff]
      %v410 = vld [vmem:[%s355 + $0x10] sm:$0xff]
      %v411 = vld [vmem:[%s355 + $0x18] sm:$0xff]
      %v412 = vld [vmem:[%s355 + $0x20] sm:$0xff]
      %v413 = vld [vmem:[%s355 + $0x28] sm:$0xff]
      %v414 = vld [vmem:[%s355 + $0x30] sm:$0xff]
      %v415 = vld [vmem:[%s355 + $0x38] sm:$0xff]
      %v416 = vld [vmem:[%s358] sm:$0x1]
      %v418 = vlaneseq
      %v419 = vshrl.u32 %v418, 7
      %v420 = vsub.s32 0, %v419
      %v421 = vrot.slane %v416, %v420
      %v423 = vmul.f32 %v408, %v421
      %v424 = vmul.f32 %v409, %v421
      %v425 = vmul.f32 %v410, %v421
      %v426 = vmul.f32 %v411, %v421
      %v427 = vmul.f32 %v412, %v421
      %v428 = vmul.f32 %v413, %v421
      %v429 = vmul.f32 %v414, %v421
      %v430 = vmul.f32 %v415, %v421
      %v431 = vld [vmem:[%s361] sm:$0x1]
      %v433 = vlaneseq
      %v434 = vshrl.u32 %v433, 7
      %v435 = vsub.s32 0, %v434
      %v436 = vrot.slane %v431, %v435
      %v438 = vadd.f32 %v423, %v436
      %v439 = vadd.f32 %v424, %v436
      %v440 = vadd.f32 %v425, %v436
      %v441 = vadd.f32 %v426, %v436
      %v442 = vadd.f32 %v427, %v436
      %v443 = vadd.f32 %v428, %v436
      %v444 = vadd.f32 %v429, %v436
      %v445 = vadd.f32 %v430, %v436
      %v446 = vadd.f32 %v400, %v438
      %v447 = vadd.f32 %v401, %v439
      %v448 = vadd.f32 %v402, %v440
      %v449 = vadd.f32 %v403, %v441
      %v450 = vadd.f32 %v404, %v442
      %v451 = vadd.f32 %v405, %v443
      %v452 = vadd.f32 %v406, %v444
      %v453 = vadd.f32 %v407, %v445
      %vm454 = vcmp.ge.f32.partialorder %v446, 0.0
      %vm455 = vcmp.ge.f32.partialorder %v447, 0.0
      %vm456 = vcmp.ge.f32.partialorder %v448, 0.0
      %vm457 = vcmp.ge.f32.partialorder %v449, 0.0
      %vm458 = vcmp.ge.f32.partialorder %v450, 0.0
      %vm459 = vcmp.ge.f32.partialorder %v451, 0.0
      %vm460 = vcmp.ge.f32.partialorder %v452, 0.0
      %vm461 = vcmp.ge.f32.partialorder %v453, 0.0
      %v462 = vmul.f32 %v446, 0.01
      %v463 = vmul.f32 %v447, 0.01
      %v464 = vmul.f32 %v448, 0.01
      %v465 = vmul.f32 %v449, 0.01
      %v466 = vmul.f32 %v450, 0.01
      %v467 = vmul.f32 %v451, 0.01
      %v468 = vmul.f32 %v452, 0.01
      %v469 = vmul.f32 %v453, 0.01
      %v470 = vsel %vm454, %v446, %v462
      %v471 = vsel %vm455, %v447, %v463
      %v472 = vsel %vm456, %v448, %v464
      %v473 = vsel %vm457, %v449, %v465
      %v474 = vsel %vm458, %v450, %v466
      %v475 = vsel %vm459, %v451, %v467
      %v476 = vsel %vm460, %v452, %v468
      %v477 = vsel %vm461, %v453, %v469
      %478 = vst [vmem:[%s369] sm:$0xff] %v470
      %479 = vst [vmem:[%s369 + $0x8] sm:$0xff] %v471
      %480 = vst [vmem:[%s369 + $0x10] sm:$0xff] %v472
      %481 = vst [vmem:[%s369 + $0x18] sm:$0xff] %v473
      %482 = vst [vmem:[%s369 + $0x20] sm:$0xff] %v474
      %483 = vst [vmem:[%s369 + $0x28] sm:$0xff] %v475
      %484 = vst [vmem:[%s369 + $0x30] sm:$0xff] %v476
      %485 = vst [vmem:[%s369 + $0x38] sm:$0xff] %v477
      %p486 = scmp.lt.s32.totalorder %s21, 1
      %s487 = scalar_select %p486, %s21, 1
      %p488 = scmp.lt.s32.totalorder %s22, 0
      %s489 = scalar_select %p488, %s22, 0
      %s490 = smul.addr %s487, 8
      %s491 = sadd.s32 %s489, %s490
      %s492 = smul.addr %s491, 8
      %s493 = scalar_lea.vmem %s6, %s492
      // Predicated region
      $region45: #{basic_block_forward.9} parent=43 // pred_check
        %p494 = pneg %p209
      $region46: #{basic_block_forward.9} parent=43 // pred_check_branch
        %496 = sbr.rel (%p494) target = $region48
      $region47: #{basic_block_forward.9} parent=43 // pred_region
        _
      $region48: #{basic_block_forward.9} parent=43 // pred_fallthru
        _
    $region44: #{basic_block_forward.9} parent=5 // pred_fallthru
      _
    %p497 = scmp.le.s32.totalorder 2, %s12
    // Predicated region
    $region49: #{basic_block_forward.9} parent=5 // pred_check
      %p498 = pneg %p497
    $region50: #{basic_block_forward.9} parent=5 // pred_check_branch
      %500 = sbr.rel (%p498) target = $region52
    $region51: #{basic_block_forward.9} parent=5 // pred_region
      %s501 = ssub.s32 %s12, 2
      // Predicated region
      $region53: #{basic_block_forward.9} parent=51 // pred_check
        %p502 = pneg %p215
      $region54: #{basic_block_forward.9} parent=51 // pred_check_branch
        %504 = sbr.rel (%p502) target = $region56
      $region55: #{basic_block_forward.9} parent=51 // pred_region
        %p505 = scmp.lt.s32.totalorder %s23, 1
        %s506 = scalar_select %p505, %s23, 1
        %p507 = scmp.lt.s32.totalorder %s24, 0
        %s508 = scalar_select %p507, %s24, 0
        %s509 = smul.addr %s506, 8
        %s510 = sadd.s32 %s508, %s509
        %s511 = smul.addr %s510, 8
        %s512 = scalar_lea.vmem %s6, %s511
      $region56: #{basic_block_forward.9} parent=51 // pred_fallthru
        _
    $region52: #{basic_block_forward.9} parent=5 // pred_fallthru
      _
  $region6: #{basic_block_forward.9} parent=0 // loop_footer
    %s16 = sadd.s32 1, %s12
  $region7: #{basic_block_forward.9} parent=0 // loop_footer_branch
    %11 = sbr.rel target = $region3
  $region8: #{basic_block_forward.9} parent=0 // loop_exit
    _

// kernel: basic_block_forward.7
$region0: #{basic_block_forward.7}
  #allocation0 [shape = 'u32[]', space=smem, size = 0x4, offset = 0x4, fixed_abs, tag = 'smem constant byte address 0x4 - core index']
  #allocation1 [shape = 'u32[144,128]{1,0:T(1,128)}', space=vmem, size = 0x12000, scoped, tag = 'internal scratch']
  %s0 = inlined_call_operand.vmem [shape: bf16[2,10,10,8], index: 0, kind: input, shape index: {}]
  %s1 = inlined_call_operand.vmem [shape: bf16[9,8,128], index: 1, kind: input, shape index: {}]
  %s2 = inlined_call_operand.vmem [shape: f32[2,64,128], index: 2, kind: output, shape index: {0}]
  %s3 = inlined_call_operand.vmem [shape: f32[2,2,128], index: 3, kind: output, shape index: {1}]
  %4 = xla_tuple %s2, %s3
  %s5 = sld [smem:[#allocation0]]
  $region49: #{basic_block_forward.7} parent=0
    _
  %s7 = ssub.s32 1, %s5
  %s8 = scalar_select 0, %s7, %s5
  loop: start=0, step=1, limit=4
  $region2: #{basic_block_forward.7} parent=0 // loop_pre_header
    _
  $region3: #{basic_block_forward.7} parent=0 // loop_header
    %s10 = sphi 0, %s14
    %p11 = scmp.ge.s32.totalorder %s10, 4
    %s17 = sphi 0, %s29
    %s18 = sphi 0, %s25
    %s19 = sphi 0, %s17
    %s20 = sphi 0, %s18
    %s21 = sphi 0, %s19
    %s22 = sphi 0, %s20
    %s32 = sphi 0, %s34
    %s35 = sphi 0, %s32
    %s36 = sphi 0, %s35
    %s52 = sphi 0, %s36
    %s58 = sphi 0, %s60
    %s61 = sphi 0, %s58
    %s62 = sphi 0, %s61
    %s78 = sphi 0, %s62
    %s86 = sphi 0, %s88
    %s89 = sphi 0, %s86
    %s90 = sphi 0, %s89
    %s106 = sphi 0, %s90
    %s114 = sphi 0, %s116
    %s117 = sphi 0, %s114
    %s118 = sphi 0, %s117
    %s134 = sphi 0, %s118
  $region4: #{basic_block_forward.7} parent=0 // loop_header_branch
    %13 = sbr.rel (%p11) target = $region8
  $region5: #{basic_block_forward.7} parent=0 // loop_body
    %s15 = ssub.s32 %s10, 1
    %s16 = ssub.s32 %s10, 2
    %s23 = sadd.s32 1, %s18
    %p24 = scmp.ge.s32.totalorder %s23, 1
    %s25 = scalar_select %p24, 0, %s23
    %s26 = sadd.s32 1, %s17
    %s27 = scalar_select %p24, %s26, %s17
    %p28 = scmp.ge.s32.totalorder %s27, 2
    %s29 = scalar_select %p28, 0, %s27
    %s30 = ssub.s32 %s17, %s29
    %p31 = scmp.eq.s32.totalorder %s30, 0
    %s33 = sadd.s32 %s32, 1
    %s34 = scalar_select %p31, %s32, %s33
    %p37 = pneg %p31
    %p38 = scmp.eq.s32.totalorder %s10, 1
    %p39 = por %p37, %p38
    %p40 = scmp.ne.s32.totalorder %s32, %s35
    %p41 = scmp.eq.s32.totalorder %s10, 0
    %p42 = por %p40, %p41
    %p43 = scmp.ne.s32.totalorder %s32, %s35
    %p44 = scmp.eq.s32.totalorder %s15, 1
    %p45 = por %p43, %p44
    %p46 = scmp.ne.s32.totalorder %s35, %s36
    %p47 = scmp.eq.s32.totalorder %s15, 0
    %p48 = por %p46, %p47
    %p49 = scmp.ne.s32.totalorder %s35, %s36
    %p50 = scmp.eq.s32.totalorder %s16, 1
    %p51 = por %p49, %p50
    %p53 = scmp.ne.s32.totalorder %s36, %s52
    %p54 = scmp.eq.s32.totalorder %s16, 0
    %p55 = por %p53, %p54
    %s56 = ssub.s32 %s18, %s25
    %p57 = scmp.eq.s32.totalorder %s56, 0
    %s59 = sadd.s32 %s58, 1
    %s60 = scalar_select %p57, %s58, %s59
    %p63 = pneg %p57
    %p64 = scmp.eq.s32.totalorder %s10, 1
    %p65 = por %p63, %p64
    %p66 = scmp.ne.s32.totalorder %s58, %s61
    %p67 = scmp.eq.s32.totalorder %s10, 0
    %p68 = por %p66, %p67
    %p69 = scmp.ne.s32.totalorder %s58, %s61
    %p70 = scmp.eq.s32.totalorder %s15, 1
    %p71 = por %p69, %p70
    %p72 = scmp.ne.s32.totalorder %s61, %s62
    %p73 = scmp.eq.s32.totalorder %s15, 0
    %p74 = por %p72, %p73
    %p75 = scmp.ne.s32.totalorder %s61, %s62
    %p76 = scmp.eq.s32.totalorder %s16, 1
    %p77 = por %p75, %p76
    %p79 = scmp.ne.s32.totalorder %s62, %s78
    %p80 = scmp.eq.s32.totalorder %s16, 0
    %p81 = por %p79, %p80
    %s82 = ssub.s32 %s17, %s29
    %s83 = ssub.s32 %s18, %s25
    %s84 = sor.u32 %s82, %s83
    %p85 = scmp.eq.s32.totalorder %s84, 0
    %s87 = sadd.s32 %s86, 1
    %s88 = scalar_select %p85, %s86, %s87
    %p91 = pneg %p85
    %p92 = scmp.eq.s32.totalorder %s10, 1
    %p93 = por %p91, %p92
    %p94 = scmp.ne.s32.totalorder %s86, %s89
    %p95 = scmp.eq.s32.totalorder %s10, 0
    %p96 = por %p94, %p95
    %p97 = scmp.ne.s32.totalorder %s86, %s89
    %p98 = scmp.eq.s32.totalorder %s15, 1
    %p99 = por %p97, %p98
    %p100 = scmp.ne.s32.totalorder %s89, %s90
    %p101 = scmp.eq.s32.totalorder %s15, 0
    %p102 = por %p100, %p101
    %p103 = scmp.ne.s32.totalorder %s89, %s90
    %p104 = scmp.eq.s32.totalorder %s16, 1
    %p105 = por %p103, %p104
    %p107 = scmp.ne.s32.totalorder %s90, %s106
    %p108 = scmp.eq.s32.totalorder %s16, 0
    %p109 = por %p107, %p108
    %s110 = ssub.s32 %s17, %s29
    %s111 = ssub.s32 %s18, %s25
    %s112 = sor.u32 %s110, %s111
    %p113 = scmp.eq.s32.totalorder %s112, 0
    %s115 = sadd.s32 %s114, 1
    %s116 = scalar_select %p113, %s114, %s115
    %p119 = pneg %p113
    %p120 = scmp.eq.s32.totalorder %s10, 1
    %p121 = por %p119, %p120
    %p122 = scmp.ne.s32.totalorder %s114, %s117
    %p123 = scmp.eq.s32.totalorder %s10, 0
    %p124 = por %p122, %p123
    %p125 = scmp.ne.s32.totalorder %s114, %s117
    %p126 = scmp.eq.s32.totalorder %s15, 1
    %p127 = por %p125, %p126
    %p128 = scmp.ne.s32.totalorder %s117, %s118
    %p129 = scmp.eq.s32.totalorder %s15, 0
    %p130 = por %p128, %p129
    %p131 = scmp.ne.s32.totalorder %s117, %s118
    %p132 = scmp.eq.s32.totalorder %s16, 1
    %p133 = por %p131, %p132
    %p135 = scmp.ne.s32.totalorder %s118, %s134
    %p136 = scmp.eq.s32.totalorder %s16, 0
    %p137 = por %p135, %p136
    %p138 = scmp.le.s32.totalorder 1, %s10
    %p139 = scmp.lt.s32.totalorder %s10, 3
    %p140 = pnand %p138, %p139
    %p141 = pneg %p140
    // Predicated region
    $region9: #{basic_block_forward.7} parent=5 // pred_check
      _
    $region10: #{basic_block_forward.7} parent=5 // pred_check_branch
      %143 = sbr.rel (%p140) target = $region12
    $region11: #{basic_block_forward.7} parent=5 // pred_region
      %s144 = ssub.s32 %s10, 1
      // Predicated region
      $region13: #{basic_block_forward.7} parent=11 // pred_check
        %p145 = pneg %p74
      $region14: #{basic_block_forward.7} parent=11 // pred_check_branch
        %147 = sbr.rel (%p145) target = $region16
      $region15: #{basic_block_forward.7} parent=11 // pred_region
        %p148 = scmp.lt.s32.totalorder %s20, 0
        %s149 = scalar_select %p148, %s20, 0
        %s150 = smul.addr %s149, 4
        %s151 = scalar_lea.vmem %s1, %s150
      $region16: #{basic_block_forward.7} parent=11 // pred_fallthru
        _
    $region12: #{basic_block_forward.7} parent=5 // pred_fallthru
      _
    %p152 = scmp.lt.s32.totalorder %s10, 2
    // Predicated region
    $region17: #{basic_block_forward.7} parent=5 // pred_check
      %p153 = pneg %p152
    $region18: #{basic_block_forward.7} parent=5 // pred_check_branch
      %155 = sbr.rel (%p153) target = $region20
    $region19: #{basic_block_forward.7} parent=5 // pred_region
      // Predicated region
      $region21: #{basic_block_forward.7} parent=19 // pred_check
        %p156 = pneg %p42
      $region22: #{basic_block_forward.7} parent=19 // pred_check_branch
        %158 = sbr.rel (%p156) target = $region24
      $region23: #{basic_block_forward.7} parent=19 // pred_region
        %p159 = scmp.lt.s32.totalorder %s17, 1
        %s160 = scalar_select %p159, %s17, 1
        %s161 = smul.addr %s160, 20
        %s162 = smul.addr %s161, 4
        %s163 = scalar_lea.vmem %s0, %s162
      $region24: #{basic_block_forward.7} parent=19 // pred_fallthru
        _
    $region20: #{basic_block_forward.7} parent=5 // pred_fallthru
      _
    %p164 = scmp.le.s32.totalorder 1, %s10
    %p165 = scmp.lt.s32.totalorder %s10, 3
    %p166 = pnand %p164, %p165
    %p167 = pneg %p166
    // Predicated region
    $region25: #{basic_block_forward.7} parent=5 // pred_check
      _
    $region26: #{basic_block_forward.7} parent=5 // pred_check_branch
      %169 = sbr.rel (%p166) target = $region28
    $region27: #{basic_block_forward.7} parent=5 // pred_region
      %s170 = ssub.s32 %s10, 1
      %p171 = scmp.lt.s32.totalorder %s19, 1
      %s172 = scalar_select %p171, %s19, 1
      %s173 = smul.addr %s172, 20
      %s174 = smul.addr %s173, 4
      %s175 = scalar_lea.vmem %s0, %s174
      %p176 = pneg %p48
      %p177 = pneg %p45
      %p178 = scmp.lt.s32.totalorder %s20, 0
      %s179 = scalar_select %p178, %s20, 0
      %s180 = smul.addr %s179, 4
      %s181 = scalar_lea.vmem %s1, %s180
      %p182 = pneg %p74
      %p183 = pneg %p71
      %p184 = pneg %p102
      %p185 = pneg %p99
      %p186 = scmp.lt.s32.totalorder %s19, 1
      %s187 = scalar_select %p186, %s19, 1
      %p188 = scmp.lt.s32.totalorder %s20, 0
      %s189 = scalar_select %p188, %s20, 0
      %s190 = smul.addr %s187, 8
      %s191 = sadd.s32 %s189, %s190
      %s192 = smul.addr %s191, 8
      %s193 = scalar_lea.vmem %s2, %s192
      %p194 = pneg %p130
      %p195 = pneg %p127
      %p196 = scmp.lt.s32.totalorder %s19, 1
      %s197 = scalar_select %p196, %s19, 1
      %p198 = scmp.lt.s32.totalorder %s20, 0
      %s199 = scalar_select %p198, %s20, 0
      %s200 = sadd.s32 %s199, %s197
      %s201 = smul.addr %s200, 2
      %s202 = scalar_lea.vmem %s3, %s201
      %p203 = scmp.lt.s32.totalorder %s19, 1
      %s204 = scalar_select %p203, %s19, 1
      %s205 = smul.addr %s204, 20
      %s206 = smul.addr %s205, 4
      %s207 = scalar_lea.vmem %s0, %s206
      %p208 = scmp.lt.s32.totalorder %s20, 0
      %s209 = scalar_select %p208, %s20, 0
      %s210 = smul.addr %s209, 4
      %s211 = scalar_lea.vmem %s1, %s210
      %p212 = scmp.lt.s32.totalorder %s19, 1
      %s213 = scalar_select %p212, %s19, 1
      %p214 = scmp.lt.s32.totalorder %s20, 0
      %s215 = scalar_select %p214, %s20, 0
      %s216 = smul.addr %s213, 8
      %s217 = sadd.s32 %s215, %s216
      %s218 = smul.addr %s217, 8
      %s219 = scalar_lea.vmem %s2, %s218
      %p220 = scmp.lt.s32.totalorder %s19, 1
      %s221 = scalar_select %p220, %s19, 1
      %p222 = scmp.lt.s32.totalorder %s20, 0
      %s223 = scalar_select %p222, %s20, 0
      %s224 = sadd.s32 %s223, %s221
      %s225 = smul.addr %s224, 2
      %s226 = scalar_lea.vmem %s3, %s225
      %v228 = vld [vmem:[%s207] sm:$0xf]
      %v229 = vld [vmem:[%s207 + $0x8] sm:$0xf]
      %v230 = vld [vmem:[%s207 + $0x10] sm:$0xf]
      %v231 = vld [vmem:[%s207 + $0x18] sm:$0xf]
      %v232 = vld [vmem:[%s207 + $0x20] sm:$0xf]
      %v233 = vld [vmem:[%s207 + $0x28] sm:$0xf]
      %v234 = vld [vmem:[%s207 + $0x30] sm:$0xf]
      %v235 = vld [vmem:[%s207 + $0x38] sm:$0xf]
      %v236 = vld [vmem:[%s211] sm:$0xf]
      %v237 = vld [vmem:[%s207 + $0x4] sm:$0x1]
      %v238 = vld [vmem:[%s207 + $0xc] sm:$0x1]
      %v239 = vld [vmem:[%s207 + $0x14] sm:$0x1]
      %v240 = vld [vmem:[%s207 + $0x1c] sm:$0x1]
      %v241 = vld [vmem:[%s207 + $0x24] sm:$0x1]
      %v242 = vld [vmem:[%s207 + $0x2c] sm:$0x1]
      %v243 = vld [vmem:[%s207 + $0x34] sm:$0x1]
      %v244 = vld [vmem:[%s207 + $0x3c] sm:$0x1]
      %vm245 = vsmask.f32 3328
      %vm246 = vsmask.f32 7440
      %vm247 = vmor %vm245, %vm246
      %v249 = vshrl.u32 %v228, 16
      %v251 = vrot.slane %v249, 4
      %v252 = vshll.u32 %v228, 16
      %v254 = vrot.slane %v252, 5
      %v255 = vor.u32 %v251, %v254
      %v256 = vrot.slane %v255, 4
      %v258 = vshll.u32 %v237, 16
      %v260 = vrot.slane %v258, 5
      %v261 = vsel %vm247, %v256, %v260
      %v263 = vshrl.u32 %v229, 16
      %v265 = vrot.slane %v263, 4
      %v266 = vshll.u32 %v229, 16
      %v268 = vrot.slane %v266, 5
      %v269 = vor.u32 %v265, %v268
      %v270 = vrot.slane %v269, 4
      %v272 = vshll.u32 %v238, 16
      %v274 = vrot.slane %v272, 5
      %v275 = vsel %vm247, %v270, %v274
      %v277 = vshrl.u32 %v230, 16
      %v279 = vrot.slane %v277, 4
      %v280 = vshll.u32 %v230, 16
      %v282 = vrot.slane %v280, 5
      %v283 = vor.u32 %v279, %v282
      %v284 = vrot.slane %v283, 4
      %v286 = vshll.u32 %v239, 16
      %v288 = vrot.slane %v286, 5
      %v289 = vsel %vm247, %v284, %v288
      %v291 = vshrl.u32 %v231, 16
      %v293 = vrot.slane %v291, 4
      %v294 = vshll.u32 %v231, 16
      %v296 = vrot.slane %v294, 5
      %v297 = vor.u32 %v293, %v296
      %v298 = vrot.slane %v297, 4
      %v300 = vshll.u32 %v240, 16
      %v302 = vrot.slane %v300, 5
      %v303 = vsel %vm247, %v298, %v302
      %v305 = vshrl.u32 %v232, 16
      %v307 = vrot.slane %v305, 4
      %v308 = vshll.u32 %v232, 16
      %v310 = vrot.slane %v308, 5
      %v311 = vor.u32 %v307, %v310
      %v312 = vrot.slane %v311, 4
      %v314 = vshll.u32 %v241, 16
      %v316 = vrot.slane %v314, 5
      %v317 = vsel %vm247, %v312, %v316
      %v319 = vshrl.u32 %v233, 16
      %v321 = vrot.slane %v319, 4
      %v322 = vshll.u32 %v233, 16
      %v324 = vrot.slane %v322, 5
      %v325 = vor.u32 %v321, %v324
      %v326 = vrot.slane %v325, 4
      %v328 = vshll.u32 %v242, 16
      %v330 = vrot.slane %v328, 5
      %v331 = vsel %vm247, %v326, %v330
      %v333 = vshrl.u32 %v234, 16
      %v335 = vrot.slane %v333, 4
      %v336 = vshll.u32 %v234, 16
      %v338 = vrot.slane %v336, 5
      %v339 = vor.u32 %v335, %v338
      %v340 = vrot.slane %v339, 4
      %v342 = vshll.u32 %v243, 16
      %v344 = vrot.slane %v342, 5
      %v345 = vsel %vm247, %v340, %v344
      %v347 = vshrl.u32 %v235, 16
      %v349 = vrot.slane %v347, 4
      %v350 = vshll.u32 %v235, 16
      %v352 = vrot.slane %v350, 5
      %v353 = vor.u32 %v349, %v352
      %v354 = vrot.slane %v353, 4
      %v356 = vshll.u32 %v244, 16
      %v358 = vrot.slane %v356, 5
      %v359 = vsel %vm247, %v354, %v358
      %s360 = scalar_lea.vmem %s211, 4
      %v361 = vld [vmem:[%s360] sm:$0xf]
      %v362 = vunpack.c.l.b16 %v261
      %v363 = vunpack.c.l.b16 %v275
      %v364 = vunpack.c.l.b16 %v289
      %v365 = vunpack.c.l.b16 %v303
      %v366 = vunpack.c.l.b16 %v317
      %v367 = vunpack.c.l.b16 %v331
      %v368 = vunpack.c.l.b16 %v345
      %v369 = vunpack.c.l.b16 %v359
      %v370 = vpack.c.b16 %v363, %v362
      %v371 = vpack.c.b16 %v365, %v364
      %v372 = vpack.c.b16 %v367, %v366
      %v373 = vpack.c.b16 %v369, %v368
      %vm374 = vcmask 64512
      %v376 = vsel %vm374, %v370, 0
      %v379 = vsel %vm374, %v371, 0
      %v382 = vsel %vm374, %v372, 0
      %v385 = vsel %vm374, %v373, 0
      %vm387 = vcmask 1043456
      %v389 = vsel %vm387, %v361, 0
      %391 = vmatprep.subr.bf16.mxu0 0
      %392 = vmatpush1.bf16.msra.mxu0 %v389
      %393 = vmatprep.subr.bf16.mxu0 0
      %394 = vmatpush1.bf16.msra.mxu0 0
      %395 = vmatprep.subr.bf16.mxu0 0
      %396 = vmatpush1.bf16.msra.mxu0 0
      %397 = vmatprep.subr.bf16.mxu0 0
      %398 = vmatpush1.bf16.msra.mxu0 0
      %399 = vmatprep.subr.bf16.mxu0 0
      %400 = vmatpush1.bf16.msra.mxu0 0
      %401 = vmatprep.subr.bf16.mxu0 0
      %402 = vmatpush1.bf16.msra.mxu0 0
      %403 = vmatprep.subr.bf16.mxu0 0
      %404 = vmatpush1.bf16.msra.mxu0 0
      %405 = vmatprep.subr.bf16.mxu0 0
      %406 = vmatpush1.bf16.msra.mxu0 0
      %407 = vmatprep.subr.bf16.mxu0 0
      %408 = vmatpush1.bf16.msra.mxu0 0
      %409 = vmatprep.subr.bf16.mxu0 0
      %410 = vmatpush1.bf16.msra.mxu0 0
      %411 = vmatprep.subr.bf16.mxu0 0
      %412 = vmatpush1.bf16.msra.mxu0 0
      %413 = vmatprep.subr.bf16.mxu0 0
      %414 = vmatpush1.bf16.msra.mxu0 0
      %415 = vmatprep.subr.bf16.mxu0 0
      %416 = vmatpush1.bf16.msra.mxu0 0
      %417 = vmatprep.subr.bf16.mxu0 0
      %418 = vmatpush1.bf16.msra.mxu0 0
      %419 = vmatprep.subr.bf16.mxu0 0
      %420 = vmatpush1.bf16.msra.mxu0 0
      %421 = vmatprep.subr.bf16.mxu0 0
      %422 = vmatpush1.bf16.msra.mxu0 0
      %423 = vmatprep.mubr.bf16.mxu0 0
      %424 = vmatmul.mubr.bf16.gmra.mrb[0].mxu0 %v376
      %v425 = vpop.f32.mrb[0].mxu0
      %v426 = vadd.f32 0.0, %v425
      %v427 = vpop.f32.mrb[0].mxu0
      %v428 = vpop.f32.mrb[0].mxu0
      %v429 = vadd.f32 0.0, %v428
      %v430 = vpop.f32.mrb[0].mxu0
      %431 = vmatprep.mubr.bf16.mxu0 0
      %432 = vmatmul.mubr.bf16.gmra.mrb[0].mxu0 %v379
      %v433 = vpop.f32.mrb[0].mxu0
      %v434 = vadd.f32 0.0, %v433
      %v435 = vpop.f32.mrb[0].mxu0
      %v436 = vpop.f32.mrb[0].mxu0
      %v437 = vadd.f32 0.0, %v436
      %v438 = vpop.f32.mrb[0].mxu0
      %439 = vmatprep.mubr.bf16.mxu0 0
      %440 = vmatmul.mubr.bf16.gmra.mrb[0].mxu0 %v382
      %v441 = vpop.f32.mrb[0].mxu0
      %v442 = vadd.f32 0.0, %v441
      %v443 = vpop.f32.mrb[0].mxu0
      %v444 = vpop.f32.mrb[0].mxu0
      %v445 = vadd.f32 0.0, %v444
      %v446 = vpop.f32.mrb[0].mxu0
      %447 = vmatprep.mubr.bf16.mxu0 0
      %448 = vmatmul.mubr.bf16.gmra.mrb[0].mxu0 %v385
      %v449 = vpop.f32.mrb[0].mxu0
      %v450 = vadd.f32 0.0, %v449
      %v451 = vpop.f32.mrb[0].mxu0
      %v452 = vpop.f32.mrb[0].mxu0
      %v453 = vadd.f32 0.0, %v452
      %v454 = vpop.f32.mrb[0].mxu0
      %455 = vdwg.mxu0
      %v464 = vunpack.c.l.b16 %v228
      %v465 = vunpack.c.l.b16 %v229
      %v466 = vunpack.c.l.b16 %v230
      %v467 = vunpack.c.l.b16 %v231
      %v468 = vunpack.c.l.b16 %v232
      %v469 = vunpack.c.l.b16 %v233
      %v470 = vunpack.c.l.b16 %v234
      %v471 = vunpack.c.l.b16 %v235
      %v472 = vpack.c.b16 %v465, %v464
      %v473 = vpack.c.b16 %v467, %v466
      %v474 = vpack.c.b16 %v469, %v468
      %v475 = vpack.c.b16 %v471, %v470
      %v477 = vsel %vm374, %v472, 0
      %v480 = vsel %vm374, %v473, 0
      %v483 = vsel %vm374, %v474, 0
      %v486 = vsel %vm374, %v475, 0
      %v489 = vsel %vm387, %v236, 0
      %491 = vmatprep.subr.bf16.mxu0 0
      %492 = vmatpush1.bf16.msra.mxu0 %v489
      %493 = vmatprep.subr.bf16.mxu0 0
      %494 = vmatpush1.bf16.msra.mxu0 0
      %495 = vmatprep.subr.bf16.mxu0 0
      %496 = vmatpush1.bf16.msra.mxu0 0
      %497 = vmatprep.subr.bf16.mxu0 0
      %498 = vmatpush1.bf16.msra.mxu0 0
      %499 = vmatprep.subr.bf16.mxu0 0
      %500 = vmatpush1.bf16.msra.mxu0 0
      %501 = vmatprep.subr.bf16.mxu0 0
      %502 = vmatpush1.bf16.msra.mxu0 0
      %503 = vmatprep.subr.bf16.mxu0 0
      %504 = vmatpush1.bf16.msra.mxu0 0
      %505 = vmatprep.subr.bf16.mxu0 0
      %506 = vmatpush1.bf16.msra.mxu0 0
      %507 = vmatprep.subr.bf16.mxu0 0
      %508 = vmatpush1.bf16.msra.mxu0 0
      %509 = vmatprep.subr.bf16.mxu0 0
      %510 = vmatpush1.bf16.msra.mxu0 0
      %511 = vmatprep.subr.bf16.mxu0 0
      %512 = vmatpush1.bf16.msra.mxu0 0
      %513 = vmatprep.subr.bf16.mxu0 0
      %514 = vmatpush1.bf16.msra.mxu0 0
      %515 = vmatprep.subr.bf16.mxu0 0
      %516 = vmatpush1.bf16.msra.mxu0 0
      %517 = vmatprep.subr.bf16.mxu0 0
      %518 = vmatpush1.bf16.msra.mxu0 0
      %519 = vmatprep.subr.bf16.mxu0 0
      %520 = vmatpush1.bf16.msra.mxu0 0
      %521 = vmatprep.subr.bf16.mxu0 0
      %522 = vmatpush1.bf16.msra.mxu0 0
      %523 = vmatprep.mubr.bf16.mxu0 0
      %524 = vmatmul.mubr.bf16.gmra.mrb[0].mxu0 %v477
      %v525 = vpop.f32.mrb[0].mxu0
      %v526 = vadd.f32 %v426, %v525
      %v527 = vpop.f32.mrb[0].mxu0
      %v528 = vpop.f32.mrb[0].mxu0
      %v529 = vadd.f32 %v429, %v528
      %v530 = vpop.f32.mrb[0].mxu0
      %531 = vmatprep.mubr.bf16.mxu0 0
      %532 = vmatmul.mubr.bf16.gmra.mrb[0].mxu0 %v480
      %v533 = vpop.f32.mrb[0].mxu0
      %v534 = vadd.f32 %v434, %v533
      %v535 = vpop.f32.mrb[0].mxu0
      %v536 = vpop.f32.mrb[0].mxu0
      %v537 = vadd.f32 %v437, %v536
      %v538 = vpop.f32.mrb[0].mxu0
      %539 = vmatprep.mubr.bf16.mxu0 0
      %540 = vmatmul.mubr.bf16.gmra.mrb[0].mxu0 %v483
      %v541 = vpop.f32.mrb[0].mxu0
      %v542 = vadd.f32 %v442, %v541
      %v543 = vpop.f32.mrb[0].mxu0
      %v544 = vpop.f32.mrb[0].mxu0
      %v545 = vadd.f32 %v445, %v544
      %v546 = vpop.f32.mrb[0].mxu0
      %547 = vmatprep.mubr.bf16.mxu0 0
      %548 = vmatmul.mubr.bf16.gmra.mrb[0].mxu0 %v486
      %v549 = vpop.f32.mrb[0].mxu0
      %v550 = vadd.f32 %v450, %v549
      %v551 = vpop.f32.mrb[0].mxu0
      %v552 = vpop.f32.mrb[0].mxu0
      %v553 = vadd.f32 %v453, %v552
      %v554 = vpop.f32.mrb[0].mxu0
      %555 = vdwg.mxu0
      %v556 = vld [vmem:[%s207] sm:$0xe]
      %v557 = vld [vmem:[%s207 + $0x8] sm:$0xe]
      %v558 = vld [vmem:[%s207 + $0x10] sm:$0xe]
      %v559 = vld [vmem:[%s207 + $0x18] sm:$0xe]
      %v560 = vld [vmem:[%s207 + $0x20] sm:$0xe]
      %v561 = vld [vmem:[%s207 + $0x28] sm:$0xe]
      %v562 = vld [vmem:[%s207 + $0x30] sm:$0xe]
      %v563 = vld [vmem:[%s207 + $0x38] sm:$0xe]
      %vm580 = vcmask 1042432
      %vm581 = vcmask 1046532
      %vm582 = vmor %vm580, %vm581
      %v583 = vrot.slane %v556, 5
      %v584 = vrot.slane %v583, 4
      %v585 = vrot.slane %v237, 5
      %v586 = vsel %vm582, %v584, %v585
      %v587 = vrot.slane %v557, 5
      %v588 = vrot.slane %v587, 4
      %v589 = vrot.slane %v238, 5
      %v590 = vsel %vm582, %v588, %v589
      %v591 = vrot.slane %v558, 5
      %v592 = vrot.slane %v591, 4
      %v593 = vrot.slane %v239, 5
      %v594 = vsel %vm582, %v592, %v593
      %v595 = vrot.slane %v559, 5
      %v596 = vrot.slane %v595, 4
      %v597 = vrot.slane %v240, 5
      %v598 = vsel %vm582, %v596, %v597
      %v599 = vrot.slane %v560, 5
      %v600 = vrot.slane %v599, 4
      %v601 = vrot.slane %v241, 5
      %v602 = vsel %vm582, %v600, %v601
      %v603 = vrot.slane %v561, 5
      %v604 = vrot.slane %v603, 4
      %v605 = vrot.slane %v242, 5
      %v606 = vsel %vm582, %v604, %v605
      %v607 = vrot.slane %v562, 5
      %v608 = vrot.slane %v607, 4
      %v609 = vrot.slane %v243, 5
      %v610 = vsel %vm582, %v608, %v609
      %v611 = vrot.slane %v563, 5
      %v612 = vrot.slane %v611, 4
      %v613 = vrot.slane %v244, 5
      %v614 = vsel %vm582, %v612, %v613
      %s615 = scalar_lea.vmem %s211, 8
      %v616 = vld [vmem:[%s615] sm:$0xf]
      %v617 = vunpack.c.l.b16 %v586
      %v618 = vunpack.c.l.b16 %v590
      %v619 = vunpack.c.l.b16 %v594
      %v620 = vunpack.c.l.b16 %v598
      %v621 = vunpack.c.l.b16 %v602
      %v622 = vunpack.c.l.b16 %v606
      %v623 = vunpack.c.l.b16 %v610
      %v624 = vunpack.c.l.b16 %v614
      %v625 = vpack.c.b16 %v618, %v617
      %v626 = vpack.c.b16 %v620, %v619
      %v627 = vpack.c.b16 %v622, %v621
      %v628 = vpack.c.b16 %v624, %v623
      %v630 = vsel %vm374, %v625, 0
      %v633 = vsel %vm374, %v626, 0
      %v636 = vsel %vm374, %v627, 0
      %v639 = vsel %vm374, %v628, 0
      %v642 = vsel %vm387, %v616, 0
      %644 = vmatprep.subr.bf16.mxu0 0
      %645 = vmatpush1.bf16.msra.mxu0 %v642
      %646 = vmatprep.subr.bf16.mxu0 0
      %647 = vmatpush1.bf16.msra.mxu0 0
      %648 = vmatprep.subr.bf16.mxu0 0
      %649 = vmatpush1.bf16.msra.mxu0 0
      %650 = vmatprep.subr.bf16.mxu0 0
      %651 = vmatpush1.bf16.msra.mxu0 0
      %652 = vmatprep.subr.bf16.mxu0 0
      %653 = vmatpush1.bf16.msra.mxu0 0
      %654 = vmatprep.subr.bf16.mxu0 0
      %655 = vmatpush1.bf16.msra.mxu0 0
      %656 = vmatprep.subr.bf16.mxu0 0
      %657 = vmatpush1.bf16.msra.mxu0 0
      %658 = vmatprep.subr.bf16.mxu0 0
      %659 = vmatpush1.bf16.msra.mxu0 0
      %660 = vmatprep.subr.bf16.mxu0 0
      %661 = vmatpush1.bf16.msra.mxu0 0
      %662 = vmatprep.subr.bf16.mxu0 0
      %663 = vmatpush1.bf16.msra.mxu0 0
      %664 = vmatprep.subr.bf16.mxu0 0
      %665 = vmatpush1.bf16.msra.mxu0 0
      %666 = vmatprep.subr.bf16.mxu0 0
      %667 = vmatpush1.bf16.msra.mxu0 0
      %668 = vmatprep.subr.bf16.mxu0 0
      %669 = vmatpush1.bf16.msra.mxu0 0
      %670 = vmatprep.subr.bf16.mxu0 0
      %671 = vmatpush1.bf16.msra.mxu0 0
      %672 = vmatprep.subr.bf16.mxu0 0
      %673 = vmatpush1.bf16.msra.mxu0 0
      %674 = vmatprep.subr.bf16.mxu0 0
      %675 = vmatpush1.bf16.msra.mxu0 0
      %676 = vmatprep.mubr.bf16.mxu0 0
      %677 = vmatmul.mubr.bf16.gmra.mrb[0].mxu0 %v630
      %v678 = vpop.f32.mrb[0].mxu0
      %v679 = vadd.f32 0.0, %v678
      %v680 = vpop.f32.mrb[0].mxu0
      %v681 = vpop.f32.mrb[0].mxu0
      %v682 = vadd.f32 0.0, %v681
      %v683 = vpop.f32.mrb[0].mxu0
      %684 = vmatprep.mubr.bf16.mxu0 0
      %685 = vmatmul.mubr.bf16.gmra.mrb[0].mxu0 %v633
      %v686 = vpop.f32.mrb[0].mxu0
      %v687 = vadd.f32 0.0, %v686
      %v688 = vpop.f32.mrb[0].mxu0
      %v689 = vpop.f32.mrb[0].mxu0
      %v690 = vadd.f32 0.0, %v689
      %v691 = vpop.f32.mrb[0].mxu0
      %692 = vmatprep.mubr.bf16.mxu0 0
      %693 = vmatmul.mubr.bf16.gmra.mrb[0].mxu0 %v636
      %v694 = vpop.f32.mrb[0].mxu0
      %v695 = vadd.f32 0.0, %v694
      %v696 = vpop.f32.mrb[0].mxu0
      %v697 = vpop.f32.mrb[0].mxu0
      %v698 = vadd.f32 0.0, %v697
      %v699 = vpop.f32.mrb[0].mxu0
      %700 = vmatprep.mubr.bf16.mxu0 0
      %701 = vmatmul.mubr.bf16.gmra.mrb[0].mxu0 %v639
      %v702 = vpop.f32.mrb[0].mxu0
      %v703 = vadd.f32 0.0, %v702
      %v704 = vpop.f32.mrb[0].mxu0
      %v705 = vpop.f32.mrb[0].mxu0
      %v706 = vadd.f32 0.0, %v705
      %v707 = vpop.f32.mrb[0].mxu0
      %708 = vdwg.mxu0
      %v709 = vadd.f32 %v526, %v679
      %v710 = vadd.f32 %v529, %v682
      %v711 = vadd.f32 %v534, %v687
      %v712 = vadd.f32 %v537, %v690
      %v713 = vadd.f32 %v542, %v695
      %v714 = vadd.f32 %v545, %v698
      %v715 = vadd.f32 %v550, %v703
      %v716 = vadd.f32 %v553, %v706
      %s717 = scalar_lea.vmem %s207, 8
      %v718 = vld [vmem:[%s717] sm:$0xf]
      %v719 = vld [vmem:[%s717 + $0x8] sm:$0xf]
      %v720 = vld [vmem:[%s717 + $0x10] sm:$0xf]
      %v721 = vld [vmem:[%s717 + $0x18] sm:$0xf]
      %v722 = vld [vmem:[%s717 + $0x20] sm:$0xf]
      %v723 = vld [vmem:[%s717 + $0x28] sm:$0xf]
      %v724 = vld [vmem:[%s717 + $0x30] sm:$0xf]
      %v725 = vld [vmem:[%s717 + $0x38] sm:$0xf]
      %s726 = scalar_lea.vmem %s211, 12
      %v727 = vld [vmem:[%s726] sm:$0xf]
      %v736 = vunpack.c.l.b16 %v718
      %v737 = vunpack.c.l.b16 %v719
      %v738 = vunpack.c.l.b16 %v720
      %v739 = vunpack.c.l.b16 %v721
      %v740 = vunpack.c.l.b16 %v722
      %v741 = vunpack.c.l.b16 %v723
      %v742 = vunpack.c.l.b16 %v724
      %v743 = vunpack.c.l.b16 %v725
      %v744 = vpack.c.b16 %v737, %v736
      %v745 = vpack.c.b16 %v739, %v738
      %v746 = vpack.c.b16 %v741, %v740
      %v747 = vpack.c.b16 %v743, %v742
      %v749 = vsel %vm374, %v744, 0
      %v752 = vsel %vm374, %v745, 0
      %v755 = vsel %vm374, %v746, 0
      %v758 = vsel %vm374, %v747, 0
      %v761 = vsel %vm387, %v727, 0
      %763 = vmatprep.subr.bf16.mxu0 0
      %764 = vmatpush1.bf16.msra.mxu0 %v761
      %765 = vmatprep.subr.bf16.mxu0 0
      %766 = vmatpush1.bf16.msra.mxu0 0
      %767 = vmatprep.subr.bf16.mxu0 0
      %768 = vmatpush1.bf16.msra.mxu0 0
      %769 = vmatprep.subr.bf16.mxu0 0
      %770 = vmatpush1.bf16.msra.mxu0 0
      %771 = vmatprep.subr.bf16.mxu0 0
      %772 = vmatpush1.bf16.msra.mxu0 0
      %773 = vmatprep.subr.bf16.mxu0 0
      %774 = vmatpush1.bf16.msra.mxu0 0
      %775 = vmatprep.subr.bf16.mxu0 0
      %776 = vmatpush1.bf16.msra.mxu0 0
      %777 = vmatprep.subr.bf16.mxu0 0
      %778 = vmatpush1.bf16.msra.mxu0 0
      %779 = vmatprep.subr.bf16.mxu0 0
      %780 = vmatpush1.bf16.msra.mxu0 0
      %781 = vmatprep.subr.bf16.mxu0 0
      %782 = vmatpush1.bf16.msra.mxu0 0
      %783 = vmatprep.subr.bf16.mxu0 0
      %784 = vmatpush1.bf16.msra.mxu0 0
      %785 = vmatprep.subr.bf16.mxu0 0
      %786 = vmatpush1.bf16.msra.mxu0 0
      %787 = vmatprep.subr.bf16.mxu0 0
      %788 = vmatpush1.bf16.msra.mxu0 0
      %789 = vmatprep.subr.bf16.mxu0 0
      %790 = vmatpush1.bf16.msra.mxu0 0
      %791 = vmatprep.subr.bf16.mxu0 0
      %792 = vmatpush1.bf16.msra.mxu0 0
      %793 = vmatprep.subr.bf16.mxu0 0
      %794 = vmatpush1.bf16.msra.mxu0 0
      %795 = vmatprep.mubr.bf16.mxu0 0
      %796 = vmatmul.mubr.bf16.gmra.mrb[0].mxu0 %v749
      %v797 = vpop.f32.mrb[0].mxu0
      %v798 = vadd.f32 0.0, %v797
      %v799 = vpop.f32.mrb[0].mxu0
      %v800 = vpop.f32.mrb[0].mxu0
      %v801 = vadd.f32 0.0, %v800
      %v802 = vpop.f32.mrb[0].mxu0
      %803 = vmatprep.mubr.bf16.mxu0 0
      %804 = vmatmul.mubr.bf16.gmra.mrb[0].mxu0 %v752
      %v805 = vpop.f32.mrb[0].mxu0
      %v806 = vadd.f32 0.0, %v805
      %v807 = vpop.f32.mrb[0].mxu0
      %v808 = vpop.f32.mrb[0].mxu0
      %v809 = vadd.f32 0.0, %v808
      %v810 = vpop.f32.mrb[0].mxu0
      %811 = vmatprep.mubr.bf16.mxu0 0
      %812 = vmatmul.mubr.bf16.gmra.mrb[0].mxu0 %v755
      %v813 = vpop.f32.mrb[0].mxu0
      %v814 = vadd.f32 0.0, %v813
      %v815 = vpop.f32.mrb[0].mxu0
      %v816 = vpop.f32.mrb[0].mxu0
      %v817 = vadd.f32 0.0, %v816
      %v818 = vpop.f32.mrb[0].mxu0
      %819 = vmatprep.mubr.bf16.mxu0 0
      %820 = vmatmul.mubr.bf16.gmra.mrb[0].mxu0 %v758
      %v821 = vpop.f32.mrb[0].mxu0
      %v822 = vadd.f32 0.0, %v821
      %v823 = vpop.f32.mrb[0].mxu0
      %v824 = vpop.f32.mrb[0].mxu0
      %v825 = vadd.f32 0.0, %v824
      %v826 = vpop.f32.mrb[0].mxu0
      %827 = vdwg.mxu0
      %v828 = vadd.f32 %v709, %v798
      %v829 = vadd.f32 %v710, %v801
      %v830 = vadd.f32 %v711, %v806
      %v831 = vadd.f32 %v712, %v809
      %v832 = vadd.f32 %v713, %v814
      %v833 = vadd.f32 %v714, %v817
      %v834 = vadd.f32 %v715, %v822
      %v835 = vadd.f32 %v716, %v825
      %v836 = vld [vmem:[%s717] sm:$0xf]
      %v837 = vld [vmem:[%s717 + $0x4] sm:$0x1]
      %v838 = vld [vmem:[%s717 + $0x8] sm:$0xf]
      %v839 = vld [vmem:[%s717 + $0xc] sm:$0x1]
      %v840 = vld [vmem:[%s717 + $0x10] sm:$0xf]
      %v841 = vld [vmem:[%s717 + $0x14] sm:$0x1]
      %v842 = vld [vmem:[%s717 + $0x18] sm:$0xf]
      %v843 = vld [vmem:[%s717 + $0x1c] sm:$0x1]
      %v844 = vld [vmem:[%s717 + $0x20] sm:$0xf]
      %v845 = vld [vmem:[%s717 + $0x24] sm:$0x1]
      %v846 = vld [vmem:[%s717 + $0x28] sm:$0xf]
      %v847 = vld [vmem:[%s717 + $0x2c] sm:$0x1]
      %v848 = vld [vmem:[%s717 + $0x30] sm:$0xf]
      %v849 = vld [vmem:[%s717 + $0x34] sm:$0x1]
      %v850 = vld [vmem:[%s717 + $0x38] sm:$0xf]
      %v851 = vld [vmem:[%s717 + $0x3c] sm:$0x1]
      %v853 = vshrl.u32 %v836, 16
      %v855 = vrot.slane %v853, 4
      %v856 = vshll.u32 %v836, 16
      %v858 = vrot.slane %v856, 5
      %v859 = vor.u32 %v855, %v858
      %v860 = vrot.slane %v859, 4
      %v862 = vshll.u32 %v837, 16
      %v864 = vrot.slane %v862, 5
      %v865 = vsel %vm247, %v860, %v864
      %v867 = vshrl.u32 %v838, 16
      %v869 = vrot.slane %v867, 4
      %v870 = vshll.u32 %v838, 16
      %v872 = vrot.slane %v870, 5
      %v873 = vor.u32 %v869, %v872
      %v874 = vrot.slane %v873, 4
      %v876 = vshll.u32 %v839, 16
      %v878 = vrot.slane %v876, 5
      %v879 = vsel %vm247, %v874, %v878
      %v881 = vshrl.u32 %v840, 16
      %v883 = vrot.slane %v881, 4
      %v884 = vshll.u32 %v840, 16
      %v886 = vrot.slane %v884, 5
      %v887 = vor.u32 %v883, %v886
      %v888 = vrot.slane %v887, 4
      %v890 = vshll.u32 %v841, 16
      %v892 = vrot.slane %v890, 5
      %v893 = vsel %vm247, %v888, %v892
      %v895 = vshrl.u32 %v842, 16
      %v897 = vrot.slane %v895, 4
      %v898 = vshll.u32 %v842, 16
      %v900 = vrot.slane %v898, 5
      %v901 = vor.u32 %v897, %v900
      %v902 = vrot.slane %v901, 4
      %v904 = vshll.u32 %v843, 16
      %v906 = vrot.slane %v904, 5
      %v907 = vsel %vm247, %v902, %v906
      %v909 = vshrl.u32 %v844, 16
      %v911 = vrot.slane %v909, 4
      %v912 = vshll.u32 %v844, 16
      %v914 = vrot.slane %v912, 5
      %v915 = vor.u32 %v911, %v914
      %v916 = vrot.slane %v915, 4
      %v918 = vshll.u32 %v845, 16
      %v920 = vrot.slane %v918, 5
      %v921 = vsel %vm247, %v916, %v920
      %v923 = vshrl.u32 %v846, 16
      %v925 = vrot.slane %v923, 4
      %v926 = vshll.u32 %v846, 16
      %v928 = vrot.slane %v926, 5
      %v929 = vor.u32 %v925, %v928
      %v930 = vrot.slane %v929, 4
      %v932 = vshll.u32 %v847, 16
      %v934 = vrot.slane %v932, 5
      %v935 = vsel %vm247, %v930, %v934
      %v937 = vshrl.u32 %v848, 16
      %v939 = vrot.slane %v937, 4
      %v940 = vshll.u32 %v848, 16
      %v942 = vrot.slane %v940, 5
      %v943 = vor.u32 %v939, %v942
      %v944 = vrot.slane %v943, 4
      %v946 = vshll.u32 %v849, 16
      %v948 = vrot.slane %v946, 5
      %v949 = vsel %vm247, %v944, %v948
      %v951 = vshrl.u32 %v850, 16
      %v953 = vrot.slane %v951, 4
      %v954 = vshll.u32 %v850, 16
      %v956 = vrot.slane %v954, 5
      %v957 = vor.u32 %v953, %v956
      %v958 = vrot.slane %v957, 4
      %v960 = vshll.u32 %v851, 16
      %v962 = vrot.slane %v960, 5
      %v963 = vsel %vm247, %v958, %v962
      %s964 = scalar_lea.vmem %s211, 16
      %v965 = vld [vmem:[%s964] sm:$0xf]
      %v966 = vunpack.c.l.b16 %v865
      %v967 = vunpack.c.l.b16 %v879
      %v968 = vunpack.c.l.b16 %v893
      %v969 = vunpack.c.l.b16 %v907
      %v970 = vunpack.c.l.b16 %v921
      %v971 = vunpack.c.l.b16 %v935
      %v972 = vunpack.c.l.b16 %v949
      %v973 = vunpack.c.l.b16 %v963
      %v974 = vpack.c.b16 %v967, %v966
      %v975 = vpack.c.b16 %v969, %v968
      %v976 = vpack.c.b16 %v971, %v970
      %v977 = vpack.c.b16 %v973, %v972
      %v979 = vsel %vm374, %v974, 0
      %v982 = vsel %vm374, %v975, 0
      %v985 = vsel %vm374, %v976, 0
      %v988 = vsel %vm374, %v977, 0
      %v991 = vsel %vm387, %v965, 0
      %993 = vmatprep.subr.bf16.mxu0 0
      %994 = vmatpush1.bf16.msra.mxu0 %v991
      %995 = vmatprep.subr.bf16.mxu0 0
      %996 = vmatpush1.bf16.msra.mxu0 0
      %997 = vmatprep.subr.bf16.mxu0 0
      %998 = vmatpush1.bf16.msra.mxu0 0
      %999 = vmatprep.subr.bf16.mxu0 0
      %1000 = vmatpush1.bf16.msra.mxu0 0
      %1001 = vmatprep.subr.bf16.mxu0 0
      %1002 = vmatpush1.bf16.msra.mxu0 0
      %1003 = vmatprep.subr.bf16.mxu0 0
      %1004 = vmatpush1.bf16.msra.mxu0 0
      %1005 = vmatprep.subr.bf16.mxu0 0
      %1006 = vmatpush1.bf16.msra.mxu0 0
      %1007 = vmatprep.subr.bf16.mxu0 0
      %1008 = vmatpush1.bf16.msra.mxu0 0
      %1009 = vmatprep.subr.bf16.mxu0 0
      %1010 = vmatpush1.bf16.msra.mxu0 0
      %1011 = vmatprep.subr.bf16.mxu0 0
      %1012 = vmatpush1.bf16.msra.mxu0 0
      %1013 = vmatprep.subr.bf16.mxu0 0
      %1014 = vmatpush1.bf16.msra.mxu0 0
      %1015 = vmatprep.subr.bf16.mxu0 0
      %1016 = vmatpush1.bf16.msra.mxu0 0
      %1017 = vmatprep.subr.bf16.mxu0 0
      %1018 = vmatpush1.bf16.msra.mxu0 0
      %1019 = vmatprep.subr.bf16.mxu0 0
      %1020 = vmatpush1.bf16.msra.mxu0 0
      %1021 = vmatprep.subr.bf16.mxu0 0
      %1022 = vmatpush1.bf16.msra.mxu0 0
      %1023 = vmatprep.subr.bf16.mxu0 0
      %1024 = vmatpush1.bf16.msra.mxu0 0
      %1025 = vmatprep.mubr.bf16.mxu0 0
      %1026 = vmatmul.mubr.bf16.gmra.mrb[0].mxu0 %v979
      %v1027 = vpop.f32.mrb[0].mxu0
      %v1028 = vadd.f32 0.0, %v1027
      %v1029 = vpop.f32.mrb[0].mxu0
      %v1030 = vpop.f32.mrb[0].mxu0
      %v1031 = vadd.f32 0.0, %v1030
      %v1032 = vpop.f32.mrb[0].mxu0
      %1033 = vmatprep.mubr.bf16.mxu0 0
      %1034 = vmatmul.mubr.bf16.gmra.mrb[0].mxu0 %v982
      %v1035 = vpop.f32.mrb[0].mxu0
      %v1036 = vadd.f32 0.0, %v1035
      %v1037 = vpop.f32.mrb[0].mxu0
      %v1038 = vpop.f32.mrb[0].mxu0
      %v1039 = vadd.f32 0.0, %v1038
      %v1040 = vpop.f32.mrb[0].mxu0
      %1041 = vmatprep.mubr.bf16.mxu0 0
      %1042 = vmatmul.mubr.bf16.gmra.mrb[0].mxu0 %v985
      %v1043 = vpop.f32.mrb[0].mxu0
      %v1044 = vadd.f32 0.0, %v1043
      %v1045 = vpop.f32.mrb[0].mxu0
      %v1046 = vpop.f32.mrb[0].mxu0
      %v1047 = vadd.f32 0.0, %v1046
      %v1048 = vpop.f32.mrb[0].mxu0
      %1049 = vmatprep.mubr.bf16.mxu0 0
      %1050 = vmatmul.mubr.bf16.gmra.mrb[0].mxu0 %v988
      %v1051 = vpop.f32.mrb[0].mxu0
      %v1052 = vadd.f32 0.0, %v1051
      %v1053 = vpop.f32.mrb[0].mxu0
      %v1054 = vpop.f32.mrb[0].mxu0
      %v1055 = vadd.f32 0.0, %v1054
      %v1056 = vpop.f32.mrb[0].mxu0
      %1057 = vdwg.mxu0
      %v1058 = vadd.f32 %v828, %v1028
      %v1059 = vadd.f32 %v829, %v1031
      %v1060 = vadd.f32 %v830, %v1036
      %v1061 = vadd.f32 %v831, %v1039
      %v1062 = vadd.f32 %v832, %v1044
      %v1063 = vadd.f32 %v833, %v1047
      %v1064 = vadd.f32 %v834, %v1052
      %v1065 = vadd.f32 %v835, %v1055
      %v1066 = vld [vmem:[%s717] sm:$0xe]
      %v1067 = vld [vmem:[%s717 + $0x8] sm:$0xe]
      %v1068 = vld [vmem:[%s717 + $0x10] sm:$0xe]
      %v1069 = vld [vmem:[%s717 + $0x18] sm:$0xe]
      %v1070 = vld [vmem:[%s717 + $0x20] sm:$0xe]
      %v1071 = vld [vmem:[%s717 + $0x28] sm:$0xe]
      %v1072 = vld [vmem:[%s717 + $0x30] sm:$0xe]
      %v1073 = vld [vmem:[%s717 + $0x38] sm:$0xe]
      %v1090 = vrot.slane %v1066, 5
      %v1091 = vrot.slane %v1090, 4
      %v1092 = vrot.slane %v837, 5
      %v1093 = vsel %vm582, %v1091, %v1092
      %v1094 = vrot.slane %v1067, 5
      %v1095 = vrot.slane %v1094, 4
      %v1096 = vrot.slane %v839, 5
      %v1097 = vsel %vm582, %v1095, %v1096
      %v1098 = vrot.slane %v1068, 5
      %v1099 = vrot.slane %v1098, 4
      %v1100 = vrot.slane %v841, 5
      %v1101 = vsel %vm582, %v1099, %v1100
      %v1102 = vrot.slane %v1069, 5
      %v1103 = vrot.slane %v1102, 4
      %v1104 = vrot.slane %v843, 5
      %v1105 = vsel %vm582, %v1103, %v1104
      %v1106 = vrot.slane %v1070, 5
      %v1107 = vrot.slane %v1106, 4
      %v1108 = vrot.slane %v845, 5
      %v1109 = vsel %vm582, %v1107, %v1108
      %v1110 = vrot.slane %v1071, 5
      %v1111 = vrot.slane %v1110, 4
      %v1112 = vrot.slane %v847, 5
      %v1113 = vsel %vm582, %v1111, %v1112
      %v1114 = vrot.slane %v1072, 5
      %v1115 = vrot.slane %v1114, 4
      %v1116 = vrot.slane %v849, 5
      %v1117 = vsel %vm582, %v1115, %v1116
      %v1118 = vrot.slane %v1073, 5
      %v1119 = vrot.slane %v1118, 4
      %v1120 = vrot.slane %v851, 5
      %v1121 = vsel %vm582, %v1119, %v1120
      %s1122 = scalar_lea.vmem %s211, 20
      %v1123 = vld [vmem:[%s1122] sm:$0xf]
      %v1124 = vunpack.c.l.b16 %v1093
      %v1125 = vunpack.c.l.b16 %v1097
      %v1126 = vunpack.c.l.b16 %v1101
      %v1127 = vunpack.c.l.b16 %v1105
      %v1128 = vunpack.c.l.b16 %v1109
      %v1129 = vunpack.c.l.b16 %v1113
      %v1130 = vunpack.c.l.b16 %v1117
      %v1131 = vunpack.c.l.b16 %v1121
      %v1132 = vpack.c.b16 %v1125, %v1124
      %v1133 = vpack.c.b16 %v1127, %v1126
      %v1134 = vpack.c.b16 %v1129, %v1128
      %v1135 = vpack.c.b16 %v1131, %v1130
      %v1137 = vsel %vm374, %v1132, 0
      %v1140 = vsel %vm374, %v1133, 0
      %v1143 = vsel %vm374, %v1134, 0
      %v1146 = vsel %vm374, %v1135, 0
      %v1149 = vsel %vm387, %v1123, 0
      %1151 = vmatprep.subr.bf16.mxu0 0
      %1152 = vmatpush1.bf16.msra.mxu0 %v1149
      %1153 = vmatprep.subr.bf16.mxu0 0
      %1154 = vmatpush1.bf16.msra.mxu0 0
      %1155 = vmatprep.subr.bf16.mxu0 0
      %1156 = vmatpush1.bf16.msra.mxu0 0
      %1157 = vmatprep.subr.bf16.mxu0 0
      %1158 = vmatpush1.bf16.msra.mxu0 0
      %1159 = vmatprep.subr.bf16.mxu0 0
      %1160 = vmatpush1.bf16.msra.mxu0 0
      %1161 = vmatprep.subr.bf16.mxu0 0
      %1162 = vmatpush1.bf16.msra.mxu0 0
      %1163 = vmatprep.subr.bf16.mxu0 0
      %1164 = vmatpush1.bf16.msra.mxu0 0
      %1165 = vmatprep.subr.bf16.mxu0 0
      %1166 = vmatpush1.bf16.msra.mxu0 0
      %1167 = vmatprep.subr.bf16.mxu0 0
      %1168 = vmatpush1.bf16.msra.mxu0 0
      %1169 = vmatprep.subr.bf16.mxu0 0
      %1170 = vmatpush1.bf16.msra.mxu0 0
      %1171 = vmatprep.subr.bf16.mxu0 0
      %1172 = vmatpush1.bf16.msra.mxu0 0
      %1173 = vmatprep.subr.bf16.mxu0 0
      %1174 = vmatpush1.bf16.msra.mxu0 0
      %1175 = vmatprep.subr.bf16.mxu0 0
      %1176 = vmatpush1.bf16.msra.mxu0 0
      %1177 = vmatprep.subr.bf16.mxu0 0
      %1178 = vmatpush1.bf16.msra.mxu0 0
      %1179 = vmatprep.subr.bf16.mxu0 0
      %1180 = vmatpush1.bf16.msra.mxu0 0
      %1181 = vmatprep.subr.bf16.mxu0 0
      %1182 = vmatpush1.bf16.msra.mxu0 0
      %1183 = vmatprep.mubr.bf16.mxu0 0
      %1184 = vmatmul.mubr.bf16.gmra.mrb[0].mxu0 %v1137
      %v1185 = vpop.f32.mrb[0].mxu0
      %v1186 = vadd.f32 0.0, %v1185
      %v1187 = vpop.f32.mrb[0].mxu0
      %v1188 = vpop.f32.mrb[0].mxu0
      %v1189 = vadd.f32 0.0, %v1188
      %v1190 = vpop.f32.mrb[0].mxu0
      %1191 = vmatprep.mubr.bf16.mxu0 0
      %1192 = vmatmul.mubr.bf16.gmra.mrb[0].mxu0 %v1140
      %v1193 = vpop.f32.mrb[0].mxu0
      %v1194 = vadd.f32 0.0, %v1193
      %v1195 = vpop.f32.mrb[0].mxu0
      %v1196 = vpop.f32.mrb[0].mxu0
      %v1197 = vadd.f32 0.0, %v1196
      %v1198 = vpop.f32.mrb[0].mxu0
      %1199 = vmatprep.mubr.bf16.mxu0 0
      %1200 = vmatmul.mubr.bf16.gmra.mrb[0].mxu0 %v1143
      %v1201 = vpop.f32.mrb[0].mxu0
      %v1202 = vadd.f32 0.0, %v1201
      %v1203 = vpop.f32.mrb[0].mxu0
      %v1204 = vpop.f32.mrb[0].mxu0
      %v1205 = vadd.f32 0.0, %v1204
      %v1206 = vpop.f32.mrb[0].mxu0
      %1207 = vmatprep.mubr.bf16.mxu0 0
      %1208 = vmatmul.mubr.bf16.gmra.mrb[0].mxu0 %v1146
      %v1209 = vpop.f32.mrb[0].mxu0
      %v1210 = vadd.f32 0.0, %v1209
      %v1211 = vpop.f32.mrb[0].mxu0
      %v1212 = vpop.f32.mrb[0].mxu0
      %v1213 = vadd.f32 0.0, %v1212
      %v1214 = vpop.f32.mrb[0].mxu0
      %1215 = vdwg.mxu0
      %v1216 = vadd.f32 %v1058, %v1186
      %v1217 = vadd.f32 %v1059, %v1189
      %v1218 = vadd.f32 %v1060, %v1194
      %v1219 = vadd.f32 %v1061, %v1197
      %v1220 = vadd.f32 %v1062, %v1202
      %v1221 = vadd.f32 %v1063, %v1205
      %v1222 = vadd.f32 %v1064, %v1210
      %v1223 = vadd.f32 %v1065, %v1213
      %s1224 = scalar_lea.vmem %s207, 16
      %v1225 = vld [vmem:[%s1224] sm:$0xf]
      %v1226 = vld [vmem:[%s1224 + $0x8] sm:$0xf]
      %v1227 = vld [vmem:[%s1224 + $0x10] sm:$0xf]
      %v1228 = vld [vmem:[%s1224 + $0x18] sm:$0xf]
      %v1229 = vld [vmem:[%s1224 + $0x20] sm:$0xf]
      %v1230 = vld [vmem:[%s1224 + $0x28] sm:$0xf]
      %v1231 = vld [vmem:[%s1224 + $0x30] sm:$0xf]
      %v1232 = vld [vmem:[%s1224 + $0x38] sm:$0xf]
      %s1233 = scalar_lea.vmem %s211, 24
      %v1234 = vld [vmem:[%s1233] sm:$0xf]
      %v1243 = vunpack.c.l.b16 %v1225
      %v1244 = vunpack.c.l.b16 %v1226
      %v1245 = vunpack.c.l.b16 %v1227
      %v1246 = vunpack.c.l.b16 %v1228
      %v1247 = vunpack.c.l.b16 %v1229
      %v1248 = vunpack.c.l.b16 %v1230
      %v1249 = vunpack.c.l.b16 %v1231
      %v1250 = vunpack.c.l.b16 %v1232
      %v1251 = vpack.c.b16 %v1244, %v1243
      %v1252 = vpack.c.b16 %v1246, %v1245
      %v1253 = vpack.c.b16 %v1248, %v1247
      %v1254 = vpack.c.b16 %v1250, %v1249
      %v1256 = vsel %vm374, %v1251, 0
      %v1259 = vsel %vm374, %v1252, 0
      %v1262 = vsel %vm374, %v1253, 0
      %v1265 = vsel %vm374, %v1254, 0
      %v1268 = vsel %vm387, %v1234, 0
      %1270 = vmatprep.subr.bf16.mxu0 0
      %1271 = vmatpush1.bf16.msra.mxu0 %v1268
      %1272 = vmatprep.subr.bf16.mxu0 0
      %1273 = vmatpush1.bf16.msra.mxu0 0
      %1274 = vmatprep.subr.bf16.mxu0 0
      %1275 = vmatpush1.bf16.msra.mxu0 0
      %1276 = vmatprep.subr.bf16.mxu0 0
      %1277 = vmatpush1.bf16.msra.mxu0 0
      %1278 = vmatprep.subr.bf16.mxu0 0
      %1279 = vmatpush1.bf16.msra.mxu0 0
      %1280 = vmatprep.subr.bf16.mxu0 0
      %1281 = vmatpush1.bf16.msra.mxu0 0
      %1282 = vmatprep.subr.bf16.mxu0 0
      %1283 = vmatpush1.bf16.msra.mxu0 0
      %1284 = vmatprep.subr.bf16.mxu0 0
      %1285 = vmatpush1.bf16.msra.mxu0 0
      %1286 = vmatprep.subr.bf16.mxu0 0
      %1287 = vmatpush1.bf16.msra.mxu0 0
      %1288 = vmatprep.subr.bf16.mxu0 0
      %1289 = vmatpush1.bf16.msra.mxu0 0
      %1290 = vmatprep.subr.bf16.mxu0 0
      %1291 = vmatpush1.bf16.msra.mxu0 0
      %1292 = vmatprep.subr.bf16.mxu0 0
      %1293 = vmatpush1.bf16.msra.mxu0 0
      %1294 = vmatprep.subr.bf16.mxu0 0
      %1295 = vmatpush1.bf16.msra.mxu0 0
      %1296 = vmatprep.subr.bf16.mxu0 0
      %1297 = vmatpush1.bf16.msra.mxu0 0
      %1298 = vmatprep.subr.bf16.mxu0 0
      %1299 = vmatpush1.bf16.msra.mxu0 0
      %1300 = vmatprep.subr.bf16.mxu0 0
      %1301 = vmatpush1.bf16.msra.mxu0 0
      %1302 = vmatprep.mubr.bf16.mxu0 0
      %1303 = vmatmul.mubr.bf16.gmra.mrb[0].mxu0 %v1256
      %v1304 = vpop.f32.mrb[0].mxu0
      %v1305 = vadd.f32 0.0, %v1304
      %v1306 = vpop.f32.mrb[0].mxu0
      %v1307 = vpop.f32.mrb[0].mxu0
      %v1308 = vadd.f32 0.0, %v1307
      %v1309 = vpop.f32.mrb[0].mxu0
      %1310 = vmatprep.mubr.bf16.mxu0 0
      %1311 = vmatmul.mubr.bf16.gmra.mrb[0].mxu0 %v1259
      %v1312 = vpop.f32.mrb[0].mxu0
      %v1313 = vadd.f32 0.0, %v1312
      %v1314 = vpop.f32.mrb[0].mxu0
      %v1315 = vpop.f32.mrb[0].mxu0
      %v1316 = vadd.f32 0.0, %v1315
      %v1317 = vpop.f32.mrb[0].mxu0
      %1318 = vmatprep.mubr.bf16.mxu0 0
      %1319 = vmatmul.mubr.bf16.gmra.mrb[0].mxu0 %v1262
      %v1320 = vpop.f32.mrb[0].mxu0
      %v1321 = vadd.f32 0.0, %v1320
      %v1322 = vpop.f32.mrb[0].mxu0
      %v1323 = vpop.f32.mrb[0].mxu0
      %v1324 = vadd.f32 0.0, %v1323
      %v1325 = vpop.f32.mrb[0].mxu0
      %1326 = vmatprep.mubr.bf16.mxu0 0
      %1327 = vmatmul.mubr.bf16.gmra.mrb[0].mxu0 %v1265
      %v1328 = vpop.f32.mrb[0].mxu0
      %v1329 = vadd.f32 0.0, %v1328
      %v1330 = vpop.f32.mrb[0].mxu0
      %v1331 = vpop.f32.mrb[0].mxu0
      %v1332 = vadd.f32 0.0, %v1331
      %v1333 = vpop.f32.mrb[0].mxu0
      %1334 = vdwg.mxu0
      %v1335 = vadd.f32 %v1216, %v1305
      %v1336 = vadd.f32 %v1217, %v1308
      %v1337 = vadd.f32 %v1218, %v1313
      %v1338 = vadd.f32 %v1219, %v1316
      %v1339 = vadd.f32 %v1220, %v1321
      %v1340 = vadd.f32 %v1221, %v1324
      %v1341 = vadd.f32 %v1222, %v1329
      %v1342 = vadd.f32 %v1223, %v1332
      %v1343 = vld [vmem:[%s1224] sm:$0xf]
      %v1344 = vld [vmem:[%s1224 + $0x4] sm:$0x1]
      %v1345 = vld [vmem:[%s1224 + $0x8] sm:$0xf]
      %v1346 = vld [vmem:[%s1224 + $0xc] sm:$0x1]
      %v1347 = vld [vmem:[%s1224 + $0x10] sm:$0xf]
      %v1348 = vld [vmem:[%s1224 + $0x14] sm:$0x1]
      %v1349 = vld [vmem:[%s1224 + $0x18] sm:$0xf]
      %v1350 = vld [vmem:[%s1224 + $0x1c] sm:$0x1]
      %v1351 = vld [vmem:[%s1224 + $0x20] sm:$0xf]
      %v1352 = vld [vmem:[%s1224 + $0x24] sm:$0x1]
      %v1353 = vld [vmem:[%s1224 + $0x28] sm:$0xf]
      %v1354 = vld [vmem:[%s1224 + $0x2c] sm:$0x1]
      %v1355 = vld [vmem:[%s1224 + $0x30] sm:$0xf]
      %v1356 = vld [vmem:[%s1224 + $0x34] sm:$0x1]
      %v1357 = vld [vmem:[%s1224 + $0x38] sm:$0xf]
      %v1358 = vld [vmem:[%s1224 + $0x3c] sm:$0x1]
      %v1360 = vshrl.u32 %v1343, 16
      %v1362 = vrot.slane %v1360, 4
      %v1363 = vshll.u32 %v1343, 16
      %v1365 = vrot.slane %v1363, 5
      %v1366 = vor.u32 %v1362, %v1365
      %v1367 = vrot.slane %v1366, 4
      %v1369 = vshll.u32 %v1344, 16
      %v1371 = vrot.slane %v1369, 5
      %v1372 = vsel %vm247, %v1367, %v1371
      %v1374 = vshrl.u32 %v1345, 16
      %v1376 = vrot.slane %v1374, 4
      %v1377 = vshll.u32 %v1345, 16
      %v1379 = vrot.slane %v1377, 5
      %v1380 = vor.u32 %v1376, %v1379
      %v1381 = vrot.slane %v1380, 4
      %v1383 = vshll.u32 %v1346, 16
      %v1385 = vrot.slane %v1383, 5
      %v1386 = vsel %vm247, %v1381, %v1385
      %v1388 = vshrl.u32 %v1347, 16
      %v1390 = vrot.slane %v1388, 4
      %v1391 = vshll.u32 %v1347, 16
      %v1393 = vrot.slane %v1391, 5
      %v1394 = vor.u32 %v1390, %v1393
      %v1395 = vrot.slane %v1394, 4
      %v1397 = vshll.u32 %v1348, 16
      %v1399 = vrot.slane %v1397, 5
      %v1400 = vsel %vm247, %v1395, %v1399
      %v1402 = vshrl.u32 %v1349, 16
      %v1404 = vrot.slane %v1402, 4
      %v1405 = vshll.u32 %v1349, 16
      %v1407 = vrot.slane %v1405, 5
      %v1408 = vor.u32 %v1404, %v1407
      %v1409 = vrot.slane %v1408, 4
      %v1411 = vshll.u32 %v1350, 16
      %v1413 = vrot.slane %v1411, 5
      %v1414 = vsel %vm247, %v1409, %v1413
      %v1416 = vshrl.u32 %v1351, 16
      %v1418 = vrot.slane %v1416, 4
      %v1419 = vshll.u32 %v1351, 16
      %v1421 = vrot.slane %v1419, 5
      %v1422 = vor.u32 %v1418, %v1421
      %v1423 = vrot.slane %v1422, 4
      %v1425 = vshll.u32 %v1352, 16
      %v1427 = vrot.slane %v1425, 5
      %v1428 = vsel %vm247, %v1423, %v1427
      %v1430 = vshrl.u32 %v1353, 16
      %v1432 = vrot.slane %v1430, 4
      %v1433 = vshll.u32 %v1353, 16
      %v1435 = vrot.slane %v1433, 5
      %v1436 = vor.u32 %v1432, %v1435
      %v1437 = vrot.slane %v1436, 4
      %v1439 = vshll.u32 %v1354, 16
      %v1441 = vrot.slane %v1439, 5
      %v1442 = vsel %vm247, %v1437, %v1441
      %v1444 = vshrl.u32 %v1355, 16
      %v1446 = vrot.slane %v1444, 4
      %v1447 = vshll.u32 %v1355, 16
      %v1449 = vrot.slane %v1447, 5
      %v1450 = vor.u32 %v1446, %v1449
      %v1451 = vrot.slane %v1450, 4
      %v1453 = vshll.u32 %v1356, 16
      %v1455 = vrot.slane %v1453, 5
      %v1456 = vsel %vm247, %v1451, %v1455
      %v1458 = vshrl.u32 %v1357, 16
      %v1460 = vrot.slane %v1458, 4
      %v1461 = vshll.u32 %v1357, 16
      %v1463 = vrot.slane %v1461, 5
      %v1464 = vor.u32 %v1460, %v1463
      %v1465 = vrot.slane %v1464, 4
      %v1467 = vshll.u32 %v1358, 16
      %v1469 = vrot.slane %v1467, 5
      %v1470 = vsel %vm247, %v1465, %v1469
      %s1471 = scalar_lea.vmem %s211, 28
      %v1472 = vld [vmem:[%s1471] sm:$0xf]
      %v1473 = vunpack.c.l.b16 %v1372
      %v1474 = vunpack.c.l.b16 %v1386
      %v1475 = vunpack.c.l.b16 %v1400
      %v1476 = vunpack.c.l.b16 %v1414
      %v1477 = vunpack.c.l.b16 %v1428
      %v1478 = vunpack.c.l.b16 %v1442
      %v1479 = vunpack.c.l.b16 %v1456
      %v1480 = vunpack.c.l.b16 %v1470
      %v1481 = vpack.c.b16 %v1474, %v1473
      %v1482 = vpack.c.b16 %v1476, %v1475
      %v1483 = vpack.c.b16 %v1478, %v1477
      %v1484 = vpack.c.b16 %v1480, %v1479
      %v1486 = vsel %vm374, %v1481, 0
      %v1489 = vsel %vm374, %v1482, 0
      %v1492 = vsel %vm374, %v1483, 0
      %v1495 = vsel %vm374, %v1484, 0
      %v1498 = vsel %vm387, %v1472, 0
      %1500 = vmatprep.subr.bf16.mxu0 0
      %1501 = vmatpush1.bf16.msra.mxu0 %v1498
      %1502 = vmatprep.subr.bf16.mxu0 0
      %1503 = vmatpush1.bf16.msra.mxu0 0
      %1504 = vmatprep.subr.bf16.mxu0 0
      %1505 = vmatpush1.bf16.msra.mxu0 0
      %1506 = vmatprep.subr.bf16.mxu0 0
      %1507 = vmatpush1.bf16.msra.mxu0 0
      %1508 = vmatprep.subr.bf16.mxu0 0
      %1509 = vmatpush1.bf16.msra.mxu0 0
      %1510 = vmatprep.subr.bf16.mxu0 0
      %1511 = vmatpush1.bf16.msra.mxu0 0
      %1512 = vmatprep.subr.bf16.mxu0 0
      %1513 = vmatpush1.bf16.msra.mxu0 0
      %1514 = vmatprep.subr.bf16.mxu0 0
      %1515 = vmatpush1.bf16.msra.mxu0 0
      %1516 = vmatprep.subr.bf16.mxu0 0
      %1517 = vmatpush1.bf16.msra.mxu0 0
      %1518 = vmatprep.subr.bf16.mxu0 0
      %1519 = vmatpush1.bf16.msra.mxu0 0
      %1520 = vmatprep.subr.bf16.mxu0 0
      %1521 = vmatpush1.bf16.msra.mxu0 0
      %1522 = vmatprep.subr.bf16.mxu0 0
      %1523 = vmatpush1.bf16.msra.mxu0 0
      %1524 = vmatprep.subr.bf16.mxu0 0
      %1525 = vmatpush1.bf16.msra.mxu0 0
      %1526 = vmatprep.subr.bf16.mxu0 0
      %1527 = vmatpush1.bf16.msra.mxu0 0
      %1528 = vmatprep.subr.bf16.mxu0 0
      %1529 = vmatpush1.bf16.msra.mxu0 0
      %1530 = vmatprep.subr.bf16.mxu0 0
      %1531 = vmatpush1.bf16.msra.mxu0 0
      %1532 = vmatprep.mubr.bf16.mxu0 0
      %1533 = vmatmul.mubr.bf16.gmra.mrb[0].mxu0 %v1486
      %v1534 = vpop.f32.mrb[0].mxu0
      %v1535 = vadd.f32 0.0, %v1534
      %v1536 = vpop.f32.mrb[0].mxu0
      %v1537 = vpop.f32.mrb[0].mxu0
      %v1538 = vadd.f32 0.0, %v1537
      %v1539 = vpop.f32.mrb[0].mxu0
      %1540 = vmatprep.mubr.bf16.mxu0 0
      %1541 = vmatmul.mubr.bf16.gmra.mrb[0].mxu0 %v1489
      %v1542 = vpop.f32.mrb[0].mxu0
      %v1543 = vadd.f32 0.0, %v1542
      %v1544 = vpop.f32.mrb[0].mxu0
      %v1545 = vpop.f32.mrb[0].mxu0
      %v1546 = vadd.f32 0.0, %v1545
      %v1547 = vpop.f32.mrb[0].mxu0
      %1548 = vmatprep.mubr.bf16.mxu0 0
      %1549 = vmatmul.mubr.bf16.gmra.mrb[0].mxu0 %v1492
      %v1550 = vpop.f32.mrb[0].mxu0
      %v1551 = vadd.f32 0.0, %v1550
      %v1552 = vpop.f32.mrb[0].mxu0
      %v1553 = vpop.f32.mrb[0].mxu0
      %v1554 = vadd.f32 0.0, %v1553
      %v1555 = vpop.f32.mrb[0].mxu0
      %1556 = vmatprep.mubr.bf16.mxu0 0
      %1557 = vmatmul.mubr.bf16.gmra.mrb[0].mxu0 %v1495
      %v1558 = vpop.f32.mrb[0].mxu0
      %v1559 = vadd.f32 0.0, %v1558
      %v1560 = vpop.f32.mrb[0].mxu0
      %v1561 = vpop.f32.mrb[0].mxu0
      %v1562 = vadd.f32 0.0, %v1561
      %v1563 = vpop.f32.mrb[0].mxu0
      %1564 = vdwg.mxu0
      %v1565 = vadd.f32 %v1335, %v1535
      %v1566 = vadd.f32 %v1336, %v1538
      %v1567 = vadd.f32 %v1337, %v1543
      %v1568 = vadd.f32 %v1338, %v1546
      %v1569 = vadd.f32 %v1339, %v1551
      %v1570 = vadd.f32 %v1340, %v1554
      %v1571 = vadd.f32 %v1341, %v1559
      %v1572 = vadd.f32 %v1342, %v1562
      %v1573 = vld [vmem:[%s1224] sm:$0xe]
      %v1574 = vld [vmem:[%s1224 + $0x8] sm:$0xe]
      %v1575 = vld [vmem:[%s1224 + $0x10] sm:$0xe]
      %v1576 = vld [vmem:[%s1224 + $0x18] sm:$0xe]
      %v1577 = vld [vmem:[%s1224 + $0x20] sm:$0xe]
      %v1578 = vld [vmem:[%s1224 + $0x28] sm:$0xe]
      %v1579 = vld [vmem:[%s1224 + $0x30] sm:$0xe]
      %v1580 = vld [vmem:[%s1224 + $0x38] sm:$0xe]
      %v1597 = vrot.slane %v1573, 5
      %v1598 = vrot.slane %v1597, 4
      %v1599 = vrot.slane %v1344, 5
      %v1600 = vsel %vm582, %v1598, %v1599
      %v1601 = vrot.slane %v1574, 5
      %v1602 = vrot.slane %v1601, 4
      %v1603 = vrot.slane %v1346, 5
      %v1604 = vsel %vm582, %v1602, %v1603
      %v1605 = vrot.slane %v1575, 5
      %v1606 = vrot.slane %v1605, 4
      %v1607 = vrot.slane %v1348, 5
      %v1608 = vsel %vm582, %v1606, %v1607
      %v1609 = vrot.slane %v1576, 5
      %v1610 = vrot.slane %v1609, 4
      %v1611 = vrot.slane %v1350, 5
      %v1612 = vsel %vm582, %v1610, %v1611
      %v1613 = vrot.slane %v1577, 5
      %v1614 = vrot.slane %v1613, 4
      %v1615 = vrot.slane %v1352, 5
      %v1616 = vsel %vm582, %v1614, %v1615
      %v1617 = vrot.slane %v1578, 5
      %v1618 = vrot.slane %v1617, 4
      %v1619 = vrot.slane %v1354, 5
      %v1620 = vsel %vm582, %v1618, %v1619
      %v1621 = vrot.slane %v1579, 5
      %v1622 = vrot.slane %v1621, 4
      %v1623 = vrot.slane %v1356, 5
      %v1624 = vsel %vm582, %v1622, %v1623
      %v1625 = vrot.slane %v1580, 5
      %v1626 = vrot.slane %v1625, 4
      %v1627 = vrot.slane %v1358, 5
      %v1628 = vsel %vm582, %v1626, %v1627
      %s1629 = scalar_lea.vmem %s211, 32
      %v1630 = vld [vmem:[%s1629] sm:$0xf]
      %v1631 = vunpack.c.l.b16 %v1600
      %v1632 = vunpack.c.l.b16 %v1604
      %v1633 = vunpack.c.l.b16 %v1608
      %v1634 = vunpack.c.l.b16 %v1612
      %v1635 = vunpack.c.l.b16 %v1616
      %v1636 = vunpack.c.l.b16 %v1620
      %v1637 = vunpack.c.l.b16 %v1624
      %v1638 = vunpack.c.l.b16 %v1628
      %v1639 = vpack.c.b16 %v1632, %v1631
      %v1640 = vpack.c.b16 %v1634, %v1633
      %v1641 = vpack.c.b16 %v1636, %v1635
      %v1642 = vpack.c.b16 %v1638, %v1637
      %v1644 = vsel %vm374, %v1639, 0
      %v1647 = vsel %vm374, %v1640, 0
      %v1650 = vsel %vm374, %v1641, 0
      %v1653 = vsel %vm374, %v1642, 0
      %v1656 = vsel %vm387, %v1630, 0
      %1658 = vmatprep.subr.bf16.mxu0 0
      %1659 = vmatpush1.bf16.msra.mxu0 %v1656
      %1660 = vmatprep.subr.bf16.mxu0 0
      %1661 = vmatpush1.bf16.msra.mxu0 0
      %1662 = vmatprep.subr.bf16.mxu0 0
      %1663 = vmatpush1.bf16.msra.mxu0 0
      %1664 = vmatprep.subr.bf16.mxu0 0
      %1665 = vmatpush1.bf16.msra.mxu0 0
      %1666 = vmatprep.subr.bf16.mxu0 0
      %1667 = vmatpush1.bf16.msra.mxu0 0
      %1668 = vmatprep.subr.bf16.mxu0 0
      %1669 = vmatpush1.bf16.msra.mxu0 0
      %1670 = vmatprep.subr.bf16.mxu0 0
      %1671 = vmatpush1.bf16.msra.mxu0 0
      %1672 = vmatprep.subr.bf16.mxu0 0
      %1673 = vmatpush1.bf16.msra.mxu0 0
      %1674 = vmatprep.subr.bf16.mxu0 0
      %1675 = vmatpush1.bf16.msra.mxu0 0
      %1676 = vmatprep.subr.bf16.mxu0 0
      %1677 = vmatpush1.bf16.msra.mxu0 0
      %1678 = vmatprep.subr.bf16.mxu0 0
      %1679 = vmatpush1.bf16.msra.mxu0 0
      %1680 = vmatprep.subr.bf16.mxu0 0
      %1681 = vmatpush1.bf16.msra.mxu0 0
      %1682 = vmatprep.subr.bf16.mxu0 0
      %1683 = vmatpush1.bf16.msra.mxu0 0
      %1684 = vmatprep.subr.bf16.mxu0 0
      %1685 = vmatpush1.bf16.msra.mxu0 0
      %1686 = vmatprep.subr.bf16.mxu0 0
      %1687 = vmatpush1.bf16.msra.mxu0 0
      %1688 = vmatprep.subr.bf16.mxu0 0
      %1689 = vmatpush1.bf16.msra.mxu0 0
      %1690 = vmatprep.mubr.bf16.mxu0 0
      %1691 = vmatmul.mubr.bf16.gmra.mrb[0].mxu0 %v1644
      %v1692 = vpop.f32.mrb[0].mxu0
      %v1693 = vadd.f32 0.0, %v1692
      %v1694 = vpop.f32.mrb[0].mxu0
      %v1695 = vpop.f32.mrb[0].mxu0
      %v1696 = vadd.f32 0.0, %v1695
      %v1697 = vpop.f32.mrb[0].mxu0
      %1698 = vmatprep.mubr.bf16.mxu0 0
      %1699 = vmatmul.mubr.bf16.gmra.mrb[0].mxu0 %v1647
      %v1700 = vpop.f32.mrb[0].mxu0
      %v1701 = vadd.f32 0.0, %v1700
      %v1702 = vpop.f32.mrb[0].mxu0
      %v1703 = vpop.f32.mrb[0].mxu0
      %v1704 = vadd.f32 0.0, %v1703
      %v1705 = vpop.f32.mrb[0].mxu0
      %1706 = vmatprep.mubr.bf16.mxu0 0
      %1707 = vmatmul.mubr.bf16.gmra.mrb[0].mxu0 %v1650
      %v1708 = vpop.f32.mrb[0].mxu0
      %v1709 = vadd.f32 0.0, %v1708
      %v1710 = vpop.f32.mrb[0].mxu0
      %v1711 = vpop.f32.mrb[0].mxu0
      %v1712 = vadd.f32 0.0, %v1711
      %v1713 = vpop.f32.mrb[0].mxu0
      %1714 = vmatprep.mubr.bf16.mxu0 0
      %1715 = vmatmul.mubr.bf16.gmra.mrb[0].mxu0 %v1653
      %v1716 = vpop.f32.mrb[0].mxu0
      %v1717 = vadd.f32 0.0, %v1716
      %v1718 = vpop.f32.mrb[0].mxu0
      %v1719 = vpop.f32.mrb[0].mxu0
      %v1720 = vadd.f32 0.0, %v1719
      %v1721 = vpop.f32.mrb[0].mxu0
      %1722 = vdwg.mxu0
      %v1723 = vadd.f32 %v1565, %v1693
      %v1724 = vadd.f32 %v1566, %v1696
      %v1725 = vadd.f32 %v1567, %v1701
      %v1726 = vadd.f32 %v1568, %v1704
      %v1727 = vadd.f32 %v1569, %v1709
      %v1728 = vadd.f32 %v1570, %v1712
      %v1729 = vadd.f32 %v1571, %v1717
      %v1730 = vadd.f32 %v1572, %v1720
      %1731 = vst [vmem:[%s219] sm:$0xff] %v1723
      %1732 = vst [vmem:[%s219 + $0x8] sm:$0xff] %v1724
      %1733 = vst [vmem:[%s219 + $0x10] sm:$0xff] %v1725
      %1734 = vst [vmem:[%s219 + $0x18] sm:$0xff] %v1726
      %1735 = vst [vmem:[%s219 + $0x20] sm:$0xff] %v1727
      %1736 = vst [vmem:[%s219 + $0x28] sm:$0xff] %v1728
      %1737 = vst [vmem:[%s219 + $0x30] sm:$0xff] %v1729
      %1738 = vst [vmem:[%s219 + $0x38] sm:$0xff] %v1730
      %v1739 = vadd.f32 %v1723, %v1724
      %v1740 = vadd.f32 %v1739, %v1725
      %v1741 = vadd.f32 %v1740, %v1726
      %v1742 = vadd.f32 %v1741, %v1727
      %v1743 = vadd.f32 %v1742, %v1728
      %v1744 = vadd.f32 %v1743, %v1729
      %v1745 = vadd.f32 %v1744, %v1730
      %v1746 = vrot.slane %v1745, 4
      %v1747 = vadd.f32 %v1745, %v1746
      %v1748 = vrot.slane %v1747, 2
      %v1749 = vadd.f32 %v1747, %v1748
      %v1750 = vrot.slane %v1749, 1
      %v1751 = vadd.f32 %v1749, %v1750
      %1752 = vst [vmem:[%s226] sm:$0x1] %v1751
      %v1753 = vmul.f32 %v1723, %v1723
      %v1754 = vmul.f32 %v1724, %v1724
      %v1755 = vmul.f32 %v1725, %v1725
      %v1756 = vmul.f32 %v1726, %v1726
      %v1757 = vmul.f32 %v1727, %v1727
      %v1758 = vmul.f32 %v1728, %v1728
      %v1759 = vmul.f32 %v1729, %v1729
      %v1760 = vmul.f32 %v1730, %v1730
      %v1761 = vadd.f32 %v1753, %v1754
      %v1762 = vadd.f32 %v1761, %v1755
      %v1763 = vadd.f32 %v1762, %v1756
      %v1764 = vadd.f32 %v1763, %v1757
      %v1765 = vadd.f32 %v1764, %v1758
      %v1766 = vadd.f32 %v1765, %v1759
      %v1767 = vadd.f32 %v1766, %v1760
      %v1768 = vrot.slane %v1767, 4
      %v1769 = vadd.f32 %v1767, %v1768
      %v1770 = vrot.slane %v1769, 2
      %v1771 = vadd.f32 %v1769, %v1770
      %v1772 = vrot.slane %v1771, 1
      %v1773 = vadd.f32 %v1771, %v1772
      %1774 = vst [vmem:[%s226 + $0x1] sm:$0x1] %v1773
      %p1775 = scmp.lt.s32.totalorder %s19, 1
      %s1776 = scalar_select %p1775, %s19, 1
      %p1777 = scmp.lt.s32.totalorder %s20, 0
      %s1778 = scalar_select %p1777, %s20, 0
      %s1779 = smul.addr %s1776, 8
      %s1780 = sadd.s32 %s1778, %s1779
      %s1781 = smul.addr %s1780, 8
      %s1782 = scalar_lea.vmem %s2, %s1781
      %p1783 = scmp.lt.s32.totalorder %s19, 1
      %s1784 = scalar_select %p1783, %s19, 1
      %p1785 = scmp.lt.s32.totalorder %s20, 0
      %s1786 = scalar_select %p1785, %s20, 0
      %s1787 = sadd.s32 %s1786, %s1784
      %s1788 = smul.addr %s1787, 2
      %s1789 = scalar_lea.vmem %s3, %s1788
      // Predicated region
      $region29: #{basic_block_forward.7} parent=27 // pred_check
        %p1790 = pneg %p99
      $region30: #{basic_block_forward.7} parent=27 // pred_check_branch
        %1792 = sbr.rel (%p1790) target = $region32
      $region31: #{basic_block_forward.7} parent=27 // pred_region
        _
      $region32: #{basic_block_forward.7} parent=27 // pred_fallthru
        _
      // Predicated region
      $region33: #{basic_block_forward.7} parent=27 // pred_check
        %p1793 = pneg %p127
      $region34: #{basic_block_forward.7} parent=27 // pred_check_branch
        %1795 = sbr.rel (%p1793) target = $region36
      $region35: #{basic_block_forward.7} parent=27 // pred_region
        _
      $region36: #{basic_block_forward.7} parent=27 // pred_fallthru
        _
    $region28: #{basic_block_forward.7} parent=5 // pred_fallthru
      _
    %p1796 = scmp.le.s32.totalorder 2, %s10
    // Predicated region
    $region37: #{basic_block_forward.7} parent=5 // pred_check
      %p1797 = pneg %p1796
    $region38: #{basic_block_forward.7} parent=5 // pred_check_branch
      %1799 = sbr.rel (%p1797) target = $region40
    $region39: #{basic_block_forward.7} parent=5 // pred_region
      %s1800 = ssub.s32 %s10, 2
      // Predicated region
      $region41: #{basic_block_forward.7} parent=39 // pred_check
        %p1801 = pneg %p105
      $region42: #{basic_block_forward.7} parent=39 // pred_check_branch
        %1803 = sbr.rel (%p1801) target = $region44
      $region43: #{basic_block_forward.7} parent=39 // pred_region
        %p1804 = scmp.lt.s32.totalorder %s21, 1
        %s1805 = scalar_select %p1804, %s21, 1
        %p1806 = scmp.lt.s32.totalorder %s22, 0
        %s1807 = scalar_select %p1806, %s22, 0
        %s1808 = smul.addr %s1805, 8
        %s1809 = sadd.s32 %s1807, %s1808
        %s1810 = smul.addr %s1809, 8
        %s1811 = scalar_lea.vmem %s2, %s1810
      $region44: #{basic_block_forward.7} parent=39 // pred_fallthru
        _
      // Predicated region
      $region45: #{basic_block_forward.7} parent=39 // pred_check
        %p1812 = pneg %p133
      $region46: #{basic_block_forward.7} parent=39 // pred_check_branch
        %1814 = sbr.rel (%p1812) target = $region48
      $region47: #{basic_block_forward.7} parent=39 // pred_region
        %p1815 = scmp.lt.s32.totalorder %s21, 1
        %s1816 = scalar_select %p1815, %s21, 1
        %p1817 = scmp.lt.s32.totalorder %s22, 0
        %s1818 = scalar_select %p1817, %s22, 0
        %s1819 = sadd.s32 %s1818, %s1816
        %s1820 = smul.addr %s1819, 2
        %s1821 = scalar_lea.vmem %s3, %s1820
      $region48: #{basic_block_forward.7} parent=39 // pred_fallthru
        _
    $region40: #{basic_block_forward.7} parent=5 // pred_fallthru
      _
  $region6: #{basic_block_forward.7} parent=0 // loop_footer
    %s14 = sadd.s32 1, %s10
  $region7: #{basic_block_forward.7} parent=0 // loop_footer_branch
    %9 = sbr.rel target = $region3
  $region8: #{basic_block_forward.7} parent=0 // loop_exit
    _

</llo_original>
